<compile_context>
chip_gen: v7x
topology: tpu7x:2x2x1
jax: 0.10.0
libtpu: 0.0.40
codegen_flags: <defaults>
</compile_context>

<pallas_src>
import functools

import jax
import jax.numpy as jnp
import numpy as np
from jax.experimental import pallas as pl
from jax.experimental.pallas import tpu as pltpu


def _make_masks(H, W, n_tok):
    """9 boundary masks for a 3x3 SAME conv, precomputed on the host.

    The token axis holds `n_tok = Bblk * H * W` tokens (several images merged
    onto the lane axis).  Each mask zeros every token whose tap source pixel
    would fall outside its own image, which also kills all cross-image and
    wrap-around rolls.  Shape (9, 1, n_tok): taps indexed on the leading
    (untiled) axis so in-kernel access is a cheap leading-index load.
    """
    HW = H * W
    t = np.arange(n_tok) % HW
    y = t // W
    x = t % W
    rows = []
    for dy in range(3):
        for dx in range(3):
            m = np.ones(n_tok, dtype=bool)
            if dy == 0:
                m &= y >= 1
            if dy == 2:
                m &= y <= H - 2
            if dx == 0:
                m &= x >= 1
            if dx == 2:
                m &= x <= W - 2
            rows.append(m.astype(np.float32))
    return jnp.asarray(np.stack(rows)[:, None, :])


def _pick_bblk(B, HW, max_lanes=512):
    """Images merged per grid step: amortize per-step overhead and lengthen
    matmul N, but keep grid >= 2 (both v7x TensorCores busy) and cap the lane
    width so vreg pressure stays well under the 64-vreg file."""
    best = 1
    for bb in range(1, B + 1):
        if B % bb == 0 and bb * HW <= max_lanes and B // bb >= 2:
            best = bb
    return best


# --------------------------------------------------------------------------
# Fused encoder kernel: conv3x3+ReLU -> conv3x3+ReLU -> linear, VMEM-resident.
# Layout: channels on sublanes, tokens (Bblk*H*W) on lanes, so every load,
# matmul operand and the final store are fully lane-dense.
#   x_ref  : (1, Cp, N)        input channels (padded to 8) x tokens
#   m_ref  : (9, 1, N)         precomputed boundary masks (f32 0/1)
#   w1_ref : (9, hid, Cp)      conv1 weights, tap-major, transposed
#   w2_ref : (9, hid, hid)     conv2 weights, tap-major, transposed
#   w3_ref : (out, hid)        linear weights, transposed
#   b*_ref : (chan, 1)         biases as column vectors
#   o_ref  : (1, out, N)       transposed output tokens (lane-dense store)
# --------------------------------------------------------------------------
def _fused_encoder_kernel(x_ref, m_ref, w1_ref, b1_ref, w2_ref, b2_ref,
                          w3_ref, b3_ref, o_ref, *, W):
    x = x_ref[0]                                    # (Cp, N) f32
    n = x.shape[1]

    def conv3x3_relu(inp, w_ref, b_ref):
        # 3x3 SAME conv as 9 accumulated MXU dots over lane-rolled taps.
        out_ch = w_ref.shape[1]
        acc = jnp.broadcast_to(b_ref[...], (out_ch, n))   # bias folded in init
        k = 0
        for dy in range(3):
            for dx in range(3):
                off = (dy - 1) * W + (dx - 1)
                tap = inp if off == 0 else pltpu.roll(
                    inp, shift=(-off) % n, axis=1)
                if k != 4:                          # center tap mask is all-1s
                    tap = tap * m_ref[k]
                acc = acc + jnp.dot(w_ref[k], tap,
                                    preferred_element_type=jnp.float32)
                k += 1
        return jnp.maximum(acc, 0.0)

    h1 = conv3x3_relu(x, w1_ref, b1_ref)            # (hid, N)
    h2 = conv3x3_relu(h1, w2_ref, b2_ref)           # (hid, N)

    out = jnp.dot(w3_ref[...], h2,
                  preferred_element_type=jnp.float32) + b3_ref[...]
    o_ref[0] = out.astype(o_ref.dtype)              # (out, N) lane-dense store


def fused_encoder(x_blk, masks, w1s, b1, w2s, b2, w3t, b3, *, W):
    """x_blk: (G, Cp, N) f32 with N = Bblk*H*W tokens; weights kernel-layout."""
    G, Cp, N = x_blk.shape
    hid = w1s.shape[1]
    Co = w3t.shape[0]

    kernel = functools.partial(_fused_encoder_kernel, W=W)
    return pl.pallas_call(
        kernel,
        out_shape=jax.ShapeDtypeStruct((G, Co, N), jnp.float32),
        grid_spec=pltpu.PrefetchScalarGridSpec(
            num_scalar_prefetch=0,
            grid=(G,),
            in_specs=[
                pl.BlockSpec((1, Cp, N), lambda g: (g, 0, 0)),      # x tokens
                pl.BlockSpec((9, 1, N), lambda g: (0, 0, 0)),       # masks
                pl.BlockSpec((9, hid, Cp), lambda g: (0, 0, 0)),    # conv1 w
                pl.BlockSpec((hid, 1), lambda g: (0, 0)),           # conv1 b
                pl.BlockSpec((9, hid, hid), lambda g: (0, 0, 0)),   # conv2 w
                pl.BlockSpec((hid, 1), lambda g: (0, 0)),           # conv2 b
                pl.BlockSpec((Co, hid), lambda g: (0, 0)),          # linear w
                pl.BlockSpec((Co, 1), lambda g: (0, 0)),            # linear b
            ],
            out_specs=pl.BlockSpec((1, Co, N), lambda g: (g, 0, 0)),
        ),
        compiler_params=pltpu.CompilerParams(
            dimension_semantics=("parallel",)),      # batch -> 2 TCs on v7x
    )(x_blk, masks, w1s, b1, w2s, b2, w3t, b3)


# --------------------------------------------------------------------------
# ImageEncoder wrapper (parameters initialized deterministically in-script).
# --------------------------------------------------------------------------
class ImageEncoder:
    # TODO(synk): reference __init__/forward raise NotImplementedError; this is
    # a canonical conv->conv->flatten->linear object encoder with hidden=32.

    def __init__(self, in_channels=4, hidden=32, out_dim=32, key=None):
        if key is None:
            key = jax.random.PRNGKey(0)
        k1, k2, k3, k4, k5, k6 = jax.random.split(key, 6)

        def uinit(k, shape, fan_in):
            bound = 1.0 / np.sqrt(fan_in)
            return jax.random.uniform(k, shape, jnp.float32, -bound, bound)

        self.in_channels = in_channels
        self.hidden = hidden
        self.out_dim = out_dim

        # Canonical HWIO conv weights / (in, out) linear weight.
        self.w1 = uinit(k1, (3, 3, in_channels, hidden), 9 * in_channels)
        self.b1 = uinit(k2, (hidden,), 9 * in_channels)
        self.w2 = uinit(k3, (3, 3, hidden, hidden), 9 * hidden)
        self.b2 = uinit(k4, (hidden,), 9 * hidden)
        self.w3 = uinit(k5, (hidden, out_dim), hidden)
        self.b3 = uinit(k6, (out_dim,), hidden)

        # Kernel-layout parameters, precomputed ONCE (no per-call wrapper XLA):
        # tap-major (9, out_ch, in_ch); conv1 in-channels zero-padded to 8.
        cp = ((in_channels + 7) // 8) * 8
        self._cp = cp
        w1p = jnp.pad(self.w1, ((0, 0), (0, 0), (0, cp - in_channels), (0, 0)))
        self._w1s = jnp.transpose(w1p.reshape(9, cp, hidden), (0, 2, 1))
        self._w2s = jnp.transpose(self.w2.reshape(9, hidden, hidden), (0, 2, 1))
        self._w3t = self.w3.T
        self._b1c = self.b1.reshape(-1, 1)
        self._b2c = self.b2.reshape(-1, 1)
        self._b3c = self.b3.reshape(-1, 1)

    def __call__(self, x, context=None):
        # x: (B, C, H, W) NCHW (PyTorch convention); context is ignored.
        B, C, H, W = x.shape
        HW = H * W
        assert C == self.in_channels
        assert self.hidden % 8 == 0 and self.out_dim % 8 == 0, \
            "channel dims must be multiples of 8 (sublane alignment)"
        assert HW % 128 == 0, \
            "H*W must be a multiple of 128 for lane-dense token stores"

        cp = self._cp
        bblk = _pick_bblk(B, HW)
        g = B // bblk
        n = bblk * HW

        # Layout plumbing only (KB-scale): pad channels to 8 and merge `bblk`
        # images onto the lane/token axis.  The 9x im2col inflation is gone.
        xf = x.astype(jnp.float32).reshape(B, C, HW)
        if cp > C:
            xf = jnp.pad(xf, ((0, 0), (0, cp - C), (0, 0)))
        x_blk = (xf.reshape(g, bblk, cp, HW)
                 .transpose(0, 2, 1, 3)
                 .reshape(g, cp, n))

        masks = _make_masks(H, W, n)                # host-precomputed constant

        out_t = fused_encoder(x_blk, masks, self._w1s, self._b1c,
                              self._w2s, self._b2c, self._w3t, self._b3c,
                              W=W)                  # (g, out, n)

        out = out_t.reshape(g, self.out_dim, bblk, HW)
        return jnp.transpose(out, (0, 2, 3, 1)).reshape(B, HW, self.out_dim)


# Pure-JAX reference for correctness checking.
def _reference(enc: ImageEncoder, x_nchw):
    x = jnp.transpose(x_nchw, (0, 2, 3, 1)).astype(jnp.float32)
    dn = ('NHWC', 'HWIO', 'NHWC')
    y = jax.lax.conv_general_dilated(x, enc.w1, (1, 1), 'SAME',
                                     dimension_numbers=dn) + enc.b1
    y = jnp.maximum(y, 0.0)
    y = jax.lax.conv_general_dilated(y, enc.w2, (1, 1), 'SAME',
                                     dimension_numbers=dn) + enc.b2
    y = jnp.maximum(y, 0.0)
    B, H, W, C = y.shape
    return y.reshape(B, H * W, C) @ enc.w3 + enc.b3


if __name__ == "__main__":
    key = jax.random.PRNGKey(0)
    k_param, k_x1, k_x2 = jax.random.split(key, 3)

    enc = ImageEncoder(in_channels=4, hidden=32, out_dim=32, key=k_param)

    # Primary shapes (B=2 -> Bblk=1, grid=2: both TCs busy on v7x).
    x = jax.random.normal(k_x1, (2, 4, 16, 16), dtype=jnp.float32)  # NCHW
    out = jax.block_until_ready(enc(x, context=None))
    ref = jax.block_until_ready(_reference(enc, x))
    np.testing.assert_allclose(np.asarray(out), np.asarray(ref),
                               rtol=1e-4, atol=1e-4)

    # Also exercise the batch-merged-onto-lanes path (B=4 -> Bblk=2, N=512).
    x4 = jax.random.normal(k_x2, (4, 4, 16, 16), dtype=jnp.float32)
    out4 = jax.block_until_ready(enc(x4, context=None))
    ref4 = jax.block_until_ready(_reference(enc, x4))
    np.testing.assert_allclose(np.asarray(out4), np.asarray(ref4),
                               rtol=1e-4, atol=1e-4)

    print("KERNEL_OK")
</pallas_src>

<mosaic_0001>
module attributes {stable_mosaic.version = 11 : i64} {
  func.func @_fused_encoder_kernel(%arg0: i32, %arg1: memref<1x8x256xf32, #tpu.memory_space<vmem>>, %arg2: memref<9x1x256xf32, #tpu.memory_space<vmem>>, %arg3: memref<9x32x8xf32, #tpu.memory_space<vmem>>, %arg4: memref<32x1xf32, #tpu.memory_space<vmem>>, %arg5: memref<9x32x32xf32, #tpu.memory_space<vmem>>, %arg6: memref<32x1xf32, #tpu.memory_space<vmem>>, %arg7: memref<32x32xf32, #tpu.memory_space<vmem>>, %arg8: memref<32x1xf32, #tpu.memory_space<vmem>>, %arg9: memref<1x32x256xf32, #tpu.memory_space<vmem>>) attributes {dimension_semantics = [#tpu.dimension_semantics<parallel>], iteration_bounds = array<i64: 2>, scalar_prefetch = 0 : i64, scratch_operands = 0 : i64, tpu.core_type = #tpu.core_type<tc>, window_params = [{transform_indices = @transform_0, window_bounds = array<i64: 1, 8, 256>}, {pipeline_mode = #tpu.pipeline_mode<synchronous>, transform_indices = @transform_1, window_bounds = array<i64: 9, 1, 256>}, {pipeline_mode = #tpu.pipeline_mode<synchronous>, transform_indices = @transform_2, window_bounds = array<i64: 9, 32, 8>}, {pipeline_mode = #tpu.pipeline_mode<synchronous>, transform_indices = @transform_3, window_bounds = array<i64: 32, 1>}, {pipeline_mode = #tpu.pipeline_mode<synchronous>, transform_indices = @transform_4, window_bounds = array<i64: 9, 32, 32>}, {pipeline_mode = #tpu.pipeline_mode<synchronous>, transform_indices = @transform_5, window_bounds = array<i64: 32, 1>}, {pipeline_mode = #tpu.pipeline_mode<synchronous>, transform_indices = @transform_6, window_bounds = array<i64: 32, 32>}, {pipeline_mode = #tpu.pipeline_mode<synchronous>, transform_indices = @transform_7, window_bounds = array<i64: 32, 1>}, {transform_indices = @transform_8, window_bounds = array<i64: 1, 32, 256>}]} {
    %c0 = arith.constant 0 : index
    %c0_0 = arith.constant 0 : index
    %c0_1 = arith.constant 0 : index
    %0 = vector.load %arg1[%c0, %c0_0, %c0_1] : memref<1x8x256xf32, #tpu.memory_space<vmem>>, vector<1x8x256xf32>
    %1 = vector.shape_cast %0 : vector<1x8x256xf32> to vector<8x256xf32>
    %c0_2 = arith.constant 0 : index
    %c0_3 = arith.constant 0 : index
    %2 = vector.load %arg4[%c0_2, %c0_3] : memref<32x1xf32, #tpu.memory_space<vmem>>, vector<32x1xf32>
    %3 = vector.shape_cast %2 : vector<32x1xf32> to vector<32x1xf32>
    %4 = vector.broadcast %3 : vector<32x1xf32> to vector<32x256xf32>
    %c17_i32 = arith.constant 17 : i32
    %5 = tpu.dynamic_rotate %1 by %c17_i32 dim 1 : vector<8x256xf32>, i32 -> vector<8x256xf32>
    %c0_4 = arith.constant 0 : index
    %c0_5 = arith.constant 0 : index
    %c0_6 = arith.constant 0 : index
    %6 = vector.load %arg2[%c0_4, %c0_5, %c0_6] : memref<9x1x256xf32, #tpu.memory_space<vmem>>, vector<1x1x256xf32>
    %7 = vector.shape_cast %6 : vector<1x1x256xf32> to vector<1x256xf32>
    %8 = vector.broadcast %7 : vector<1x256xf32> to vector<8x256xf32>
    %9 = arith.mulf %5, %8 : vector<8x256xf32>
    %c0_7 = arith.constant 0 : index
    %c0_8 = arith.constant 0 : index
    %c0_9 = arith.constant 0 : index
    %10 = vector.load %arg3[%c0_7, %c0_8, %c0_9] : memref<9x32x8xf32, #tpu.memory_space<vmem>>, vector<1x32x8xf32>
    %11 = vector.shape_cast %10 : vector<1x32x8xf32> to vector<32x8xf32>
    %cst = arith.constant dense<0.000000e+00> : vector<32x256xf32>
    %12 = tpu.matmul %11, %9, %cst {dimension_numbers = #tpu.dot_dimension_numbers<[1], [0], [0], [1], [0, 0, 1, 1], [], []>} : vector<32x8xf32>, vector<8x256xf32>, vector<32x256xf32> -> vector<32x256xf32>
    %13 = arith.addf %4, %12 : vector<32x256xf32>
    %c16_i32 = arith.constant 16 : i32
    %14 = tpu.dynamic_rotate %1 by %c16_i32 dim 1 : vector<8x256xf32>, i32 -> vector<8x256xf32>
    %c1 = arith.constant 1 : index
    %c0_10 = arith.constant 0 : index
    %c0_11 = arith.constant 0 : index
    %15 = vector.load %arg2[%c1, %c0_10, %c0_11] : memref<9x1x256xf32, #tpu.memory_space<vmem>>, vector<1x1x256xf32>
    %16 = vector.shape_cast %15 : vector<1x1x256xf32> to vector<1x256xf32>
    %17 = vector.broadcast %16 : vector<1x256xf32> to vector<8x256xf32>
    %18 = arith.mulf %14, %17 : vector<8x256xf32>
    %c1_12 = arith.constant 1 : index
    %c0_13 = arith.constant 0 : index
    %c0_14 = arith.constant 0 : index
    %19 = vector.load %arg3[%c1_12, %c0_13, %c0_14] : memref<9x32x8xf32, #tpu.memory_space<vmem>>, vector<1x32x8xf32>
    %20 = vector.shape_cast %19 : vector<1x32x8xf32> to vector<32x8xf32>
    %cst_15 = arith.constant dense<0.000000e+00> : vector<32x256xf32>
    %21 = tpu.matmul %20, %18, %cst_15 {dimension_numbers = #tpu.dot_dimension_numbers<[1], [0], [0], [1], [0, 0, 1, 1], [], []>} : vector<32x8xf32>, vector<8x256xf32>, vector<32x256xf32> -> vector<32x256xf32>
    %22 = arith.addf %13, %21 : vector<32x256xf32>
    %c15_i32 = arith.constant 15 : i32
    %23 = tpu.dynamic_rotate %1 by %c15_i32 dim 1 : vector<8x256xf32>, i32 -> vector<8x256xf32>
    %c2 = arith.constant 2 : index
    %c0_16 = arith.constant 0 : index
    %c0_17 = arith.constant 0 : index
    %24 = vector.load %arg2[%c2, %c0_16, %c0_17] : memref<9x1x256xf32, #tpu.memory_space<vmem>>, vector<1x1x256xf32>
    %25 = vector.shape_cast %24 : vector<1x1x256xf32> to vector<1x256xf32>
    %26 = vector.broadcast %25 : vector<1x256xf32> to vector<8x256xf32>
    %27 = arith.mulf %23, %26 : vector<8x256xf32>
    %c2_18 = arith.constant 2 : index
    %c0_19 = arith.constant 0 : index
    %c0_20 = arith.constant 0 : index
    %28 = vector.load %arg3[%c2_18, %c0_19, %c0_20] : memref<9x32x8xf32, #tpu.memory_space<vmem>>, vector<1x32x8xf32>
    %29 = vector.shape_cast %28 : vector<1x32x8xf32> to vector<32x8xf32>
    %cst_21 = arith.constant dense<0.000000e+00> : vector<32x256xf32>
    %30 = tpu.matmul %29, %27, %cst_21 {dimension_numbers = #tpu.dot_dimension_numbers<[1], [0], [0], [1], [0, 0, 1, 1], [], []>} : vector<32x8xf32>, vector<8x256xf32>, vector<32x256xf32> -> vector<32x256xf32>
    %31 = arith.addf %22, %30 : vector<32x256xf32>
    %c1_i32 = arith.constant 1 : i32
    %32 = tpu.dynamic_rotate %1 by %c1_i32 dim 1 : vector<8x256xf32>, i32 -> vector<8x256xf32>
    %c3 = arith.constant 3 : index
    %c0_22 = arith.constant 0 : index
    %c0_23 = arith.constant 0 : index
    %33 = vector.load %arg2[%c3, %c0_22, %c0_23] : memref<9x1x256xf32, #tpu.memory_space<vmem>>, vector<1x1x256xf32>
    %34 = vector.shape_cast %33 : vector<1x1x256xf32> to vector<1x256xf32>
    %35 = vector.broadcast %34 : vector<1x256xf32> to vector<8x256xf32>
    %36 = arith.mulf %32, %35 : vector<8x256xf32>
    %c3_24 = arith.constant 3 : index
    %c0_25 = arith.constant 0 : index
    %c0_26 = arith.constant 0 : index
    %37 = vector.load %arg3[%c3_24, %c0_25, %c0_26] : memref<9x32x8xf32, #tpu.memory_space<vmem>>, vector<1x32x8xf32>
    %38 = vector.shape_cast %37 : vector<1x32x8xf32> to vector<32x8xf32>
    %cst_27 = arith.constant dense<0.000000e+00> : vector<32x256xf32>
    %39 = tpu.matmul %38, %36, %cst_27 {dimension_numbers = #tpu.dot_dimension_numbers<[1], [0], [0], [1], [0, 0, 1, 1], [], []>} : vector<32x8xf32>, vector<8x256xf32>, vector<32x256xf32> -> vector<32x256xf32>
    %40 = arith.addf %31, %39 : vector<32x256xf32>
    %c4 = arith.constant 4 : index
    %c0_28 = arith.constant 0 : index
    %c0_29 = arith.constant 0 : index
    %41 = vector.load %arg3[%c4, %c0_28, %c0_29] : memref<9x32x8xf32, #tpu.memory_space<vmem>>, vector<1x32x8xf32>
    %42 = vector.shape_cast %41 : vector<1x32x8xf32> to vector<32x8xf32>
    %cst_30 = arith.constant dense<0.000000e+00> : vector<32x256xf32>
    %43 = tpu.matmul %42, %1, %cst_30 {dimension_numbers = #tpu.dot_dimension_numbers<[1], [0], [0], [1], [0, 0, 1, 1], [], []>} : vector<32x8xf32>, vector<8x256xf32>, vector<32x256xf32> -> vector<32x256xf32>
    %44 = arith.addf %40, %43 : vector<32x256xf32>
    %c255_i32 = arith.constant 255 : i32
    %45 = tpu.dynamic_rotate %1 by %c255_i32 dim 1 : vector<8x256xf32>, i32 -> vector<8x256xf32>
    %c5 = arith.constant 5 : index
    %c0_31 = arith.constant 0 : index
    %c0_32 = arith.constant 0 : index
    %46 = vector.load %arg2[%c5, %c0_31, %c0_32] : memref<9x1x256xf32, #tpu.memory_space<vmem>>, vector<1x1x256xf32>
    %47 = vector.shape_cast %46 : vector<1x1x256xf32> to vector<1x256xf32>
    %48 = vector.broadcast %47 : vector<1x256xf32> to vector<8x256xf32>
    %49 = arith.mulf %45, %48 : vector<8x256xf32>
    %c5_33 = arith.constant 5 : index
    %c0_34 = arith.constant 0 : index
    %c0_35 = arith.constant 0 : index
    %50 = vector.load %arg3[%c5_33, %c0_34, %c0_35] : memref<9x32x8xf32, #tpu.memory_space<vmem>>, vector<1x32x8xf32>
    %51 = vector.shape_cast %50 : vector<1x32x8xf32> to vector<32x8xf32>
    %cst_36 = arith.constant dense<0.000000e+00> : vector<32x256xf32>
    %52 = tpu.matmul %51, %49, %cst_36 {dimension_numbers = #tpu.dot_dimension_numbers<[1], [0], [0], [1], [0, 0, 1, 1], [], []>} : vector<32x8xf32>, vector<8x256xf32>, vector<32x256xf32> -> vector<32x256xf32>
    %53 = arith.addf %44, %52 : vector<32x256xf32>
    %c241_i32 = arith.constant 241 : i32
    %54 = tpu.dynamic_rotate %1 by %c241_i32 dim 1 : vector<8x256xf32>, i32 -> vector<8x256xf32>
    %c6 = arith.constant 6 : index
    %c0_37 = arith.constant 0 : index
    %c0_38 = arith.constant 0 : index
    %55 = vector.load %arg2[%c6, %c0_37, %c0_38] : memref<9x1x256xf32, #tpu.memory_space<vmem>>, vector<1x1x256xf32>
    %56 = vector.shape_cast %55 : vector<1x1x256xf32> to vector<1x256xf32>
    %57 = vector.broadcast %56 : vector<1x256xf32> to vector<8x256xf32>
    %58 = arith.mulf %54, %57 : vector<8x256xf32>
    %c6_39 = arith.constant 6 : index
    %c0_40 = arith.constant 0 : index
    %c0_41 = arith.constant 0 : index
    %59 = vector.load %arg3[%c6_39, %c0_40, %c0_41] : memref<9x32x8xf32, #tpu.memory_space<vmem>>, vector<1x32x8xf32>
    %60 = vector.shape_cast %59 : vector<1x32x8xf32> to vector<32x8xf32>
    %cst_42 = arith.constant dense<0.000000e+00> : vector<32x256xf32>
    %61 = tpu.matmul %60, %58, %cst_42 {dimension_numbers = #tpu.dot_dimension_numbers<[1], [0], [0], [1], [0, 0, 1, 1], [], []>} : vector<32x8xf32>, vector<8x256xf32>, vector<32x256xf32> -> vector<32x256xf32>
    %62 = arith.addf %53, %61 : vector<32x256xf32>
    %c240_i32 = arith.constant 240 : i32
    %63 = tpu.dynamic_rotate %1 by %c240_i32 dim 1 : vector<8x256xf32>, i32 -> vector<8x256xf32>
    %c7 = arith.constant 7 : index
    %c0_43 = arith.constant 0 : index
    %c0_44 = arith.constant 0 : index
    %64 = vector.load %arg2[%c7, %c0_43, %c0_44] : memref<9x1x256xf32, #tpu.memory_space<vmem>>, vector<1x1x256xf32>
    %65 = vector.shape_cast %64 : vector<1x1x256xf32> to vector<1x256xf32>
    %66 = vector.broadcast %65 : vector<1x256xf32> to vector<8x256xf32>
    %67 = arith.mulf %63, %66 : vector<8x256xf32>
    %c7_45 = arith.constant 7 : index
    %c0_46 = arith.constant 0 : index
    %c0_47 = arith.constant 0 : index
    %68 = vector.load %arg3[%c7_45, %c0_46, %c0_47] : memref<9x32x8xf32, #tpu.memory_space<vmem>>, vector<1x32x8xf32>
    %69 = vector.shape_cast %68 : vector<1x32x8xf32> to vector<32x8xf32>
    %cst_48 = arith.constant dense<0.000000e+00> : vector<32x256xf32>
    %70 = tpu.matmul %69, %67, %cst_48 {dimension_numbers = #tpu.dot_dimension_numbers<[1], [0], [0], [1], [0, 0, 1, 1], [], []>} : vector<32x8xf32>, vector<8x256xf32>, vector<32x256xf32> -> vector<32x256xf32>
    %71 = arith.addf %62, %70 : vector<32x256xf32>
    %c239_i32 = arith.constant 239 : i32
    %72 = tpu.dynamic_rotate %1 by %c239_i32 dim 1 : vector<8x256xf32>, i32 -> vector<8x256xf32>
    %c8 = arith.constant 8 : index
    %c0_49 = arith.constant 0 : index
    %c0_50 = arith.constant 0 : index
    %73 = vector.load %arg2[%c8, %c0_49, %c0_50] : memref<9x1x256xf32, #tpu.memory_space<vmem>>, vector<1x1x256xf32>
    %74 = vector.shape_cast %73 : vector<1x1x256xf32> to vector<1x256xf32>
    %75 = vector.broadcast %74 : vector<1x256xf32> to vector<8x256xf32>
    %76 = arith.mulf %72, %75 : vector<8x256xf32>
    %c8_51 = arith.constant 8 : index
    %c0_52 = arith.constant 0 : index
    %c0_53 = arith.constant 0 : index
    %77 = vector.load %arg3[%c8_51, %c0_52, %c0_53] : memref<9x32x8xf32, #tpu.memory_space<vmem>>, vector<1x32x8xf32>
    %78 = vector.shape_cast %77 : vector<1x32x8xf32> to vector<32x8xf32>
    %cst_54 = arith.constant dense<0.000000e+00> : vector<32x256xf32>
    %79 = tpu.matmul %78, %76, %cst_54 {dimension_numbers = #tpu.dot_dimension_numbers<[1], [0], [0], [1], [0, 0, 1, 1], [], []>} : vector<32x8xf32>, vector<8x256xf32>, vector<32x256xf32> -> vector<32x256xf32>
    %80 = arith.addf %71, %79 : vector<32x256xf32>
    %cst_55 = arith.constant 0.000000e+00 : f32
    %81 = vector.broadcast %cst_55 : f32 to vector<32x256xf32>
    %82 = arith.maximumf %80, %81 : vector<32x256xf32>
    %c0_56 = arith.constant 0 : index
    %c0_57 = arith.constant 0 : index
    %83 = vector.load %arg6[%c0_56, %c0_57] : memref<32x1xf32, #tpu.memory_space<vmem>>, vector<32x1xf32>
    %84 = vector.shape_cast %83 : vector<32x1xf32> to vector<32x1xf32>
    %85 = vector.broadcast %84 : vector<32x1xf32> to vector<32x256xf32>
    %c17_i32_58 = arith.constant 17 : i32
    %86 = tpu.dynamic_rotate %82 by %c17_i32_58 dim 1 : vector<32x256xf32>, i32 -> vector<32x256xf32>
    %c0_59 = arith.constant 0 : index
    %c0_60 = arith.constant 0 : index
    %c0_61 = arith.constant 0 : index
    %87 = vector.load %arg2[%c0_59, %c0_60, %c0_61] : memref<9x1x256xf32, #tpu.memory_space<vmem>>, vector<1x1x256xf32>
    %88 = vector.shape_cast %87 : vector<1x1x256xf32> to vector<1x256xf32>
    %89 = vector.broadcast %88 : vector<1x256xf32> to vector<32x256xf32>
    %90 = arith.mulf %86, %89 : vector<32x256xf32>
    %c0_62 = arith.constant 0 : index
    %c0_63 = arith.constant 0 : index
    %c0_64 = arith.constant 0 : index
    %91 = vector.load %arg5[%c0_62, %c0_63, %c0_64] : memref<9x32x32xf32, #tpu.memory_space<vmem>>, vector<1x32x32xf32>
    %92 = vector.shape_cast %91 : vector<1x32x32xf32> to vector<32x32xf32>
    %cst_65 = arith.constant dense<0.000000e+00> : vector<32x256xf32>
    %93 = tpu.matmul %92, %90, %cst_65 {dimension_numbers = #tpu.dot_dimension_numbers<[1], [0], [0], [1], [0, 0, 1, 1], [], []>} : vector<32x32xf32>, vector<32x256xf32>, vector<32x256xf32> -> vector<32x256xf32>
    %94 = arith.addf %85, %93 : vector<32x256xf32>
    %c16_i32_66 = arith.constant 16 : i32
    %95 = tpu.dynamic_rotate %82 by %c16_i32_66 dim 1 : vector<32x256xf32>, i32 -> vector<32x256xf32>
    %c1_67 = arith.constant 1 : index
    %c0_68 = arith.constant 0 : index
    %c0_69 = arith.constant 0 : index
    %96 = vector.load %arg2[%c1_67, %c0_68, %c0_69] : memref<9x1x256xf32, #tpu.memory_space<vmem>>, vector<1x1x256xf32>
    %97 = vector.shape_cast %96 : vector<1x1x256xf32> to vector<1x256xf32>
    %98 = vector.broadcast %97 : vector<1x256xf32> to vector<32x256xf32>
    %99 = arith.mulf %95, %98 : vector<32x256xf32>
    %c1_70 = arith.constant 1 : index
    %c0_71 = arith.constant 0 : index
    %c0_72 = arith.constant 0 : index
    %100 = vector.load %arg5[%c1_70, %c0_71, %c0_72] : memref<9x32x32xf32, #tpu.memory_space<vmem>>, vector<1x32x32xf32>
    %101 = vector.shape_cast %100 : vector<1x32x32xf32> to vector<32x32xf32>
    %cst_73 = arith.constant dense<0.000000e+00> : vector<32x256xf32>
    %102 = tpu.matmul %101, %99, %cst_73 {dimension_numbers = #tpu.dot_dimension_numbers<[1], [0], [0], [1], [0, 0, 1, 1], [], []>} : vector<32x32xf32>, vector<32x256xf32>, vector<32x256xf32> -> vector<32x256xf32>
    %103 = arith.addf %94, %102 : vector<32x256xf32>
    %c15_i32_74 = arith.constant 15 : i32
    %104 = tpu.dynamic_rotate %82 by %c15_i32_74 dim 1 : vector<32x256xf32>, i32 -> vector<32x256xf32>
    %c2_75 = arith.constant 2 : index
    %c0_76 = arith.constant 0 : index
    %c0_77 = arith.constant 0 : index
    %105 = vector.load %arg2[%c2_75, %c0_76, %c0_77] : memref<9x1x256xf32, #tpu.memory_space<vmem>>, vector<1x1x256xf32>
    %106 = vector.shape_cast %105 : vector<1x1x256xf32> to vector<1x256xf32>
    %107 = vector.broadcast %106 : vector<1x256xf32> to vector<32x256xf32>
    %108 = arith.mulf %104, %107 : vector<32x256xf32>
    %c2_78 = arith.constant 2 : index
    %c0_79 = arith.constant 0 : index
    %c0_80 = arith.constant 0 : index
    %109 = vector.load %arg5[%c2_78, %c0_79, %c0_80] : memref<9x32x32xf32, #tpu.memory_space<vmem>>, vector<1x32x32xf32>
    %110 = vector.shape_cast %109 : vector<1x32x32xf32> to vector<32x32xf32>
    %cst_81 = arith.constant dense<0.000000e+00> : vector<32x256xf32>
    %111 = tpu.matmul %110, %108, %cst_81 {dimension_numbers = #tpu.dot_dimension_numbers<[1], [0], [0], [1], [0, 0, 1, 1], [], []>} : vector<32x32xf32>, vector<32x256xf32>, vector<32x256xf32> -> vector<32x256xf32>
    %112 = arith.addf %103, %111 : vector<32x256xf32>
    %c1_i32_82 = arith.constant 1 : i32
    %113 = tpu.dynamic_rotate %82 by %c1_i32_82 dim 1 : vector<32x256xf32>, i32 -> vector<32x256xf32>
    %c3_83 = arith.constant 3 : index
    %c0_84 = arith.constant 0 : index
    %c0_85 = arith.constant 0 : index
    %114 = vector.load %arg2[%c3_83, %c0_84, %c0_85] : memref<9x1x256xf32, #tpu.memory_space<vmem>>, vector<1x1x256xf32>
    %115 = vector.shape_cast %114 : vector<1x1x256xf32> to vector<1x256xf32>
    %116 = vector.broadcast %115 : vector<1x256xf32> to vector<32x256xf32>
    %117 = arith.mulf %113, %116 : vector<32x256xf32>
    %c3_86 = arith.constant 3 : index
    %c0_87 = arith.constant 0 : index
    %c0_88 = arith.constant 0 : index
    %118 = vector.load %arg5[%c3_86, %c0_87, %c0_88] : memref<9x32x32xf32, #tpu.memory_space<vmem>>, vector<1x32x32xf32>
    %119 = vector.shape_cast %118 : vector<1x32x32xf32> to vector<32x32xf32>
    %cst_89 = arith.constant dense<0.000000e+00> : vector<32x256xf32>
    %120 = tpu.matmul %119, %117, %cst_89 {dimension_numbers = #tpu.dot_dimension_numbers<[1], [0], [0], [1], [0, 0, 1, 1], [], []>} : vector<32x32xf32>, vector<32x256xf32>, vector<32x256xf32> -> vector<32x256xf32>
    %121 = arith.addf %112, %120 : vector<32x256xf32>
    %c4_90 = arith.constant 4 : index
    %c0_91 = arith.constant 0 : index
    %c0_92 = arith.constant 0 : index
    %122 = vector.load %arg5[%c4_90, %c0_91, %c0_92] : memref<9x32x32xf32, #tpu.memory_space<vmem>>, vector<1x32x32xf32>
    %123 = vector.shape_cast %122 : vector<1x32x32xf32> to vector<32x32xf32>
    %cst_93 = arith.constant dense<0.000000e+00> : vector<32x256xf32>
    %124 = tpu.matmul %123, %82, %cst_93 {dimension_numbers = #tpu.dot_dimension_numbers<[1], [0], [0], [1], [0, 0, 1, 1], [], []>} : vector<32x32xf32>, vector<32x256xf32>, vector<32x256xf32> -> vector<32x256xf32>
    %125 = arith.addf %121, %124 : vector<32x256xf32>
    %c255_i32_94 = arith.constant 255 : i32
    %126 = tpu.dynamic_rotate %82 by %c255_i32_94 dim 1 : vector<32x256xf32>, i32 -> vector<32x256xf32>
    %c5_95 = arith.constant 5 : index
    %c0_96 = arith.constant 0 : index
    %c0_97 = arith.constant 0 : index
    %127 = vector.load %arg2[%c5_95, %c0_96, %c0_97] : memref<9x1x256xf32, #tpu.memory_space<vmem>>, vector<1x1x256xf32>
    %128 = vector.shape_cast %127 : vector<1x1x256xf32> to vector<1x256xf32>
    %129 = vector.broadcast %128 : vector<1x256xf32> to vector<32x256xf32>
    %130 = arith.mulf %126, %129 : vector<32x256xf32>
    %c5_98 = arith.constant 5 : index
    %c0_99 = arith.constant 0 : index
    %c0_100 = arith.constant 0 : index
    %131 = vector.load %arg5[%c5_98, %c0_99, %c0_100] : memref<9x32x32xf32, #tpu.memory_space<vmem>>, vector<1x32x32xf32>
    %132 = vector.shape_cast %131 : vector<1x32x32xf32> to vector<32x32xf32>
    %cst_101 = arith.constant dense<0.000000e+00> : vector<32x256xf32>
    %133 = tpu.matmul %132, %130, %cst_101 {dimension_numbers = #tpu.dot_dimension_numbers<[1], [0], [0], [1], [0, 0, 1, 1], [], []>} : vector<32x32xf32>, vector<32x256xf32>, vector<32x256xf32> -> vector<32x256xf32>
    %134 = arith.addf %125, %133 : vector<32x256xf32>
    %c241_i32_102 = arith.constant 241 : i32
    %135 = tpu.dynamic_rotate %82 by %c241_i32_102 dim 1 : vector<32x256xf32>, i32 -> vector<32x256xf32>
    %c6_103 = arith.constant 6 : index
    %c0_104 = arith.constant 0 : index
    %c0_105 = arith.constant 0 : index
    %136 = vector.load %arg2[%c6_103, %c0_104, %c0_105] : memref<9x1x256xf32, #tpu.memory_space<vmem>>, vector<1x1x256xf32>
    %137 = vector.shape_cast %136 : vector<1x1x256xf32> to vector<1x256xf32>
    %138 = vector.broadcast %137 : vector<1x256xf32> to vector<32x256xf32>
    %139 = arith.mulf %135, %138 : vector<32x256xf32>
    %c6_106 = arith.constant 6 : index
    %c0_107 = arith.constant 0 : index
    %c0_108 = arith.constant 0 : index
    %140 = vector.load %arg5[%c6_106, %c0_107, %c0_108] : memref<9x32x32xf32, #tpu.memory_space<vmem>>, vector<1x32x32xf32>
    %141 = vector.shape_cast %140 : vector<1x32x32xf32> to vector<32x32xf32>
    %cst_109 = arith.constant dense<0.000000e+00> : vector<32x256xf32>
    %142 = tpu.matmul %141, %139, %cst_109 {dimension_numbers = #tpu.dot_dimension_numbers<[1], [0], [0], [1], [0, 0, 1, 1], [], []>} : vector<32x32xf32>, vector<32x256xf32>, vector<32x256xf32> -> vector<32x256xf32>
    %143 = arith.addf %134, %142 : vector<32x256xf32>
    %c240_i32_110 = arith.constant 240 : i32
    %144 = tpu.dynamic_rotate %82 by %c240_i32_110 dim 1 : vector<32x256xf32>, i32 -> vector<32x256xf32>
    %c7_111 = arith.constant 7 : index
    %c0_112 = arith.constant 0 : index
    %c0_113 = arith.constant 0 : index
    %145 = vector.load %arg2[%c7_111, %c0_112, %c0_113] : memref<9x1x256xf32, #tpu.memory_space<vmem>>, vector<1x1x256xf32>
    %146 = vector.shape_cast %145 : vector<1x1x256xf32> to vector<1x256xf32>
    %147 = vector.broadcast %146 : vector<1x256xf32> to vector<32x256xf32>
    %148 = arith.mulf %144, %147 : vector<32x256xf32>
    %c7_114 = arith.constant 7 : index
    %c0_115 = arith.constant 0 : index
    %c0_116 = arith.constant 0 : index
    %149 = vector.load %arg5[%c7_114, %c0_115, %c0_116] : memref<9x32x32xf32, #tpu.memory_space<vmem>>, vector<1x32x32xf32>
    %150 = vector.shape_cast %149 : vector<1x32x32xf32> to vector<32x32xf32>
    %cst_117 = arith.constant dense<0.000000e+00> : vector<32x256xf32>
    %151 = tpu.matmul %150, %148, %cst_117 {dimension_numbers = #tpu.dot_dimension_numbers<[1], [0], [0], [1], [0, 0, 1, 1], [], []>} : vector<32x32xf32>, vector<32x256xf32>, vector<32x256xf32> -> vector<32x256xf32>
    %152 = arith.addf %143, %151 : vector<32x256xf32>
    %c239_i32_118 = arith.constant 239 : i32
    %153 = tpu.dynamic_rotate %82 by %c239_i32_118 dim 1 : vector<32x256xf32>, i32 -> vector<32x256xf32>
    %c8_119 = arith.constant 8 : index
    %c0_120 = arith.constant 0 : index
    %c0_121 = arith.constant 0 : index
    %154 = vector.load %arg2[%c8_119, %c0_120, %c0_121] : memref<9x1x256xf32, #tpu.memory_space<vmem>>, vector<1x1x256xf32>
    %155 = vector.shape_cast %154 : vector<1x1x256xf32> to vector<1x256xf32>
    %156 = vector.broadcast %155 : vector<1x256xf32> to vector<32x256xf32>
    %157 = arith.mulf %153, %156 : vector<32x256xf32>
    %c8_122 = arith.constant 8 : index
    %c0_123 = arith.constant 0 : index
    %c0_124 = arith.constant 0 : index
    %158 = vector.load %arg5[%c8_122, %c0_123, %c0_124] : memref<9x32x32xf32, #tpu.memory_space<vmem>>, vector<1x32x32xf32>
    %159 = vector.shape_cast %158 : vector<1x32x32xf32> to vector<32x32xf32>
    %cst_125 = arith.constant dense<0.000000e+00> : vector<32x256xf32>
    %160 = tpu.matmul %159, %157, %cst_125 {dimension_numbers = #tpu.dot_dimension_numbers<[1], [0], [0], [1], [0, 0, 1, 1], [], []>} : vector<32x32xf32>, vector<32x256xf32>, vector<32x256xf32> -> vector<32x256xf32>
    %161 = arith.addf %152, %160 : vector<32x256xf32>
    %cst_126 = arith.constant 0.000000e+00 : f32
    %162 = vector.broadcast %cst_126 : f32 to vector<32x256xf32>
    %163 = arith.maximumf %161, %162 : vector<32x256xf32>
    %c0_127 = arith.constant 0 : index
    %c0_128 = arith.constant 0 : index
    %164 = vector.load %arg7[%c0_127, %c0_128] : memref<32x32xf32, #tpu.memory_space<vmem>>, vector<32x32xf32>
    %cst_129 = arith.constant dense<0.000000e+00> : vector<32x256xf32>
    %165 = tpu.matmul %164, %163, %cst_129 {dimension_numbers = #tpu.dot_dimension_numbers<[1], [0], [0], [1], [0, 0, 1, 1], [], []>} : vector<32x32xf32>, vector<32x256xf32>, vector<32x256xf32> -> vector<32x256xf32>
    %c0_130 = arith.constant 0 : index
    %c0_131 = arith.constant 0 : index
    %166 = vector.load %arg8[%c0_130, %c0_131] : memref<32x1xf32, #tpu.memory_space<vmem>>, vector<32x1xf32>
    %167 = vector.broadcast %166 : vector<32x1xf32> to vector<32x256xf32>
    %168 = arith.addf %165, %167 : vector<32x256xf32>
    %c0_132 = arith.constant 0 : index
    %c0_133 = arith.constant 0 : index
    %c0_134 = arith.constant 0 : index
    %169 = vector.load %arg9[%c0_132, %c0_133, %c0_134] : memref<1x32x256xf32, #tpu.memory_space<vmem>>, vector<1x32x256xf32>
    %170 = vector.shape_cast %169 : vector<1x32x256xf32> to vector<32x256xf32>
    %171 = vector.shape_cast %168 : vector<32x256xf32> to vector<1x32x256xf32>
    tpu.vector_store %arg9[%c0_132, %c0_133, %c0_134], %171 {strides = array<i32>} : memref<1x32x256xf32, #tpu.memory_space<vmem>>, vector<1x32x256xf32>,
    return
  }
  func.func @transform_0(%arg0: i32) -> (i32, i32, i32) {
    %c0_i32 = arith.constant 0 : i32
    %c0_i32_0 = arith.constant 0 : i32
    %c0_i32_1 = arith.constant 0 : i32
    return %arg0, %c0_i32, %c0_i32_0 : i32, i32, i32
  }
  func.func @transform_1(%arg0: i32) -> (i32, i32, i32) {
    %c0_i32 = arith.constant 0 : i32
    %c0_i32_0 = arith.constant 0 : i32
    %c0_i32_1 = arith.constant 0 : i32
    %c0_i32_2 = arith.constant 0 : i32
    return %c0_i32, %c0_i32_0, %c0_i32_1 : i32, i32, i32
  }
  func.func @transform_2(%arg0: i32) -> (i32, i32, i32) {
    %c0_i32 = arith.constant 0 : i32
    %c0_i32_0 = arith.constant 0 : i32
    %c0_i32_1 = arith.constant 0 : i32
    %c0_i32_2 = arith.constant 0 : i32
    return %c0_i32, %c0_i32_0, %c0_i32_1 : i32, i32, i32
  }
  func.func @transform_3(%arg0: i32) -> (i32, i32) {
    %c0_i32 = arith.constant 0 : i32
    %c0_i32_0 = arith.constant 0 : i32
    %c0_i32_1 = arith.constant 0 : i32
    return %c0_i32, %c0_i32_0 : i32, i32
  }
  func.func @transform_4(%arg0: i32) -> (i32, i32, i32) {
    %c0_i32 = arith.constant 0 : i32
    %c0_i32_0 = arith.constant 0 : i32
    %c0_i32_1 = arith.constant 0 : i32
    %c0_i32_2 = arith.constant 0 : i32
    return %c0_i32, %c0_i32_0, %c0_i32_1 : i32, i32, i32
  }
  func.func @transform_5(%arg0: i32) -> (i32, i32) {
    %c0_i32 = arith.constant 0 : i32
    %c0_i32_0 = arith.constant 0 : i32
    %c0_i32_1 = arith.constant 0 : i32
    return %c0_i32, %c0_i32_0 : i32, i32
  }
  func.func @transform_6(%arg0: i32) -> (i32, i32) {
    %c0_i32 = arith.constant 0 : i32
    %c0_i32_0 = arith.constant 0 : i32
    %c0_i32_1 = arith.constant 0 : i32
    return %c0_i32, %c0_i32_0 : i32, i32
  }
  func.func @transform_7(%arg0: i32) -> (i32, i32) {
    %c0_i32 = arith.constant 0 : i32
    %c0_i32_0 = arith.constant 0 : i32
    %c0_i32_1 = arith.constant 0 : i32
    return %c0_i32, %c0_i32_0 : i32, i32
  }
  func.func @transform_8(%arg0: i32) -> (i32, i32, i32) {
    %c0_i32 = arith.constant 0 : i32
    %c0_i32_0 = arith.constant 0 : i32
    %c0_i32_1 = arith.constant 0 : i32
    return %arg0, %c0_i32, %c0_i32_0 : i32, i32, i32
  }
}

</mosaic_0001>

<llo_original>
// kernel: tpu_custom_call.1
$region0: #{tpu_custom_call.1}
  #allocation0 [shape = 'u32[]', space=smem, size = 0x4, offset = 0x4, fixed_abs, tag = 'smem constant byte address 0x4 - core index']
  #allocation1 [shape = 'u32[144,128]{1,0:T(1,128)}', space=vmem, size = 0x12000, scoped, tag = 'internal scratch']
  %s0 = inlined_call_operand.vmem [shape: f32[2,8,256], index: 0, kind: input, shape index: {}]
  %s1 = inlined_call_operand.vmem [shape: f32[9,1,256], index: 1, kind: input, shape index: {}]
  %s2 = inlined_call_operand.vmem [shape: f32[9,32,8], index: 2, kind: input, shape index: {}]
  %s3 = inlined_call_operand.vmem [shape: f32[32,1], index: 3, kind: input, shape index: {}]
  %s4 = inlined_call_operand.vmem [shape: f32[9,32,32], index: 4, kind: input, shape index: {}]
  %s5 = inlined_call_operand.vmem [shape: f32[32,1], index: 5, kind: input, shape index: {}]
  %s6 = inlined_call_operand.vmem [shape: f32[32,32], index: 6, kind: input, shape index: {}]
  %s7 = inlined_call_operand.vmem [shape: f32[32,1], index: 7, kind: input, shape index: {}]
  %s8 = inlined_call_operand.hbm [shape: f32[2,32,256], index: 8, kind: output, shape index: {}]
  %s9 = sld [smem:[#allocation0]]
  $region65: #{tpu_custom_call.1} parent=0
    _
  %s11 = ssub.s32 1, %s9
  %s12 = scalar_select 0, %s11, %s9
  $region1: #{tpu_custom_call.1} parent=0
    #allocation2 [shape = 'u8[65536]{0}', space=vmem, size = 0x10000, scoped, tag = 'output window, operand 0']
    #allocation3 [shape = 's32[2]{0}', space=sflag, size = 0x8, scoped, tag = 'scoped memory for tpu_custom_call.1']
    %13 = vsyncpa [#allocation3], 0
    %s14 = scalar_lea.sflag [#allocation3], 1
    %15 = vsyncpa %s14, 0
    loop: start=0, step=1, limit=4
    $region2: #{tpu_custom_call.1} parent=1 // loop_pre_header
      _
    $region3: #{tpu_custom_call.1} parent=1 // loop_header
      %s17 = sphi 0, %s21
      %p18 = scmp.ge.s32.totalorder %s17, 4
      %s27 = sphi 0, %s29
      %s30 = sphi 0, %s27
      %s31 = sphi 0, %s30
      %s47 = sphi 0, %s31
      %s51 = sphi 0, %s51
      %s53 = sphi 0, %s51
      %s54 = sphi 0, %s53
      %s68 = sphi 0, %s54
      %s72 = sphi 0, %s72
      %s74 = sphi 0, %s72
      %s75 = sphi 0, %s74
      %s89 = sphi 0, %s75
      %s93 = sphi 0, %s93
      %s95 = sphi 0, %s93
      %s96 = sphi 0, %s95
      %s110 = sphi 0, %s96
      %s114 = sphi 0, %s114
      %s116 = sphi 0, %s114
      %s117 = sphi 0, %s116
      %s131 = sphi 0, %s117
      %s135 = sphi 0, %s135
      %s137 = sphi 0, %s135
      %s138 = sphi 0, %s137
      %s152 = sphi 0, %s138
      %s156 = sphi 0, %s156
      %s158 = sphi 0, %s156
      %s159 = sphi 0, %s158
      %s173 = sphi 0, %s159
      %s177 = sphi 0, %s177
      %s179 = sphi 0, %s177
      %s180 = sphi 0, %s179
      %s194 = sphi 0, %s180
      %s200 = sphi 0, %s202
      %s203 = sphi 0, %s200
      %s204 = sphi 0, %s203
      %s220 = sphi 0, %s204
    $region4: #{tpu_custom_call.1} parent=1 // loop_header_branch
      %20 = sbr.rel (%p18) target = $region8
    $region5: #{tpu_custom_call.1} parent=1 // loop_body
      %s22 = ssub.s32 %s17, 1
      %s23 = ssub.s32 %s17, 2
      %s24 = sadd.s32 %s17, 1
      %s25 = ssub.s32 %s17, %s24
      %p26 = scmp.eq.s32.totalorder %s25, 0
      %s28 = sadd.s32 %s27, 1
      %s29 = scalar_select %p26, %s27, %s28
      %p32 = pneg %p26
      %p33 = scmp.eq.s32.totalorder %s17, 1
      %p34 = por %p32, %p33
      %p35 = scmp.ne.s32.totalorder %s27, %s30
      %p36 = scmp.eq.s32.totalorder %s17, 0
      %p37 = por %p35, %p36
      %p38 = scmp.ne.s32.totalorder %s27, %s30
      %p39 = scmp.eq.s32.totalorder %s22, 1
      %p40 = por %p38, %p39
      %p41 = scmp.ne.s32.totalorder %s30, %s31
      %p42 = scmp.eq.s32.totalorder %s22, 0
      %p43 = por %p41, %p42
      %p44 = scmp.ne.s32.totalorder %s30, %s31
      %p45 = scmp.eq.s32.totalorder %s23, 1
      %p46 = por %p44, %p45
      %p48 = scmp.ne.s32.totalorder %s31, %s47
      %p49 = scmp.eq.s32.totalorder %s23, 0
      %p50 = por %p48, %p49
      %s52 = sadd.s32 %s51, 1
      %p55 = scmp.eq.s32.totalorder %s17, 1
      %p56 = scmp.ne.s32.totalorder %s51, %s53
      %p57 = scmp.eq.s32.totalorder %s17, 0
      %p58 = por %p56, %p57
      %p59 = scmp.ne.s32.totalorder %s51, %s53
      %p60 = scmp.eq.s32.totalorder %s22, 1
      %p61 = por %p59, %p60
      %p62 = scmp.ne.s32.totalorder %s53, %s54
      %p63 = scmp.eq.s32.totalorder %s22, 0
      %p64 = por %p62, %p63
      %p65 = scmp.ne.s32.totalorder %s53, %s54
      %p66 = scmp.eq.s32.totalorder %s23, 1
      %p67 = por %p65, %p66
      %p69 = scmp.ne.s32.totalorder %s54, %s68
      %p70 = scmp.eq.s32.totalorder %s23, 0
      %p71 = por %p69, %p70
      %s73 = sadd.s32 %s72, 1
      %p76 = scmp.eq.s32.totalorder %s17, 1
      %p77 = scmp.ne.s32.totalorder %s72, %s74
      %p78 = scmp.eq.s32.totalorder %s17, 0
      %p79 = por %p77, %p78
      %p80 = scmp.ne.s32.totalorder %s72, %s74
      %p81 = scmp.eq.s32.totalorder %s22, 1
      %p82 = por %p80, %p81
      %p83 = scmp.ne.s32.totalorder %s74, %s75
      %p84 = scmp.eq.s32.totalorder %s22, 0
      %p85 = por %p83, %p84
      %p86 = scmp.ne.s32.totalorder %s74, %s75
      %p87 = scmp.eq.s32.totalorder %s23, 1
      %p88 = por %p86, %p87
      %p90 = scmp.ne.s32.totalorder %s75, %s89
      %p91 = scmp.eq.s32.totalorder %s23, 0
      %p92 = por %p90, %p91
      %s94 = sadd.s32 %s93, 1
      %p97 = scmp.eq.s32.totalorder %s17, 1
      %p98 = scmp.ne.s32.totalorder %s93, %s95
      %p99 = scmp.eq.s32.totalorder %s17, 0
      %p100 = por %p98, %p99
      %p101 = scmp.ne.s32.totalorder %s93, %s95
      %p102 = scmp.eq.s32.totalorder %s22, 1
      %p103 = por %p101, %p102
      %p104 = scmp.ne.s32.totalorder %s95, %s96
      %p105 = scmp.eq.s32.totalorder %s22, 0
      %p106 = por %p104, %p105
      %p107 = scmp.ne.s32.totalorder %s95, %s96
      %p108 = scmp.eq.s32.totalorder %s23, 1
      %p109 = por %p107, %p108
      %p111 = scmp.ne.s32.totalorder %s96, %s110
      %p112 = scmp.eq.s32.totalorder %s23, 0
      %p113 = por %p111, %p112
      %s115 = sadd.s32 %s114, 1
      %p118 = scmp.eq.s32.totalorder %s17, 1
      %p119 = scmp.ne.s32.totalorder %s114, %s116
      %p120 = scmp.eq.s32.totalorder %s17, 0
      %p121 = por %p119, %p120
      %p122 = scmp.ne.s32.totalorder %s114, %s116
      %p123 = scmp.eq.s32.totalorder %s22, 1
      %p124 = por %p122, %p123
      %p125 = scmp.ne.s32.totalorder %s116, %s117
      %p126 = scmp.eq.s32.totalorder %s22, 0
      %p127 = por %p125, %p126
      %p128 = scmp.ne.s32.totalorder %s116, %s117
      %p129 = scmp.eq.s32.totalorder %s23, 1
      %p130 = por %p128, %p129
      %p132 = scmp.ne.s32.totalorder %s117, %s131
      %p133 = scmp.eq.s32.totalorder %s23, 0
      %p134 = por %p132, %p133
      %s136 = sadd.s32 %s135, 1
      %p139 = scmp.eq.s32.totalorder %s17, 1
      %p140 = scmp.ne.s32.totalorder %s135, %s137
      %p141 = scmp.eq.s32.totalorder %s17, 0
      %p142 = por %p140, %p141
      %p143 = scmp.ne.s32.totalorder %s135, %s137
      %p144 = scmp.eq.s32.totalorder %s22, 1
      %p145 = por %p143, %p144
      %p146 = scmp.ne.s32.totalorder %s137, %s138
      %p147 = scmp.eq.s32.totalorder %s22, 0
      %p148 = por %p146, %p147
      %p149 = scmp.ne.s32.totalorder %s137, %s138
      %p150 = scmp.eq.s32.totalorder %s23, 1
      %p151 = por %p149, %p150
      %p153 = scmp.ne.s32.totalorder %s138, %s152
      %p154 = scmp.eq.s32.totalorder %s23, 0
      %p155 = por %p153, %p154
      %s157 = sadd.s32 %s156, 1
      %p160 = scmp.eq.s32.totalorder %s17, 1
      %p161 = scmp.ne.s32.totalorder %s156, %s158
      %p162 = scmp.eq.s32.totalorder %s17, 0
      %p163 = por %p161, %p162
      %p164 = scmp.ne.s32.totalorder %s156, %s158
      %p165 = scmp.eq.s32.totalorder %s22, 1
      %p166 = por %p164, %p165
      %p167 = scmp.ne.s32.totalorder %s158, %s159
      %p168 = scmp.eq.s32.totalorder %s22, 0
      %p169 = por %p167, %p168
      %p170 = scmp.ne.s32.totalorder %s158, %s159
      %p171 = scmp.eq.s32.totalorder %s23, 1
      %p172 = por %p170, %p171
      %p174 = scmp.ne.s32.totalorder %s159, %s173
      %p175 = scmp.eq.s32.totalorder %s23, 0
      %p176 = por %p174, %p175
      %s178 = sadd.s32 %s177, 1
      %p181 = scmp.eq.s32.totalorder %s17, 1
      %p182 = scmp.ne.s32.totalorder %s177, %s179
      %p183 = scmp.eq.s32.totalorder %s17, 0
      %p184 = por %p182, %p183
      %p185 = scmp.ne.s32.totalorder %s177, %s179
      %p186 = scmp.eq.s32.totalorder %s22, 1
      %p187 = por %p185, %p186
      %p188 = scmp.ne.s32.totalorder %s179, %s180
      %p189 = scmp.eq.s32.totalorder %s22, 0
      %p190 = por %p188, %p189
      %p191 = scmp.ne.s32.totalorder %s179, %s180
      %p192 = scmp.eq.s32.totalorder %s23, 1
      %p193 = por %p191, %p192
      %p195 = scmp.ne.s32.totalorder %s180, %s194
      %p196 = scmp.eq.s32.totalorder %s23, 0
      %p197 = por %p195, %p196
      %s198 = ssub.s32 %s17, %s24
      %p199 = scmp.eq.s32.totalorder %s198, 0
      %s201 = sadd.s32 %s200, 1
      %s202 = scalar_select %p199, %s200, %s201
      %p205 = pneg %p199
      %p206 = scmp.eq.s32.totalorder %s17, 1
      %p207 = por %p205, %p206
      %p208 = scmp.ne.s32.totalorder %s200, %s203
      %p209 = scmp.eq.s32.totalorder %s17, 0
      %p210 = por %p208, %p209
      %p211 = scmp.ne.s32.totalorder %s200, %s203
      %p212 = scmp.eq.s32.totalorder %s22, 1
      %p213 = por %p211, %p212
      %p214 = scmp.ne.s32.totalorder %s203, %s204
      %p215 = scmp.eq.s32.totalorder %s22, 0
      %p216 = por %p214, %p215
      %p217 = scmp.ne.s32.totalorder %s203, %s204
      %p218 = scmp.eq.s32.totalorder %s23, 1
      %p219 = por %p217, %p218
      %p221 = scmp.ne.s32.totalorder %s204, %s220
      %p222 = scmp.eq.s32.totalorder %s23, 0
      %p223 = por %p221, %p222
      %p224 = scmp.le.s32.totalorder 1, %s17
      %p225 = scmp.lt.s32.totalorder %s17, 3
      %p226 = pnand %p224, %p225
      %p227 = pneg %p226
      // Predicated region
      $region9: #{tpu_custom_call.1} parent=5 // pred_check
        _
      $region10: #{tpu_custom_call.1} parent=5 // pred_check_branch
        %229 = sbr.rel (%p226) target = $region12
      $region11: #{tpu_custom_call.1} parent=5 // pred_region
        %s230 = ssub.s32 %s17, 1
        // Predicated region
        $region13: #{tpu_custom_call.1} parent=11 // pred_check
          %p231 = pneg %p64
        $region14: #{tpu_custom_call.1} parent=11 // pred_check_branch
          %233 = sbr.rel (%p231) target = $region16
        $region15: #{tpu_custom_call.1} parent=11 // pred_region
          _
        $region16: #{tpu_custom_call.1} parent=11 // pred_fallthru
          _
        // Predicated region
        $region17: #{tpu_custom_call.1} parent=11 // pred_check
          %p234 = pneg %p85
        $region18: #{tpu_custom_call.1} parent=11 // pred_check_branch
          %236 = sbr.rel (%p234) target = $region20
        $region19: #{tpu_custom_call.1} parent=11 // pred_region
          _
        $region20: #{tpu_custom_call.1} parent=11 // pred_fallthru
          _
        // Predicated region
        $region21: #{tpu_custom_call.1} parent=11 // pred_check
          %p237 = pneg %p106
        $region22: #{tpu_custom_call.1} parent=11 // pred_check_branch
          %239 = sbr.rel (%p237) target = $region24
        $region23: #{tpu_custom_call.1} parent=11 // pred_region
          _
        $region24: #{tpu_custom_call.1} parent=11 // pred_fallthru
          _
        // Predicated region
        $region25: #{tpu_custom_call.1} parent=11 // pred_check
          %p240 = pneg %p127
        $region26: #{tpu_custom_call.1} parent=11 // pred_check_branch
          %242 = sbr.rel (%p240) target = $region28
        $region27: #{tpu_custom_call.1} parent=11 // pred_region
          _
        $region28: #{tpu_custom_call.1} parent=11 // pred_fallthru
          _
        // Predicated region
        $region29: #{tpu_custom_call.1} parent=11 // pred_check
          %p243 = pneg %p148
        $region30: #{tpu_custom_call.1} parent=11 // pred_check_branch
          %245 = sbr.rel (%p243) target = $region32
        $region31: #{tpu_custom_call.1} parent=11 // pred_region
          _
        $region32: #{tpu_custom_call.1} parent=11 // pred_fallthru
          _
        // Predicated region
        $region33: #{tpu_custom_call.1} parent=11 // pred_check
          %p246 = pneg %p169
        $region34: #{tpu_custom_call.1} parent=11 // pred_check_branch
          %248 = sbr.rel (%p246) target = $region36
        $region35: #{tpu_custom_call.1} parent=11 // pred_region
          _
        $region36: #{tpu_custom_call.1} parent=11 // pred_fallthru
          _
        // Predicated region
        $region37: #{tpu_custom_call.1} parent=11 // pred_check
          %p249 = pneg %p190
        $region38: #{tpu_custom_call.1} parent=11 // pred_check_branch
          %251 = sbr.rel (%p249) target = $region40
        $region39: #{tpu_custom_call.1} parent=11 // pred_region
          _
        $region40: #{tpu_custom_call.1} parent=11 // pred_fallthru
          _
      $region12: #{tpu_custom_call.1} parent=5 // pred_fallthru
        _
      %p252 = scmp.lt.s32.totalorder %s17, 2
      // Predicated region
      $region41: #{tpu_custom_call.1} parent=5 // pred_check
        %p253 = pneg %p252
      $region42: #{tpu_custom_call.1} parent=5 // pred_check_branch
        %255 = sbr.rel (%p253) target = $region44
      $region43: #{tpu_custom_call.1} parent=5 // pred_region
        // Predicated region
        $region45: #{tpu_custom_call.1} parent=43 // pred_check
          %p256 = pneg %p37
        $region46: #{tpu_custom_call.1} parent=43 // pred_check_branch
          %258 = sbr.rel (%p256) target = $region48
        $region47: #{tpu_custom_call.1} parent=43 // pred_region
          %p259 = scmp.lt.s32.totalorder %s17, 1
          %s260 = scalar_select %p259, %s17, 1
          %s261 = smul.addr %s260, 2
          %s262 = smul.addr %s261, 8
          %s263 = scalar_lea.vmem %s0, %s262
        $region48: #{tpu_custom_call.1} parent=43 // pred_fallthru
          _
      $region44: #{tpu_custom_call.1} parent=5 // pred_fallthru
        _
      %p264 = scmp.le.s32.totalorder 1, %s17
      %p265 = scmp.lt.s32.totalorder %s17, 3
      %p266 = pnand %p264, %p265
      %p267 = pneg %p266
      // Predicated region
      $region49: #{tpu_custom_call.1} parent=5 // pred_check
        _
      $region50: #{tpu_custom_call.1} parent=5 // pred_check_branch
        %269 = sbr.rel (%p266) target = $region52
      $region51: #{tpu_custom_call.1} parent=5 // pred_region
        %s270 = ssub.s32 %s17, 1
        %p271 = scmp.lt.s32.totalorder %s22, 1
        %s272 = scalar_select %p271, %s22, 1
        %s273 = smul.addr %s272, 2
        %s274 = smul.addr %s273, 8
        %s275 = scalar_lea.vmem %s0, %s274
        %p276 = pneg %p43
        %p277 = pneg %p40
        %p278 = pneg %p64
        %p279 = pneg %p61
        %p280 = pneg %p85
        %p281 = pneg %p82
        %p282 = pneg %p106
        %p283 = pneg %p103
        %p284 = pneg %p127
        %p285 = pneg %p124
        %p286 = pneg %p148
        %p287 = pneg %p145
        %p288 = pneg %p169
        %p289 = pneg %p166
        %p290 = pneg %p190
        %p291 = pneg %p187
        %p292 = pneg %p216
        %p293 = pneg %p213
        %s294 = sand.u32 %s203, 1
        %s295 = scalar_lea.sflag [#allocation3], %s294
        %s296 = sand.u32 %s203, 1
        %s297 = smul.addr %s296, 64
        %s298 = scalar_lea.vmem [#allocation2], %s297
        %p299 = scmp.lt.s32.totalorder %s22, 1
        %s300 = scalar_select %p299, %s22, 1
        %s301 = smul.addr %s300, 2
        %s302 = smul.addr %s301, 8
        %s303 = scalar_lea.vmem %s0, %s302
        %v304 = vld [vmem:[%s303] sm:$0xff]
        %v305 = vld [vmem:[%s303 + $0x8] sm:$0xff]
        %v306 = vld [vmem:[%s3] sm:$0xff]
        %v307 = vld [vmem:[%s3 + $0x8] sm:$0xff]
        %v308 = vld [vmem:[%s3 + $0x10] sm:$0xff]
        %v309 = vld [vmem:[%s3 + $0x18] sm:$0xff]
        %311 = vset.pattern.permute.xlu0 0
        %312 = vperm.xlu0 %311, %v306
        %v313 = vpop.permute.xlu0 %312
        %316 = vset.pattern.permute.xlu0 0
        %317 = vperm.xlu0 %316, %v307
        %v318 = vpop.permute.xlu0 %317
        %321 = vset.pattern.permute.xlu0 0
        %322 = vperm.xlu0 %321, %v308
        %v323 = vpop.permute.xlu0 %322
        %326 = vset.pattern.permute.xlu0 0
        %327 = vperm.xlu0 %326, %v309
        %v328 = vpop.permute.xlu0 %327
        %330 = vrot.lane.b32.xlu0 %v304, 17
        %v331 = vpop.permute.xlu0 %330
        %332 = vrot.lane.b32.xlu0 %v305, 17
        %v333 = vpop.permute.xlu0 %332
        %v334 = vlaneseq
        %v335 = vand.u32 %v334, 127
        %vm336 = vcmp.lt.s32.totalorder %v335, 17
        %v337 = vsel %vm336, %v331, %v333
        %v338 = vsel %vm336, %v333, %v331
        %v339 = vld [vmem:[%s1] sm:$0x3]
        %v341 = vlaneseq
        %v342 = vshrl.u32 %v341, 7
        %v343 = vsub.s32 0, %v342
        %v344 = vrot.slane %v339, %v343
        %v345 = vlaneseq
        %v346 = vshrl.u32 %v345, 7
        %v347 = vsub.s32 1, %v346
        %v348 = vrot.slane %v339, %v347
        %v351 = vmul.f32 %v338, %v344
        %v352 = vmul.f32 %v337, %v348
        %v353 = vld [vmem:[%s2] sm:$0xff]
        %v354 = vld [vmem:[%s2 + $0x8] sm:$0xff]
        %v355 = vld [vmem:[%s2 + $0x10] sm:$0xff]
        %v356 = vld [vmem:[%s2 + $0x18] sm:$0xff]
        %vm357 = vcmask 64512
        %v359 = vsel %vm357, %v353, 0
        %v362 = vsel %vm357, %v354, 0
        %v365 = vsel %vm357, %v355, 0
        %v368 = vsel %vm357, %v356, 0
        %370 = vmatprep.subr.mxu0 %v352
        %371 = vmatpush1.msra.mxu0 %v351
        %372 = vmatprep.subr.mxu0 0.0
        %373 = vmatpush1.msra.mxu0 0.0
        %374 = vmatprep.subr.mxu0 0.0
        %375 = vmatpush1.msra.mxu0 0.0
        %376 = vmatprep.subr.mxu0 0.0
        %377 = vmatpush1.msra.mxu0 0.0
        %378 = vmatprep.subr.mxu0 0.0
        %379 = vmatpush1.msra.mxu0 0.0
        %380 = vmatprep.subr.mxu0 0.0
        %381 = vmatpush1.msra.mxu0 0.0
        %382 = vmatprep.subr.mxu0 0.0
        %383 = vmatpush1.msra.mxu0 0.0
        %384 = vmatprep.subr.mxu0 0.0
        %385 = vmatpush1.msra.mxu0 0.0
        %386 = vmatprep.subr.mxu0 0.0
        %387 = vmatpush1.msra.mxu0 0.0
        %388 = vmatprep.subr.mxu0 0.0
        %389 = vmatpush1.msra.mxu0 0.0
        %390 = vmatprep.subr.mxu0 0.0
        %391 = vmatpush1.msra.mxu0 0.0
        %392 = vmatprep.subr.mxu0 0.0
        %393 = vmatpush1.msra.mxu0 0.0
        %394 = vmatprep.subr.mxu0 0.0
        %395 = vmatpush1.msra.mxu0 0.0
        %396 = vmatprep.subr.mxu0 0.0
        %397 = vmatpush1.msra.mxu0 0.0
        %398 = vmatprep.subr.mxu0 0.0
        %399 = vmatpush1.msra.mxu0 0.0
        %400 = vmatprep.subr.mxu0 0.0
        %401 = vmatpush1.msra.mxu0 0.0
        %402 = vmatprep.subr.mxu0 0.0
        %403 = vmatpush1.msra.mxu0 0.0
        %404 = vmatprep.subr.mxu0 0.0
        %405 = vmatpush1.msra.mxu0 0.0
        %406 = vmatprep.subr.mxu0 0.0
        %407 = vmatpush1.msra.mxu0 0.0
        %408 = vmatprep.subr.mxu0 0.0
        %409 = vmatpush1.msra.mxu0 0.0
        %410 = vmatprep.subr.mxu0 0.0
        %411 = vmatpush1.msra.mxu0 0.0
        %412 = vmatprep.subr.mxu0 0.0
        %413 = vmatpush1.msra.mxu0 0.0
        %414 = vmatprep.subr.mxu0 0.0
        %415 = vmatpush1.msra.mxu0 0.0
        %416 = vmatprep.subr.mxu0 0.0
        %417 = vmatpush1.msra.mxu0 0.0
        %418 = vmatprep.subr.mxu0 0.0
        %419 = vmatpush1.msra.mxu0 0.0
        %420 = vmatprep.subr.mxu0 0.0
        %421 = vmatpush1.msra.mxu0 0.0
        %422 = vmatprep.subr.mxu0 0.0
        %423 = vmatpush1.msra.mxu0 0.0
        %424 = vmatprep.subr.mxu0 0.0
        %425 = vmatpush1.msra.mxu0 0.0
        %426 = vmatprep.subr.mxu0 0.0
        %427 = vmatpush1.msra.mxu0 0.0
        %428 = vmatprep.subr.mxu0 0.0
        %429 = vmatpush1.msra.mxu0 0.0
        %430 = vmatprep.subr.mxu0 0.0
        %431 = vmatpush1.msra.mxu0 0.0
        %432 = vmatprep.subr.mxu0 0.0
        %433 = vmatpush1.msra.mxu0 0.0
        %434 = vmatprep.mubr.f32.mxu0 0.0
        %435 = vmatmul.mubr.f32.gmra.mrb[0].mxu0 %v359
        %v436 = vpop.f32.mrb[0].mxu0
        %v437 = vadd.f32 0.0, %v436
        %v438 = vpop.f32.mrb[0].mxu0
        %v439 = vadd.f32 0.0, %v438
        %440 = vmatprep.mubr.f32.mxu0 0.0
        %441 = vmatmul.mubr.f32.gmra.mrb[0].mxu0 %v362
        %v442 = vpop.f32.mrb[0].mxu0
        %v443 = vadd.f32 0.0, %v442
        %v444 = vpop.f32.mrb[0].mxu0
        %v445 = vadd.f32 0.0, %v444
        %446 = vmatprep.mubr.f32.mxu0 0.0
        %447 = vmatmul.mubr.f32.gmra.mrb[0].mxu0 %v365
        %v448 = vpop.f32.mrb[0].mxu0
        %v449 = vadd.f32 0.0, %v448
        %v450 = vpop.f32.mrb[0].mxu0
        %v451 = vadd.f32 0.0, %v450
        %452 = vmatprep.mubr.f32.mxu0 0.0
        %453 = vmatmul.mubr.f32.gmra.mrb[0].mxu0 %v368
        %v454 = vpop.f32.mrb[0].mxu0
        %v455 = vadd.f32 0.0, %v454
        %v456 = vpop.f32.mrb[0].mxu0
        %v457 = vadd.f32 0.0, %v456
        %458 = vdwg.mxu0
        %v459 = vadd.f32 %v313, %v437
        %v460 = vadd.f32 %v313, %v439
        %v461 = vadd.f32 %v318, %v443
        %v462 = vadd.f32 %v318, %v445
        %v463 = vadd.f32 %v323, %v449
        %v464 = vadd.f32 %v323, %v451
        %v465 = vadd.f32 %v328, %v455
        %v466 = vadd.f32 %v328, %v457
        %467 = vrot.lane.b32.xlu0 %v304, 16
        %v468 = vpop.permute.xlu0 %467
        %469 = vrot.lane.b32.xlu0 %v305, 16
        %v470 = vpop.permute.xlu0 %469
        %vm471 = vcmp.lt.s32.totalorder %v335, 16
        %v472 = vsel %vm471, %v468, %v470
        %v473 = vsel %vm471, %v470, %v468
        %s474 = scalar_lea.vmem %s1, 2
        %v475 = vld [vmem:[%s474] sm:$0x3]
        %v477 = vlaneseq
        %v478 = vshrl.u32 %v477, 7
        %v479 = vsub.s32 0, %v478
        %v480 = vrot.slane %v475, %v479
        %v481 = vlaneseq
        %v482 = vshrl.u32 %v481, 7
        %v483 = vsub.s32 1, %v482
        %v484 = vrot.slane %v475, %v483
        %v487 = vmul.f32 %v473, %v480
        %v488 = vmul.f32 %v472, %v484
        %s489 = scalar_lea.vmem %s2, 32
        %v490 = vld [vmem:[%s489] sm:$0xff]
        %v491 = vld [vmem:[%s489 + $0x8] sm:$0xff]
        %v492 = vld [vmem:[%s489 + $0x10] sm:$0xff]
        %v493 = vld [vmem:[%s489 + $0x18] sm:$0xff]
        %v495 = vsel %vm357, %v490, 0
        %v498 = vsel %vm357, %v491, 0
        %v501 = vsel %vm357, %v492, 0
        %v504 = vsel %vm357, %v493, 0
        %506 = vmatprep.subr.mxu0 %v488
        %507 = vmatpush1.msra.mxu0 %v487
        %508 = vmatprep.subr.mxu0 0.0
        %509 = vmatpush1.msra.mxu0 0.0
        %510 = vmatprep.subr.mxu0 0.0
        %511 = vmatpush1.msra.mxu0 0.0
        %512 = vmatprep.subr.mxu0 0.0
        %513 = vmatpush1.msra.mxu0 0.0
        %514 = vmatprep.subr.mxu0 0.0
        %515 = vmatpush1.msra.mxu0 0.0
        %516 = vmatprep.subr.mxu0 0.0
        %517 = vmatpush1.msra.mxu0 0.0
        %518 = vmatprep.subr.mxu0 0.0
        %519 = vmatpush1.msra.mxu0 0.0
        %520 = vmatprep.subr.mxu0 0.0
        %521 = vmatpush1.msra.mxu0 0.0
        %522 = vmatprep.subr.mxu0 0.0
        %523 = vmatpush1.msra.mxu0 0.0
        %524 = vmatprep.subr.mxu0 0.0
        %525 = vmatpush1.msra.mxu0 0.0
        %526 = vmatprep.subr.mxu0 0.0
        %527 = vmatpush1.msra.mxu0 0.0
        %528 = vmatprep.subr.mxu0 0.0
        %529 = vmatpush1.msra.mxu0 0.0
        %530 = vmatprep.subr.mxu0 0.0
        %531 = vmatpush1.msra.mxu0 0.0
        %532 = vmatprep.subr.mxu0 0.0
        %533 = vmatpush1.msra.mxu0 0.0
        %534 = vmatprep.subr.mxu0 0.0
        %535 = vmatpush1.msra.mxu0 0.0
        %536 = vmatprep.subr.mxu0 0.0
        %537 = vmatpush1.msra.mxu0 0.0
        %538 = vmatprep.subr.mxu0 0.0
        %539 = vmatpush1.msra.mxu0 0.0
        %540 = vmatprep.subr.mxu0 0.0
        %541 = vmatpush1.msra.mxu0 0.0
        %542 = vmatprep.subr.mxu0 0.0
        %543 = vmatpush1.msra.mxu0 0.0
        %544 = vmatprep.subr.mxu0 0.0
        %545 = vmatpush1.msra.mxu0 0.0
        %546 = vmatprep.subr.mxu0 0.0
        %547 = vmatpush1.msra.mxu0 0.0
        %548 = vmatprep.subr.mxu0 0.0
        %549 = vmatpush1.msra.mxu0 0.0
        %550 = vmatprep.subr.mxu0 0.0
        %551 = vmatpush1.msra.mxu0 0.0
        %552 = vmatprep.subr.mxu0 0.0
        %553 = vmatpush1.msra.mxu0 0.0
        %554 = vmatprep.subr.mxu0 0.0
        %555 = vmatpush1.msra.mxu0 0.0
        %556 = vmatprep.subr.mxu0 0.0
        %557 = vmatpush1.msra.mxu0 0.0
        %558 = vmatprep.subr.mxu0 0.0
        %559 = vmatpush1.msra.mxu0 0.0
        %560 = vmatprep.subr.mxu0 0.0
        %561 = vmatpush1.msra.mxu0 0.0
        %562 = vmatprep.subr.mxu0 0.0
        %563 = vmatpush1.msra.mxu0 0.0
        %564 = vmatprep.subr.mxu0 0.0
        %565 = vmatpush1.msra.mxu0 0.0
        %566 = vmatprep.subr.mxu0 0.0
        %567 = vmatpush1.msra.mxu0 0.0
        %568 = vmatprep.subr.mxu0 0.0
        %569 = vmatpush1.msra.mxu0 0.0
        %570 = vmatprep.mubr.f32.mxu0 0.0
        %571 = vmatmul.mubr.f32.gmra.mrb[0].mxu0 %v495
        %v572 = vpop.f32.mrb[0].mxu0
        %v573 = vadd.f32 0.0, %v572
        %v574 = vpop.f32.mrb[0].mxu0
        %v575 = vadd.f32 0.0, %v574
        %576 = vmatprep.mubr.f32.mxu0 0.0
        %577 = vmatmul.mubr.f32.gmra.mrb[0].mxu0 %v498
        %v578 = vpop.f32.mrb[0].mxu0
        %v579 = vadd.f32 0.0, %v578
        %v580 = vpop.f32.mrb[0].mxu0
        %v581 = vadd.f32 0.0, %v580
        %582 = vmatprep.mubr.f32.mxu0 0.0
        %583 = vmatmul.mubr.f32.gmra.mrb[0].mxu0 %v501
        %v584 = vpop.f32.mrb[0].mxu0
        %v585 = vadd.f32 0.0, %v584
        %v586 = vpop.f32.mrb[0].mxu0
        %v587 = vadd.f32 0.0, %v586
        %588 = vmatprep.mubr.f32.mxu0 0.0
        %589 = vmatmul.mubr.f32.gmra.mrb[0].mxu0 %v504
        %v590 = vpop.f32.mrb[0].mxu0
        %v591 = vadd.f32 0.0, %v590
        %v592 = vpop.f32.mrb[0].mxu0
        %v593 = vadd.f32 0.0, %v592
        %594 = vdwg.mxu0
        %v595 = vadd.f32 %v459, %v573
        %v596 = vadd.f32 %v460, %v575
        %v597 = vadd.f32 %v461, %v579
        %v598 = vadd.f32 %v462, %v581
        %v599 = vadd.f32 %v463, %v585
        %v600 = vadd.f32 %v464, %v587
        %v601 = vadd.f32 %v465, %v591
        %v602 = vadd.f32 %v466, %v593
        %603 = vrot.lane.b32.xlu0 %v304, 15
        %v604 = vpop.permute.xlu0 %603
        %605 = vrot.lane.b32.xlu0 %v305, 15
        %v606 = vpop.permute.xlu0 %605
        %vm607 = vcmp.lt.s32.totalorder %v335, 15
        %v608 = vsel %vm607, %v604, %v606
        %v609 = vsel %vm607, %v606, %v604
        %s610 = scalar_lea.vmem %s1, 4
        %v611 = vld [vmem:[%s610] sm:$0x3]
        %v613 = vlaneseq
        %v614 = vshrl.u32 %v613, 7
        %v615 = vsub.s32 0, %v614
        %v616 = vrot.slane %v611, %v615
        %v617 = vlaneseq
        %v618 = vshrl.u32 %v617, 7
        %v619 = vsub.s32 1, %v618
        %v620 = vrot.slane %v611, %v619
        %v623 = vmul.f32 %v609, %v616
        %v624 = vmul.f32 %v608, %v620
        %s625 = scalar_lea.vmem %s2, 64
        %v626 = vld [vmem:[%s625] sm:$0xff]
        %v627 = vld [vmem:[%s625 + $0x8] sm:$0xff]
        %v628 = vld [vmem:[%s625 + $0x10] sm:$0xff]
        %v629 = vld [vmem:[%s625 + $0x18] sm:$0xff]
        %v631 = vsel %vm357, %v626, 0
        %v634 = vsel %vm357, %v627, 0
        %v637 = vsel %vm357, %v628, 0
        %v640 = vsel %vm357, %v629, 0
        %642 = vmatprep.subr.mxu0 %v624
        %643 = vmatpush1.msra.mxu0 %v623
        %644 = vmatprep.subr.mxu0 0.0
        %645 = vmatpush1.msra.mxu0 0.0
        %646 = vmatprep.subr.mxu0 0.0
        %647 = vmatpush1.msra.mxu0 0.0
        %648 = vmatprep.subr.mxu0 0.0
        %649 = vmatpush1.msra.mxu0 0.0
        %650 = vmatprep.subr.mxu0 0.0
        %651 = vmatpush1.msra.mxu0 0.0
        %652 = vmatprep.subr.mxu0 0.0
        %653 = vmatpush1.msra.mxu0 0.0
        %654 = vmatprep.subr.mxu0 0.0
        %655 = vmatpush1.msra.mxu0 0.0
        %656 = vmatprep.subr.mxu0 0.0
        %657 = vmatpush1.msra.mxu0 0.0
        %658 = vmatprep.subr.mxu0 0.0
        %659 = vmatpush1.msra.mxu0 0.0
        %660 = vmatprep.subr.mxu0 0.0
        %661 = vmatpush1.msra.mxu0 0.0
        %662 = vmatprep.subr.mxu0 0.0
        %663 = vmatpush1.msra.mxu0 0.0
        %664 = vmatprep.subr.mxu0 0.0
        %665 = vmatpush1.msra.mxu0 0.0
        %666 = vmatprep.subr.mxu0 0.0
        %667 = vmatpush1.msra.mxu0 0.0
        %668 = vmatprep.subr.mxu0 0.0
        %669 = vmatpush1.msra.mxu0 0.0
        %670 = vmatprep.subr.mxu0 0.0
        %671 = vmatpush1.msra.mxu0 0.0
        %672 = vmatprep.subr.mxu0 0.0
        %673 = vmatpush1.msra.mxu0 0.0
        %674 = vmatprep.subr.mxu0 0.0
        %675 = vmatpush1.msra.mxu0 0.0
        %676 = vmatprep.subr.mxu0 0.0
        %677 = vmatpush1.msra.mxu0 0.0
        %678 = vmatprep.subr.mxu0 0.0
        %679 = vmatpush1.msra.mxu0 0.0
        %680 = vmatprep.subr.mxu0 0.0
        %681 = vmatpush1.msra.mxu0 0.0
        %682 = vmatprep.subr.mxu0 0.0
        %683 = vmatpush1.msra.mxu0 0.0
        %684 = vmatprep.subr.mxu0 0.0
        %685 = vmatpush1.msra.mxu0 0.0
        %686 = vmatprep.subr.mxu0 0.0
        %687 = vmatpush1.msra.mxu0 0.0
        %688 = vmatprep.subr.mxu0 0.0
        %689 = vmatpush1.msra.mxu0 0.0
        %690 = vmatprep.subr.mxu0 0.0
        %691 = vmatpush1.msra.mxu0 0.0
        %692 = vmatprep.subr.mxu0 0.0
        %693 = vmatpush1.msra.mxu0 0.0
        %694 = vmatprep.subr.mxu0 0.0
        %695 = vmatpush1.msra.mxu0 0.0
        %696 = vmatprep.subr.mxu0 0.0
        %697 = vmatpush1.msra.mxu0 0.0
        %698 = vmatprep.subr.mxu0 0.0
        %699 = vmatpush1.msra.mxu0 0.0
        %700 = vmatprep.subr.mxu0 0.0
        %701 = vmatpush1.msra.mxu0 0.0
        %702 = vmatprep.subr.mxu0 0.0
        %703 = vmatpush1.msra.mxu0 0.0
        %704 = vmatprep.subr.mxu0 0.0
        %705 = vmatpush1.msra.mxu0 0.0
        %706 = vmatprep.mubr.f32.mxu0 0.0
        %707 = vmatmul.mubr.f32.gmra.mrb[0].mxu0 %v631
        %v708 = vpop.f32.mrb[0].mxu0
        %v709 = vadd.f32 0.0, %v708
        %v710 = vpop.f32.mrb[0].mxu0
        %v711 = vadd.f32 0.0, %v710
        %712 = vmatprep.mubr.f32.mxu0 0.0
        %713 = vmatmul.mubr.f32.gmra.mrb[0].mxu0 %v634
        %v714 = vpop.f32.mrb[0].mxu0
        %v715 = vadd.f32 0.0, %v714
        %v716 = vpop.f32.mrb[0].mxu0
        %v717 = vadd.f32 0.0, %v716
        %718 = vmatprep.mubr.f32.mxu0 0.0
        %719 = vmatmul.mubr.f32.gmra.mrb[0].mxu0 %v637
        %v720 = vpop.f32.mrb[0].mxu0
        %v721 = vadd.f32 0.0, %v720
        %v722 = vpop.f32.mrb[0].mxu0
        %v723 = vadd.f32 0.0, %v722
        %724 = vmatprep.mubr.f32.mxu0 0.0
        %725 = vmatmul.mubr.f32.gmra.mrb[0].mxu0 %v640
        %v726 = vpop.f32.mrb[0].mxu0
        %v727 = vadd.f32 0.0, %v726
        %v728 = vpop.f32.mrb[0].mxu0
        %v729 = vadd.f32 0.0, %v728
        %730 = vdwg.mxu0
        %v731 = vadd.f32 %v595, %v709
        %v732 = vadd.f32 %v596, %v711
        %v733 = vadd.f32 %v597, %v715
        %v734 = vadd.f32 %v598, %v717
        %v735 = vadd.f32 %v599, %v721
        %v736 = vadd.f32 %v600, %v723
        %v737 = vadd.f32 %v601, %v727
        %v738 = vadd.f32 %v602, %v729
        %739 = vrot.lane.b32.xlu0 %v304, 1
        %v740 = vpop.permute.xlu0 %739
        %741 = vrot.lane.b32.xlu0 %v305, 1
        %v742 = vpop.permute.xlu0 %741
        %vm743 = vcmp.lt.s32.totalorder %v335, 1
        %v744 = vsel %vm743, %v740, %v742
        %v745 = vsel %vm743, %v742, %v740
        %s746 = scalar_lea.vmem %s1, 6
        %v747 = vld [vmem:[%s746] sm:$0x3]
        %v749 = vlaneseq
        %v750 = vshrl.u32 %v749, 7
        %v751 = vsub.s32 0, %v750
        %v752 = vrot.slane %v747, %v751
        %v753 = vlaneseq
        %v754 = vshrl.u32 %v753, 7
        %v755 = vsub.s32 1, %v754
        %v756 = vrot.slane %v747, %v755
        %v759 = vmul.f32 %v745, %v752
        %v760 = vmul.f32 %v744, %v756
        %s761 = scalar_lea.vmem %s2, 96
        %v762 = vld [vmem:[%s761] sm:$0xff]
        %v763 = vld [vmem:[%s761 + $0x8] sm:$0xff]
        %v764 = vld [vmem:[%s761 + $0x10] sm:$0xff]
        %v765 = vld [vmem:[%s761 + $0x18] sm:$0xff]
        %v767 = vsel %vm357, %v762, 0
        %v770 = vsel %vm357, %v763, 0
        %v773 = vsel %vm357, %v764, 0
        %v776 = vsel %vm357, %v765, 0
        %778 = vmatprep.subr.mxu0 %v760
        %779 = vmatpush1.msra.mxu0 %v759
        %780 = vmatprep.subr.mxu0 0.0
        %781 = vmatpush1.msra.mxu0 0.0
        %782 = vmatprep.subr.mxu0 0.0
        %783 = vmatpush1.msra.mxu0 0.0
        %784 = vmatprep.subr.mxu0 0.0
        %785 = vmatpush1.msra.mxu0 0.0
        %786 = vmatprep.subr.mxu0 0.0
        %787 = vmatpush1.msra.mxu0 0.0
        %788 = vmatprep.subr.mxu0 0.0
        %789 = vmatpush1.msra.mxu0 0.0
        %790 = vmatprep.subr.mxu0 0.0
        %791 = vmatpush1.msra.mxu0 0.0
        %792 = vmatprep.subr.mxu0 0.0
        %793 = vmatpush1.msra.mxu0 0.0
        %794 = vmatprep.subr.mxu0 0.0
        %795 = vmatpush1.msra.mxu0 0.0
        %796 = vmatprep.subr.mxu0 0.0
        %797 = vmatpush1.msra.mxu0 0.0
        %798 = vmatprep.subr.mxu0 0.0
        %799 = vmatpush1.msra.mxu0 0.0
        %800 = vmatprep.subr.mxu0 0.0
        %801 = vmatpush1.msra.mxu0 0.0
        %802 = vmatprep.subr.mxu0 0.0
        %803 = vmatpush1.msra.mxu0 0.0
        %804 = vmatprep.subr.mxu0 0.0
        %805 = vmatpush1.msra.mxu0 0.0
        %806 = vmatprep.subr.mxu0 0.0
        %807 = vmatpush1.msra.mxu0 0.0
        %808 = vmatprep.subr.mxu0 0.0
        %809 = vmatpush1.msra.mxu0 0.0
        %810 = vmatprep.subr.mxu0 0.0
        %811 = vmatpush1.msra.mxu0 0.0
        %812 = vmatprep.subr.mxu0 0.0
        %813 = vmatpush1.msra.mxu0 0.0
        %814 = vmatprep.subr.mxu0 0.0
        %815 = vmatpush1.msra.mxu0 0.0
        %816 = vmatprep.subr.mxu0 0.0
        %817 = vmatpush1.msra.mxu0 0.0
        %818 = vmatprep.subr.mxu0 0.0
        %819 = vmatpush1.msra.mxu0 0.0
        %820 = vmatprep.subr.mxu0 0.0
        %821 = vmatpush1.msra.mxu0 0.0
        %822 = vmatprep.subr.mxu0 0.0
        %823 = vmatpush1.msra.mxu0 0.0
        %824 = vmatprep.subr.mxu0 0.0
        %825 = vmatpush1.msra.mxu0 0.0
        %826 = vmatprep.subr.mxu0 0.0
        %827 = vmatpush1.msra.mxu0 0.0
        %828 = vmatprep.subr.mxu0 0.0
        %829 = vmatpush1.msra.mxu0 0.0
        %830 = vmatprep.subr.mxu0 0.0
        %831 = vmatpush1.msra.mxu0 0.0
        %832 = vmatprep.subr.mxu0 0.0
        %833 = vmatpush1.msra.mxu0 0.0
        %834 = vmatprep.subr.mxu0 0.0
        %835 = vmatpush1.msra.mxu0 0.0
        %836 = vmatprep.subr.mxu0 0.0
        %837 = vmatpush1.msra.mxu0 0.0
        %838 = vmatprep.subr.mxu0 0.0
        %839 = vmatpush1.msra.mxu0 0.0
        %840 = vmatprep.subr.mxu0 0.0
        %841 = vmatpush1.msra.mxu0 0.0
        %842 = vmatprep.mubr.f32.mxu0 0.0
        %843 = vmatmul.mubr.f32.gmra.mrb[0].mxu0 %v767
        %v844 = vpop.f32.mrb[0].mxu0
        %v845 = vadd.f32 0.0, %v844
        %v846 = vpop.f32.mrb[0].mxu0
        %v847 = vadd.f32 0.0, %v846
        %848 = vmatprep.mubr.f32.mxu0 0.0
        %849 = vmatmul.mubr.f32.gmra.mrb[0].mxu0 %v770
        %v850 = vpop.f32.mrb[0].mxu0
        %v851 = vadd.f32 0.0, %v850
        %v852 = vpop.f32.mrb[0].mxu0
        %v853 = vadd.f32 0.0, %v852
        %854 = vmatprep.mubr.f32.mxu0 0.0
        %855 = vmatmul.mubr.f32.gmra.mrb[0].mxu0 %v773
        %v856 = vpop.f32.mrb[0].mxu0
        %v857 = vadd.f32 0.0, %v856
        %v858 = vpop.f32.mrb[0].mxu0
        %v859 = vadd.f32 0.0, %v858
        %860 = vmatprep.mubr.f32.mxu0 0.0
        %861 = vmatmul.mubr.f32.gmra.mrb[0].mxu0 %v776
        %v862 = vpop.f32.mrb[0].mxu0
        %v863 = vadd.f32 0.0, %v862
        %v864 = vpop.f32.mrb[0].mxu0
        %v865 = vadd.f32 0.0, %v864
        %866 = vdwg.mxu0
        %v867 = vadd.f32 %v731, %v845
        %v868 = vadd.f32 %v732, %v847
        %v869 = vadd.f32 %v733, %v851
        %v870 = vadd.f32 %v734, %v853
        %v871 = vadd.f32 %v735, %v857
        %v872 = vadd.f32 %v736, %v859
        %v873 = vadd.f32 %v737, %v863
        %v874 = vadd.f32 %v738, %v865
        %s875 = scalar_lea.vmem %s2, 128
        %v876 = vld [vmem:[%s875] sm:$0xff]
        %v877 = vld [vmem:[%s875 + $0x8] sm:$0xff]
        %v878 = vld [vmem:[%s875 + $0x10] sm:$0xff]
        %v879 = vld [vmem:[%s875 + $0x18] sm:$0xff]
        %v881 = vsel %vm357, %v876, 0
        %v884 = vsel %vm357, %v877, 0
        %v887 = vsel %vm357, %v878, 0
        %v890 = vsel %vm357, %v879, 0
        %892 = vmatprep.subr.mxu0 %v305
        %893 = vmatpush1.msra.mxu0 %v304
        %894 = vmatprep.subr.mxu0 0.0
        %895 = vmatpush1.msra.mxu0 0.0
        %896 = vmatprep.subr.mxu0 0.0
        %897 = vmatpush1.msra.mxu0 0.0
        %898 = vmatprep.subr.mxu0 0.0
        %899 = vmatpush1.msra.mxu0 0.0
        %900 = vmatprep.subr.mxu0 0.0
        %901 = vmatpush1.msra.mxu0 0.0
        %902 = vmatprep.subr.mxu0 0.0
        %903 = vmatpush1.msra.mxu0 0.0
        %904 = vmatprep.subr.mxu0 0.0
        %905 = vmatpush1.msra.mxu0 0.0
        %906 = vmatprep.subr.mxu0 0.0
        %907 = vmatpush1.msra.mxu0 0.0
        %908 = vmatprep.subr.mxu0 0.0
        %909 = vmatpush1.msra.mxu0 0.0
        %910 = vmatprep.subr.mxu0 0.0
        %911 = vmatpush1.msra.mxu0 0.0
        %912 = vmatprep.subr.mxu0 0.0
        %913 = vmatpush1.msra.mxu0 0.0
        %914 = vmatprep.subr.mxu0 0.0
        %915 = vmatpush1.msra.mxu0 0.0
        %916 = vmatprep.subr.mxu0 0.0
        %917 = vmatpush1.msra.mxu0 0.0
        %918 = vmatprep.subr.mxu0 0.0
        %919 = vmatpush1.msra.mxu0 0.0
        %920 = vmatprep.subr.mxu0 0.0
        %921 = vmatpush1.msra.mxu0 0.0
        %922 = vmatprep.subr.mxu0 0.0
        %923 = vmatpush1.msra.mxu0 0.0
        %924 = vmatprep.subr.mxu0 0.0
        %925 = vmatpush1.msra.mxu0 0.0
        %926 = vmatprep.subr.mxu0 0.0
        %927 = vmatpush1.msra.mxu0 0.0
        %928 = vmatprep.subr.mxu0 0.0
        %929 = vmatpush1.msra.mxu0 0.0
        %930 = vmatprep.subr.mxu0 0.0
        %931 = vmatpush1.msra.mxu0 0.0
        %932 = vmatprep.subr.mxu0 0.0
        %933 = vmatpush1.msra.mxu0 0.0
        %934 = vmatprep.subr.mxu0 0.0
        %935 = vmatpush1.msra.mxu0 0.0
        %936 = vmatprep.subr.mxu0 0.0
        %937 = vmatpush1.msra.mxu0 0.0
        %938 = vmatprep.subr.mxu0 0.0
        %939 = vmatpush1.msra.mxu0 0.0
        %940 = vmatprep.subr.mxu0 0.0
        %941 = vmatpush1.msra.mxu0 0.0
        %942 = vmatprep.subr.mxu0 0.0
        %943 = vmatpush1.msra.mxu0 0.0
        %944 = vmatprep.subr.mxu0 0.0
        %945 = vmatpush1.msra.mxu0 0.0
        %946 = vmatprep.subr.mxu0 0.0
        %947 = vmatpush1.msra.mxu0 0.0
        %948 = vmatprep.subr.mxu0 0.0
        %949 = vmatpush1.msra.mxu0 0.0
        %950 = vmatprep.subr.mxu0 0.0
        %951 = vmatpush1.msra.mxu0 0.0
        %952 = vmatprep.subr.mxu0 0.0
        %953 = vmatpush1.msra.mxu0 0.0
        %954 = vmatprep.subr.mxu0 0.0
        %955 = vmatpush1.msra.mxu0 0.0
        %956 = vmatprep.mubr.f32.mxu0 0.0
        %957 = vmatmul.mubr.f32.gmra.mrb[0].mxu0 %v881
        %v958 = vpop.f32.mrb[0].mxu0
        %v959 = vadd.f32 0.0, %v958
        %v960 = vpop.f32.mrb[0].mxu0
        %v961 = vadd.f32 0.0, %v960
        %962 = vmatprep.mubr.f32.mxu0 0.0
        %963 = vmatmul.mubr.f32.gmra.mrb[0].mxu0 %v884
        %v964 = vpop.f32.mrb[0].mxu0
        %v965 = vadd.f32 0.0, %v964
        %v966 = vpop.f32.mrb[0].mxu0
        %v967 = vadd.f32 0.0, %v966
        %968 = vmatprep.mubr.f32.mxu0 0.0
        %969 = vmatmul.mubr.f32.gmra.mrb[0].mxu0 %v887
        %v970 = vpop.f32.mrb[0].mxu0
        %v971 = vadd.f32 0.0, %v970
        %v972 = vpop.f32.mrb[0].mxu0
        %v973 = vadd.f32 0.0, %v972
        %974 = vmatprep.mubr.f32.mxu0 0.0
        %975 = vmatmul.mubr.f32.gmra.mrb[0].mxu0 %v890
        %v976 = vpop.f32.mrb[0].mxu0
        %v977 = vadd.f32 0.0, %v976
        %v978 = vpop.f32.mrb[0].mxu0
        %v979 = vadd.f32 0.0, %v978
        %980 = vdwg.mxu0
        %v981 = vadd.f32 %v867, %v959
        %v982 = vadd.f32 %v868, %v961
        %v983 = vadd.f32 %v869, %v965
        %v984 = vadd.f32 %v870, %v967
        %v985 = vadd.f32 %v871, %v971
        %v986 = vadd.f32 %v872, %v973
        %v987 = vadd.f32 %v873, %v977
        %v988 = vadd.f32 %v874, %v979
        %989 = vrot.lane.b32.xlu0 %v304, 127
        %v990 = vpop.permute.xlu0 %989
        %991 = vrot.lane.b32.xlu0 %v305, 127
        %v992 = vpop.permute.xlu0 %991
        %vm993 = vcmp.lt.s32.totalorder %v335, 127
        %v994 = vsel %vm993, %v990, %v992
        %v995 = vsel %vm993, %v992, %v990
        %s996 = scalar_lea.vmem %s1, 10
        %v997 = vld [vmem:[%s996] sm:$0x3]
        %v999 = vlaneseq
        %v1000 = vshrl.u32 %v999, 7
        %v1001 = vsub.s32 0, %v1000
        %v1002 = vrot.slane %v997, %v1001
        %v1003 = vlaneseq
        %v1004 = vshrl.u32 %v1003, 7
        %v1005 = vsub.s32 1, %v1004
        %v1006 = vrot.slane %v997, %v1005
        %v1009 = vmul.f32 %v994, %v1002
        %v1010 = vmul.f32 %v995, %v1006
        %s1011 = scalar_lea.vmem %s2, 160
        %v1012 = vld [vmem:[%s1011] sm:$0xff]
        %v1013 = vld [vmem:[%s1011 + $0x8] sm:$0xff]
        %v1014 = vld [vmem:[%s1011 + $0x10] sm:$0xff]
        %v1015 = vld [vmem:[%s1011 + $0x18] sm:$0xff]
        %v1017 = vsel %vm357, %v1012, 0
        %v1020 = vsel %vm357, %v1013, 0
        %v1023 = vsel %vm357, %v1014, 0
        %v1026 = vsel %vm357, %v1015, 0
        %1028 = vmatprep.subr.mxu0 %v1010
        %1029 = vmatpush1.msra.mxu0 %v1009
        %1030 = vmatprep.subr.mxu0 0.0
        %1031 = vmatpush1.msra.mxu0 0.0
        %1032 = vmatprep.subr.mxu0 0.0
        %1033 = vmatpush1.msra.mxu0 0.0
        %1034 = vmatprep.subr.mxu0 0.0
        %1035 = vmatpush1.msra.mxu0 0.0
        %1036 = vmatprep.subr.mxu0 0.0
        %1037 = vmatpush1.msra.mxu0 0.0
        %1038 = vmatprep.subr.mxu0 0.0
        %1039 = vmatpush1.msra.mxu0 0.0
        %1040 = vmatprep.subr.mxu0 0.0
        %1041 = vmatpush1.msra.mxu0 0.0
        %1042 = vmatprep.subr.mxu0 0.0
        %1043 = vmatpush1.msra.mxu0 0.0
        %1044 = vmatprep.subr.mxu0 0.0
        %1045 = vmatpush1.msra.mxu0 0.0
        %1046 = vmatprep.subr.mxu0 0.0
        %1047 = vmatpush1.msra.mxu0 0.0
        %1048 = vmatprep.subr.mxu0 0.0
        %1049 = vmatpush1.msra.mxu0 0.0
        %1050 = vmatprep.subr.mxu0 0.0
        %1051 = vmatpush1.msra.mxu0 0.0
        %1052 = vmatprep.subr.mxu0 0.0
        %1053 = vmatpush1.msra.mxu0 0.0
        %1054 = vmatprep.subr.mxu0 0.0
        %1055 = vmatpush1.msra.mxu0 0.0
        %1056 = vmatprep.subr.mxu0 0.0
        %1057 = vmatpush1.msra.mxu0 0.0
        %1058 = vmatprep.subr.mxu0 0.0
        %1059 = vmatpush1.msra.mxu0 0.0
        %1060 = vmatprep.subr.mxu0 0.0
        %1061 = vmatpush1.msra.mxu0 0.0
        %1062 = vmatprep.subr.mxu0 0.0
        %1063 = vmatpush1.msra.mxu0 0.0
        %1064 = vmatprep.subr.mxu0 0.0
        %1065 = vmatpush1.msra.mxu0 0.0
        %1066 = vmatprep.subr.mxu0 0.0
        %1067 = vmatpush1.msra.mxu0 0.0
        %1068 = vmatprep.subr.mxu0 0.0
        %1069 = vmatpush1.msra.mxu0 0.0
        %1070 = vmatprep.subr.mxu0 0.0
        %1071 = vmatpush1.msra.mxu0 0.0
        %1072 = vmatprep.subr.mxu0 0.0
        %1073 = vmatpush1.msra.mxu0 0.0
        %1074 = vmatprep.subr.mxu0 0.0
        %1075 = vmatpush1.msra.mxu0 0.0
        %1076 = vmatprep.subr.mxu0 0.0
        %1077 = vmatpush1.msra.mxu0 0.0
        %1078 = vmatprep.subr.mxu0 0.0
        %1079 = vmatpush1.msra.mxu0 0.0
        %1080 = vmatprep.subr.mxu0 0.0
        %1081 = vmatpush1.msra.mxu0 0.0
        %1082 = vmatprep.subr.mxu0 0.0
        %1083 = vmatpush1.msra.mxu0 0.0
        %1084 = vmatprep.subr.mxu0 0.0
        %1085 = vmatpush1.msra.mxu0 0.0
        %1086 = vmatprep.subr.mxu0 0.0
        %1087 = vmatpush1.msra.mxu0 0.0
        %1088 = vmatprep.subr.mxu0 0.0
        %1089 = vmatpush1.msra.mxu0 0.0
        %1090 = vmatprep.subr.mxu0 0.0
        %1091 = vmatpush1.msra.mxu0 0.0
        %1092 = vmatprep.mubr.f32.mxu0 0.0
        %1093 = vmatmul.mubr.f32.gmra.mrb[0].mxu0 %v1017
        %v1094 = vpop.f32.mrb[0].mxu0
        %v1095 = vadd.f32 0.0, %v1094
        %v1096 = vpop.f32.mrb[0].mxu0
        %v1097 = vadd.f32 0.0, %v1096
        %1098 = vmatprep.mubr.f32.mxu0 0.0
        %1099 = vmatmul.mubr.f32.gmra.mrb[0].mxu0 %v1020
        %v1100 = vpop.f32.mrb[0].mxu0
        %v1101 = vadd.f32 0.0, %v1100
        %v1102 = vpop.f32.mrb[0].mxu0
        %v1103 = vadd.f32 0.0, %v1102
        %1104 = vmatprep.mubr.f32.mxu0 0.0
        %1105 = vmatmul.mubr.f32.gmra.mrb[0].mxu0 %v1023
        %v1106 = vpop.f32.mrb[0].mxu0
        %v1107 = vadd.f32 0.0, %v1106
        %v1108 = vpop.f32.mrb[0].mxu0
        %v1109 = vadd.f32 0.0, %v1108
        %1110 = vmatprep.mubr.f32.mxu0 0.0
        %1111 = vmatmul.mubr.f32.gmra.mrb[0].mxu0 %v1026
        %v1112 = vpop.f32.mrb[0].mxu0
        %v1113 = vadd.f32 0.0, %v1112
        %v1114 = vpop.f32.mrb[0].mxu0
        %v1115 = vadd.f32 0.0, %v1114
        %1116 = vdwg.mxu0
        %v1117 = vadd.f32 %v981, %v1095
        %v1118 = vadd.f32 %v982, %v1097
        %v1119 = vadd.f32 %v983, %v1101
        %v1120 = vadd.f32 %v984, %v1103
        %v1121 = vadd.f32 %v985, %v1107
        %v1122 = vadd.f32 %v986, %v1109
        %v1123 = vadd.f32 %v987, %v1113
        %v1124 = vadd.f32 %v988, %v1115
        %1125 = vrot.lane.b32.xlu0 %v304, 113
        %v1126 = vpop.permute.xlu0 %1125
        %1127 = vrot.lane.b32.xlu0 %v305, 113
        %v1128 = vpop.permute.xlu0 %1127
        %vm1129 = vcmp.lt.s32.totalorder %v335, 113
        %v1130 = vsel %vm1129, %v1126, %v1128
        %v1131 = vsel %vm1129, %v1128, %v1126
        %s1132 = scalar_lea.vmem %s1, 12
        %v1133 = vld [vmem:[%s1132] sm:$0x3]
        %v1135 = vlaneseq
        %v1136 = vshrl.u32 %v1135, 7
        %v1137 = vsub.s32 0, %v1136
        %v1138 = vrot.slane %v1133, %v1137
        %v1139 = vlaneseq
        %v1140 = vshrl.u32 %v1139, 7
        %v1141 = vsub.s32 1, %v1140
        %v1142 = vrot.slane %v1133, %v1141
        %v1145 = vmul.f32 %v1130, %v1138
        %v1146 = vmul.f32 %v1131, %v1142
        %s1147 = scalar_lea.vmem %s2, 192
        %v1148 = vld [vmem:[%s1147] sm:$0xff]
        %v1149 = vld [vmem:[%s1147 + $0x8] sm:$0xff]
        %v1150 = vld [vmem:[%s1147 + $0x10] sm:$0xff]
        %v1151 = vld [vmem:[%s1147 + $0x18] sm:$0xff]
        %v1153 = vsel %vm357, %v1148, 0
        %v1156 = vsel %vm357, %v1149, 0
        %v1159 = vsel %vm357, %v1150, 0
        %v1162 = vsel %vm357, %v1151, 0
        %1164 = vmatprep.subr.mxu0 %v1146
        %1165 = vmatpush1.msra.mxu0 %v1145
        %1166 = vmatprep.subr.mxu0 0.0
        %1167 = vmatpush1.msra.mxu0 0.0
        %1168 = vmatprep.subr.mxu0 0.0
        %1169 = vmatpush1.msra.mxu0 0.0
        %1170 = vmatprep.subr.mxu0 0.0
        %1171 = vmatpush1.msra.mxu0 0.0
        %1172 = vmatprep.subr.mxu0 0.0
        %1173 = vmatpush1.msra.mxu0 0.0
        %1174 = vmatprep.subr.mxu0 0.0
        %1175 = vmatpush1.msra.mxu0 0.0
        %1176 = vmatprep.subr.mxu0 0.0
        %1177 = vmatpush1.msra.mxu0 0.0
        %1178 = vmatprep.subr.mxu0 0.0
        %1179 = vmatpush1.msra.mxu0 0.0
        %1180 = vmatprep.subr.mxu0 0.0
        %1181 = vmatpush1.msra.mxu0 0.0
        %1182 = vmatprep.subr.mxu0 0.0
        %1183 = vmatpush1.msra.mxu0 0.0
        %1184 = vmatprep.subr.mxu0 0.0
        %1185 = vmatpush1.msra.mxu0 0.0
        %1186 = vmatprep.subr.mxu0 0.0
        %1187 = vmatpush1.msra.mxu0 0.0
        %1188 = vmatprep.subr.mxu0 0.0
        %1189 = vmatpush1.msra.mxu0 0.0
        %1190 = vmatprep.subr.mxu0 0.0
        %1191 = vmatpush1.msra.mxu0 0.0
        %1192 = vmatprep.subr.mxu0 0.0
        %1193 = vmatpush1.msra.mxu0 0.0
        %1194 = vmatprep.subr.mxu0 0.0
        %1195 = vmatpush1.msra.mxu0 0.0
        %1196 = vmatprep.subr.mxu0 0.0
        %1197 = vmatpush1.msra.mxu0 0.0
        %1198 = vmatprep.subr.mxu0 0.0
        %1199 = vmatpush1.msra.mxu0 0.0
        %1200 = vmatprep.subr.mxu0 0.0
        %1201 = vmatpush1.msra.mxu0 0.0
        %1202 = vmatprep.subr.mxu0 0.0
        %1203 = vmatpush1.msra.mxu0 0.0
        %1204 = vmatprep.subr.mxu0 0.0
        %1205 = vmatpush1.msra.mxu0 0.0
        %1206 = vmatprep.subr.mxu0 0.0
        %1207 = vmatpush1.msra.mxu0 0.0
        %1208 = vmatprep.subr.mxu0 0.0
        %1209 = vmatpush1.msra.mxu0 0.0
        %1210 = vmatprep.subr.mxu0 0.0
        %1211 = vmatpush1.msra.mxu0 0.0
        %1212 = vmatprep.subr.mxu0 0.0
        %1213 = vmatpush1.msra.mxu0 0.0
        %1214 = vmatprep.subr.mxu0 0.0
        %1215 = vmatpush1.msra.mxu0 0.0
        %1216 = vmatprep.subr.mxu0 0.0
        %1217 = vmatpush1.msra.mxu0 0.0
        %1218 = vmatprep.subr.mxu0 0.0
        %1219 = vmatpush1.msra.mxu0 0.0
        %1220 = vmatprep.subr.mxu0 0.0
        %1221 = vmatpush1.msra.mxu0 0.0
        %1222 = vmatprep.subr.mxu0 0.0
        %1223 = vmatpush1.msra.mxu0 0.0
        %1224 = vmatprep.subr.mxu0 0.0
        %1225 = vmatpush1.msra.mxu0 0.0
        %1226 = vmatprep.subr.mxu0 0.0
        %1227 = vmatpush1.msra.mxu0 0.0
        %1228 = vmatprep.mubr.f32.mxu0 0.0
        %1229 = vmatmul.mubr.f32.gmra.mrb[0].mxu0 %v1153
        %v1230 = vpop.f32.mrb[0].mxu0
        %v1231 = vadd.f32 0.0, %v1230
        %v1232 = vpop.f32.mrb[0].mxu0
        %v1233 = vadd.f32 0.0, %v1232
        %1234 = vmatprep.mubr.f32.mxu0 0.0
        %1235 = vmatmul.mubr.f32.gmra.mrb[0].mxu0 %v1156
        %v1236 = vpop.f32.mrb[0].mxu0
        %v1237 = vadd.f32 0.0, %v1236
        %v1238 = vpop.f32.mrb[0].mxu0
        %v1239 = vadd.f32 0.0, %v1238
        %1240 = vmatprep.mubr.f32.mxu0 0.0
        %1241 = vmatmul.mubr.f32.gmra.mrb[0].mxu0 %v1159
        %v1242 = vpop.f32.mrb[0].mxu0
        %v1243 = vadd.f32 0.0, %v1242
        %v1244 = vpop.f32.mrb[0].mxu0
        %v1245 = vadd.f32 0.0, %v1244
        %1246 = vmatprep.mubr.f32.mxu0 0.0
        %1247 = vmatmul.mubr.f32.gmra.mrb[0].mxu0 %v1162
        %v1248 = vpop.f32.mrb[0].mxu0
        %v1249 = vadd.f32 0.0, %v1248
        %v1250 = vpop.f32.mrb[0].mxu0
        %v1251 = vadd.f32 0.0, %v1250
        %1252 = vdwg.mxu0
        %v1253 = vadd.f32 %v1117, %v1231
        %v1254 = vadd.f32 %v1118, %v1233
        %v1255 = vadd.f32 %v1119, %v1237
        %v1256 = vadd.f32 %v1120, %v1239
        %v1257 = vadd.f32 %v1121, %v1243
        %v1258 = vadd.f32 %v1122, %v1245
        %v1259 = vadd.f32 %v1123, %v1249
        %v1260 = vadd.f32 %v1124, %v1251
        %1261 = vrot.lane.b32.xlu0 %v304, 112
        %v1262 = vpop.permute.xlu0 %1261
        %1263 = vrot.lane.b32.xlu0 %v305, 112
        %v1264 = vpop.permute.xlu0 %1263
        %vm1265 = vcmp.lt.s32.totalorder %v335, 112
        %v1266 = vsel %vm1265, %v1262, %v1264
        %v1267 = vsel %vm1265, %v1264, %v1262
        %s1268 = scalar_lea.vmem %s1, 14
        %v1269 = vld [vmem:[%s1268] sm:$0x3]
        %v1271 = vlaneseq
        %v1272 = vshrl.u32 %v1271, 7
        %v1273 = vsub.s32 0, %v1272
        %v1274 = vrot.slane %v1269, %v1273
        %v1275 = vlaneseq
        %v1276 = vshrl.u32 %v1275, 7
        %v1277 = vsub.s32 1, %v1276
        %v1278 = vrot.slane %v1269, %v1277
        %v1281 = vmul.f32 %v1266, %v1274
        %v1282 = vmul.f32 %v1267, %v1278
        %s1283 = scalar_lea.vmem %s2, 224
        %v1284 = vld [vmem:[%s1283] sm:$0xff]
        %v1285 = vld [vmem:[%s1283 + $0x8] sm:$0xff]
        %v1286 = vld [vmem:[%s1283 + $0x10] sm:$0xff]
        %v1287 = vld [vmem:[%s1283 + $0x18] sm:$0xff]
        %v1289 = vsel %vm357, %v1284, 0
        %v1292 = vsel %vm357, %v1285, 0
        %v1295 = vsel %vm357, %v1286, 0
        %v1298 = vsel %vm357, %v1287, 0
        %1300 = vmatprep.subr.mxu0 %v1282
        %1301 = vmatpush1.msra.mxu0 %v1281
        %1302 = vmatprep.subr.mxu0 0.0
        %1303 = vmatpush1.msra.mxu0 0.0
        %1304 = vmatprep.subr.mxu0 0.0
        %1305 = vmatpush1.msra.mxu0 0.0
        %1306 = vmatprep.subr.mxu0 0.0
        %1307 = vmatpush1.msra.mxu0 0.0
        %1308 = vmatprep.subr.mxu0 0.0
        %1309 = vmatpush1.msra.mxu0 0.0
        %1310 = vmatprep.subr.mxu0 0.0
        %1311 = vmatpush1.msra.mxu0 0.0
        %1312 = vmatprep.subr.mxu0 0.0
        %1313 = vmatpush1.msra.mxu0 0.0
        %1314 = vmatprep.subr.mxu0 0.0
        %1315 = vmatpush1.msra.mxu0 0.0
        %1316 = vmatprep.subr.mxu0 0.0
        %1317 = vmatpush1.msra.mxu0 0.0
        %1318 = vmatprep.subr.mxu0 0.0
        %1319 = vmatpush1.msra.mxu0 0.0
        %1320 = vmatprep.subr.mxu0 0.0
        %1321 = vmatpush1.msra.mxu0 0.0
        %1322 = vmatprep.subr.mxu0 0.0
        %1323 = vmatpush1.msra.mxu0 0.0
        %1324 = vmatprep.subr.mxu0 0.0
        %1325 = vmatpush1.msra.mxu0 0.0
        %1326 = vmatprep.subr.mxu0 0.0
        %1327 = vmatpush1.msra.mxu0 0.0
        %1328 = vmatprep.subr.mxu0 0.0
        %1329 = vmatpush1.msra.mxu0 0.0
        %1330 = vmatprep.subr.mxu0 0.0
        %1331 = vmatpush1.msra.mxu0 0.0
        %1332 = vmatprep.subr.mxu0 0.0
        %1333 = vmatpush1.msra.mxu0 0.0
        %1334 = vmatprep.subr.mxu0 0.0
        %1335 = vmatpush1.msra.mxu0 0.0
        %1336 = vmatprep.subr.mxu0 0.0
        %1337 = vmatpush1.msra.mxu0 0.0
        %1338 = vmatprep.subr.mxu0 0.0
        %1339 = vmatpush1.msra.mxu0 0.0
        %1340 = vmatprep.subr.mxu0 0.0
        %1341 = vmatpush1.msra.mxu0 0.0
        %1342 = vmatprep.subr.mxu0 0.0
        %1343 = vmatpush1.msra.mxu0 0.0
        %1344 = vmatprep.subr.mxu0 0.0
        %1345 = vmatpush1.msra.mxu0 0.0
        %1346 = vmatprep.subr.mxu0 0.0
        %1347 = vmatpush1.msra.mxu0 0.0
        %1348 = vmatprep.subr.mxu0 0.0
        %1349 = vmatpush1.msra.mxu0 0.0
        %1350 = vmatprep.subr.mxu0 0.0
        %1351 = vmatpush1.msra.mxu0 0.0
        %1352 = vmatprep.subr.mxu0 0.0
        %1353 = vmatpush1.msra.mxu0 0.0
        %1354 = vmatprep.subr.mxu0 0.0
        %1355 = vmatpush1.msra.mxu0 0.0
        %1356 = vmatprep.subr.mxu0 0.0
        %1357 = vmatpush1.msra.mxu0 0.0
        %1358 = vmatprep.subr.mxu0 0.0
        %1359 = vmatpush1.msra.mxu0 0.0
        %1360 = vmatprep.subr.mxu0 0.0
        %1361 = vmatpush1.msra.mxu0 0.0
        %1362 = vmatprep.subr.mxu0 0.0
        %1363 = vmatpush1.msra.mxu0 0.0
        %1364 = vmatprep.mubr.f32.mxu0 0.0
        %1365 = vmatmul.mubr.f32.gmra.mrb[0].mxu0 %v1289
        %v1366 = vpop.f32.mrb[0].mxu0
        %v1367 = vadd.f32 0.0, %v1366
        %v1368 = vpop.f32.mrb[0].mxu0
        %v1369 = vadd.f32 0.0, %v1368
        %1370 = vmatprep.mubr.f32.mxu0 0.0
        %1371 = vmatmul.mubr.f32.gmra.mrb[0].mxu0 %v1292
        %v1372 = vpop.f32.mrb[0].mxu0
        %v1373 = vadd.f32 0.0, %v1372
        %v1374 = vpop.f32.mrb[0].mxu0
        %v1375 = vadd.f32 0.0, %v1374
        %1376 = vmatprep.mubr.f32.mxu0 0.0
        %1377 = vmatmul.mubr.f32.gmra.mrb[0].mxu0 %v1295
        %v1378 = vpop.f32.mrb[0].mxu0
        %v1379 = vadd.f32 0.0, %v1378
        %v1380 = vpop.f32.mrb[0].mxu0
        %v1381 = vadd.f32 0.0, %v1380
        %1382 = vmatprep.mubr.f32.mxu0 0.0
        %1383 = vmatmul.mubr.f32.gmra.mrb[0].mxu0 %v1298
        %v1384 = vpop.f32.mrb[0].mxu0
        %v1385 = vadd.f32 0.0, %v1384
        %v1386 = vpop.f32.mrb[0].mxu0
        %v1387 = vadd.f32 0.0, %v1386
        %1388 = vdwg.mxu0
        %v1389 = vadd.f32 %v1253, %v1367
        %v1390 = vadd.f32 %v1254, %v1369
        %v1391 = vadd.f32 %v1255, %v1373
        %v1392 = vadd.f32 %v1256, %v1375
        %v1393 = vadd.f32 %v1257, %v1379
        %v1394 = vadd.f32 %v1258, %v1381
        %v1395 = vadd.f32 %v1259, %v1385
        %v1396 = vadd.f32 %v1260, %v1387
        %1397 = vrot.lane.b32.xlu0 %v304, 111
        %v1398 = vpop.permute.xlu0 %1397
        %1399 = vrot.lane.b32.xlu0 %v305, 111
        %v1400 = vpop.permute.xlu0 %1399
        %vm1401 = vcmp.lt.s32.totalorder %v335, 111
        %v1402 = vsel %vm1401, %v1398, %v1400
        %v1403 = vsel %vm1401, %v1400, %v1398
        %s1404 = scalar_lea.vmem %s1, 16
        %v1405 = vld [vmem:[%s1404] sm:$0x3]
        %v1407 = vlaneseq
        %v1408 = vshrl.u32 %v1407, 7
        %v1409 = vsub.s32 0, %v1408
        %v1410 = vrot.slane %v1405, %v1409
        %v1411 = vlaneseq
        %v1412 = vshrl.u32 %v1411, 7
        %v1413 = vsub.s32 1, %v1412
        %v1414 = vrot.slane %v1405, %v1413
        %v1417 = vmul.f32 %v1402, %v1410
        %v1418 = vmul.f32 %v1403, %v1414
        %s1419 = scalar_lea.vmem %s2, 256
        %v1420 = vld [vmem:[%s1419] sm:$0xff]
        %v1421 = vld [vmem:[%s1419 + $0x8] sm:$0xff]
        %v1422 = vld [vmem:[%s1419 + $0x10] sm:$0xff]
        %v1423 = vld [vmem:[%s1419 + $0x18] sm:$0xff]
        %v1425 = vsel %vm357, %v1420, 0
        %v1428 = vsel %vm357, %v1421, 0
        %v1431 = vsel %vm357, %v1422, 0
        %v1434 = vsel %vm357, %v1423, 0
        %1436 = vmatprep.subr.mxu0 %v1418
        %1437 = vmatpush1.msra.mxu0 %v1417
        %1438 = vmatprep.subr.mxu0 0.0
        %1439 = vmatpush1.msra.mxu0 0.0
        %1440 = vmatprep.subr.mxu0 0.0
        %1441 = vmatpush1.msra.mxu0 0.0
        %1442 = vmatprep.subr.mxu0 0.0
        %1443 = vmatpush1.msra.mxu0 0.0
        %1444 = vmatprep.subr.mxu0 0.0
        %1445 = vmatpush1.msra.mxu0 0.0
        %1446 = vmatprep.subr.mxu0 0.0
        %1447 = vmatpush1.msra.mxu0 0.0
        %1448 = vmatprep.subr.mxu0 0.0
        %1449 = vmatpush1.msra.mxu0 0.0
        %1450 = vmatprep.subr.mxu0 0.0
        %1451 = vmatpush1.msra.mxu0 0.0
        %1452 = vmatprep.subr.mxu0 0.0
        %1453 = vmatpush1.msra.mxu0 0.0
        %1454 = vmatprep.subr.mxu0 0.0
        %1455 = vmatpush1.msra.mxu0 0.0
        %1456 = vmatprep.subr.mxu0 0.0
        %1457 = vmatpush1.msra.mxu0 0.0
        %1458 = vmatprep.subr.mxu0 0.0
        %1459 = vmatpush1.msra.mxu0 0.0
        %1460 = vmatprep.subr.mxu0 0.0
        %1461 = vmatpush1.msra.mxu0 0.0
        %1462 = vmatprep.subr.mxu0 0.0
        %1463 = vmatpush1.msra.mxu0 0.0
        %1464 = vmatprep.subr.mxu0 0.0
        %1465 = vmatpush1.msra.mxu0 0.0
        %1466 = vmatprep.subr.mxu0 0.0
        %1467 = vmatpush1.msra.mxu0 0.0
        %1468 = vmatprep.subr.mxu0 0.0
        %1469 = vmatpush1.msra.mxu0 0.0
        %1470 = vmatprep.subr.mxu0 0.0
        %1471 = vmatpush1.msra.mxu0 0.0
        %1472 = vmatprep.subr.mxu0 0.0
        %1473 = vmatpush1.msra.mxu0 0.0
        %1474 = vmatprep.subr.mxu0 0.0
        %1475 = vmatpush1.msra.mxu0 0.0
        %1476 = vmatprep.subr.mxu0 0.0
        %1477 = vmatpush1.msra.mxu0 0.0
        %1478 = vmatprep.subr.mxu0 0.0
        %1479 = vmatpush1.msra.mxu0 0.0
        %1480 = vmatprep.subr.mxu0 0.0
        %1481 = vmatpush1.msra.mxu0 0.0
        %1482 = vmatprep.subr.mxu0 0.0
        %1483 = vmatpush1.msra.mxu0 0.0
        %1484 = vmatprep.subr.mxu0 0.0
        %1485 = vmatpush1.msra.mxu0 0.0
        %1486 = vmatprep.subr.mxu0 0.0
        %1487 = vmatpush1.msra.mxu0 0.0
        %1488 = vmatprep.subr.mxu0 0.0
        %1489 = vmatpush1.msra.mxu0 0.0
        %1490 = vmatprep.subr.mxu0 0.0
        %1491 = vmatpush1.msra.mxu0 0.0
        %1492 = vmatprep.subr.mxu0 0.0
        %1493 = vmatpush1.msra.mxu0 0.0
        %1494 = vmatprep.subr.mxu0 0.0
        %1495 = vmatpush1.msra.mxu0 0.0
        %1496 = vmatprep.subr.mxu0 0.0
        %1497 = vmatpush1.msra.mxu0 0.0
        %1498 = vmatprep.subr.mxu0 0.0
        %1499 = vmatpush1.msra.mxu0 0.0
        %1500 = vmatprep.mubr.f32.mxu0 0.0
        %1501 = vmatmul.mubr.f32.gmra.mrb[0].mxu0 %v1425
        %v1502 = vpop.f32.mrb[0].mxu0
        %v1503 = vadd.f32 0.0, %v1502
        %v1504 = vpop.f32.mrb[0].mxu0
        %v1505 = vadd.f32 0.0, %v1504
        %1506 = vmatprep.mubr.f32.mxu0 0.0
        %1507 = vmatmul.mubr.f32.gmra.mrb[0].mxu0 %v1428
        %v1508 = vpop.f32.mrb[0].mxu0
        %v1509 = vadd.f32 0.0, %v1508
        %v1510 = vpop.f32.mrb[0].mxu0
        %v1511 = vadd.f32 0.0, %v1510
        %1512 = vmatprep.mubr.f32.mxu0 0.0
        %1513 = vmatmul.mubr.f32.gmra.mrb[0].mxu0 %v1431
        %v1514 = vpop.f32.mrb[0].mxu0
        %v1515 = vadd.f32 0.0, %v1514
        %v1516 = vpop.f32.mrb[0].mxu0
        %v1517 = vadd.f32 0.0, %v1516
        %1518 = vmatprep.mubr.f32.mxu0 0.0
        %1519 = vmatmul.mubr.f32.gmra.mrb[0].mxu0 %v1434
        %v1520 = vpop.f32.mrb[0].mxu0
        %v1521 = vadd.f32 0.0, %v1520
        %v1522 = vpop.f32.mrb[0].mxu0
        %v1523 = vadd.f32 0.0, %v1522
        %1524 = vdwg.mxu0
        %v1525 = vadd.f32 %v1389, %v1503
        %v1526 = vadd.f32 %v1390, %v1505
        %v1527 = vadd.f32 %v1391, %v1509
        %v1528 = vadd.f32 %v1392, %v1511
        %v1529 = vadd.f32 %v1393, %v1515
        %v1530 = vadd.f32 %v1394, %v1517
        %v1531 = vadd.f32 %v1395, %v1521
        %v1532 = vadd.f32 %v1396, %v1523
        %v1533 = vmax.f32 %v1525, 0.0
        %v1534 = vmax.f32 %v1526, 0.0
        %v1535 = vmax.f32 %v1527, 0.0
        %v1536 = vmax.f32 %v1528, 0.0
        %v1537 = vmax.f32 %v1529, 0.0
        %v1538 = vmax.f32 %v1530, 0.0
        %v1539 = vmax.f32 %v1531, 0.0
        %v1540 = vmax.f32 %v1532, 0.0
        %v1541 = vld [vmem:[%s5] sm:$0xff]
        %v1542 = vld [vmem:[%s5 + $0x8] sm:$0xff]
        %v1543 = vld [vmem:[%s5 + $0x10] sm:$0xff]
        %v1544 = vld [vmem:[%s5 + $0x18] sm:$0xff]
        %1546 = vset.pattern.permute.xlu0 0
        %1547 = vperm.xlu0 %1546, %v1541
        %v1548 = vpop.permute.xlu0 %1547
        %1551 = vset.pattern.permute.xlu0 0
        %1552 = vperm.xlu0 %1551, %v1542
        %v1553 = vpop.permute.xlu0 %1552
        %1556 = vset.pattern.permute.xlu0 0
        %1557 = vperm.xlu0 %1556, %v1543
        %v1558 = vpop.permute.xlu0 %1557
        %1561 = vset.pattern.permute.xlu0 0
        %1562 = vperm.xlu0 %1561, %v1544
        %v1563 = vpop.permute.xlu0 %1562
        %1565 = vrot.lane.b32.xlu0 %v1533, 17
        %v1566 = vpop.permute.xlu0 %1565
        %1567 = vrot.lane.b32.xlu0 %v1535, 17
        %v1568 = vpop.permute.xlu0 %1567
        %1569 = vrot.lane.b32.xlu0 %v1537, 17
        %v1570 = vpop.permute.xlu0 %1569
        %1571 = vrot.lane.b32.xlu0 %v1539, 17
        %v1572 = vpop.permute.xlu0 %1571
        %1573 = vrot.lane.b32.xlu0 %v1534, 17
        %v1574 = vpop.permute.xlu0 %1573
        %1575 = vrot.lane.b32.xlu0 %v1536, 17
        %v1576 = vpop.permute.xlu0 %1575
        %1577 = vrot.lane.b32.xlu0 %v1538, 17
        %v1578 = vpop.permute.xlu0 %1577
        %1579 = vrot.lane.b32.xlu0 %v1540, 17
        %v1580 = vpop.permute.xlu0 %1579
        %v1581 = vsel %vm336, %v1566, %v1574
        %v1582 = vsel %vm336, %v1568, %v1576
        %v1583 = vsel %vm336, %v1570, %v1578
        %v1584 = vsel %vm336, %v1572, %v1580
        %v1585 = vsel %vm336, %v1574, %v1566
        %v1586 = vsel %vm336, %v1576, %v1568
        %v1587 = vsel %vm336, %v1578, %v1570
        %v1588 = vsel %vm336, %v1580, %v1572
        %v1589 = vmul.f32 %v1585, %v344
        %v1590 = vmul.f32 %v1581, %v348
        %v1591 = vmul.f32 %v1586, %v344
        %v1592 = vmul.f32 %v1582, %v348
        %v1593 = vmul.f32 %v1587, %v344
        %v1594 = vmul.f32 %v1583, %v348
        %v1595 = vmul.f32 %v1588, %v344
        %v1596 = vmul.f32 %v1584, %v348
        %v1597 = vld [vmem:[%s4] sm:$0xff]
        %v1598 = vld [vmem:[%s4 + $0x8] sm:$0xff]
        %v1599 = vld [vmem:[%s4 + $0x10] sm:$0xff]
        %v1600 = vld [vmem:[%s4 + $0x18] sm:$0xff]
        %vm1601 = vcmask 261120
        %v1603 = vsel %vm1601, %v1597, 0
        %v1606 = vsel %vm1601, %v1598, 0
        %v1609 = vsel %vm1601, %v1599, 0
        %v1612 = vsel %vm1601, %v1600, 0
        %1614 = vmatprep.subr.mxu0 %v1590
        %1615 = vmatpush1.msra.mxu0 %v1589
        %1616 = vmatprep.subr.mxu0 %v1592
        %1617 = vmatpush1.msra.mxu0 %v1591
        %1618 = vmatprep.subr.mxu0 %v1594
        %1619 = vmatpush1.msra.mxu0 %v1593
        %1620 = vmatprep.subr.mxu0 %v1596
        %1621 = vmatpush1.msra.mxu0 %v1595
        %1622 = vmatprep.subr.mxu0 0.0
        %1623 = vmatpush1.msra.mxu0 0.0
        %1624 = vmatprep.subr.mxu0 0.0
        %1625 = vmatpush1.msra.mxu0 0.0
        %1626 = vmatprep.subr.mxu0 0.0
        %1627 = vmatpush1.msra.mxu0 0.0
        %1628 = vmatprep.subr.mxu0 0.0
        %1629 = vmatpush1.msra.mxu0 0.0
        %1630 = vmatprep.subr.mxu0 0.0
        %1631 = vmatpush1.msra.mxu0 0.0
        %1632 = vmatprep.subr.mxu0 0.0
        %1633 = vmatpush1.msra.mxu0 0.0
        %1634 = vmatprep.subr.mxu0 0.0
        %1635 = vmatpush1.msra.mxu0 0.0
        %1636 = vmatprep.subr.mxu0 0.0
        %1637 = vmatpush1.msra.mxu0 0.0
        %1638 = vmatprep.subr.mxu0 0.0
        %1639 = vmatpush1.msra.mxu0 0.0
        %1640 = vmatprep.subr.mxu0 0.0
        %1641 = vmatpush1.msra.mxu0 0.0
        %1642 = vmatprep.subr.mxu0 0.0
        %1643 = vmatpush1.msra.mxu0 0.0
        %1644 = vmatprep.subr.mxu0 0.0
        %1645 = vmatpush1.msra.mxu0 0.0
        %1646 = vmatprep.subr.mxu0 0.0
        %1647 = vmatpush1.msra.mxu0 0.0
        %1648 = vmatprep.subr.mxu0 0.0
        %1649 = vmatpush1.msra.mxu0 0.0
        %1650 = vmatprep.subr.mxu0 0.0
        %1651 = vmatpush1.msra.mxu0 0.0
        %1652 = vmatprep.subr.mxu0 0.0
        %1653 = vmatpush1.msra.mxu0 0.0
        %1654 = vmatprep.subr.mxu0 0.0
        %1655 = vmatpush1.msra.mxu0 0.0
        %1656 = vmatprep.subr.mxu0 0.0
        %1657 = vmatpush1.msra.mxu0 0.0
        %1658 = vmatprep.subr.mxu0 0.0
        %1659 = vmatpush1.msra.mxu0 0.0
        %1660 = vmatprep.subr.mxu0 0.0
        %1661 = vmatpush1.msra.mxu0 0.0
        %1662 = vmatprep.subr.mxu0 0.0
        %1663 = vmatpush1.msra.mxu0 0.0
        %1664 = vmatprep.subr.mxu0 0.0
        %1665 = vmatpush1.msra.mxu0 0.0
        %1666 = vmatprep.subr.mxu0 0.0
        %1667 = vmatpush1.msra.mxu0 0.0
        %1668 = vmatprep.subr.mxu0 0.0
        %1669 = vmatpush1.msra.mxu0 0.0
        %1670 = vmatprep.subr.mxu0 0.0
        %1671 = vmatpush1.msra.mxu0 0.0
        %1672 = vmatprep.subr.mxu0 0.0
        %1673 = vmatpush1.msra.mxu0 0.0
        %1674 = vmatprep.subr.mxu0 0.0
        %1675 = vmatpush1.msra.mxu0 0.0
        %1676 = vmatprep.subr.mxu0 0.0
        %1677 = vmatpush1.msra.mxu0 0.0
        %1678 = vmatprep.mubr.f32.mxu0 0.0
        %1679 = vmatmul.mubr.f32.gmra.mrb[0].mxu0 %v1603
        %v1680 = vpop.f32.mrb[0].mxu0
        %v1681 = vadd.f32 0.0, %v1680
        %v1682 = vpop.f32.mrb[0].mxu0
        %v1683 = vadd.f32 0.0, %v1682
        %1684 = vmatprep.mubr.f32.mxu0 0.0
        %1685 = vmatmul.mubr.f32.gmra.mrb[0].mxu0 %v1606
        %v1686 = vpop.f32.mrb[0].mxu0
        %v1687 = vadd.f32 0.0, %v1686
        %v1688 = vpop.f32.mrb[0].mxu0
        %v1689 = vadd.f32 0.0, %v1688
        %1690 = vmatprep.mubr.f32.mxu0 0.0
        %1691 = vmatmul.mubr.f32.gmra.mrb[0].mxu0 %v1609
        %v1692 = vpop.f32.mrb[0].mxu0
        %v1693 = vadd.f32 0.0, %v1692
        %v1694 = vpop.f32.mrb[0].mxu0
        %v1695 = vadd.f32 0.0, %v1694
        %1696 = vmatprep.mubr.f32.mxu0 0.0
        %1697 = vmatmul.mubr.f32.gmra.mrb[0].mxu0 %v1612
        %v1698 = vpop.f32.mrb[0].mxu0
        %v1699 = vadd.f32 0.0, %v1698
        %v1700 = vpop.f32.mrb[0].mxu0
        %v1701 = vadd.f32 0.0, %v1700
        %1702 = vdwg.mxu0
        %v1703 = vadd.f32 %v1548, %v1681
        %v1704 = vadd.f32 %v1548, %v1683
        %v1705 = vadd.f32 %v1553, %v1687
        %v1706 = vadd.f32 %v1553, %v1689
        %v1707 = vadd.f32 %v1558, %v1693
        %v1708 = vadd.f32 %v1558, %v1695
        %v1709 = vadd.f32 %v1563, %v1699
        %v1710 = vadd.f32 %v1563, %v1701
        %1711 = vrot.lane.b32.xlu0 %v1533, 16
        %v1712 = vpop.permute.xlu0 %1711
        %1713 = vrot.lane.b32.xlu0 %v1535, 16
        %v1714 = vpop.permute.xlu0 %1713
        %1715 = vrot.lane.b32.xlu0 %v1537, 16
        %v1716 = vpop.permute.xlu0 %1715
        %1717 = vrot.lane.b32.xlu0 %v1539, 16
        %v1718 = vpop.permute.xlu0 %1717
        %1719 = vrot.lane.b32.xlu0 %v1534, 16
        %v1720 = vpop.permute.xlu0 %1719
        %1721 = vrot.lane.b32.xlu0 %v1536, 16
        %v1722 = vpop.permute.xlu0 %1721
        %1723 = vrot.lane.b32.xlu0 %v1538, 16
        %v1724 = vpop.permute.xlu0 %1723
        %1725 = vrot.lane.b32.xlu0 %v1540, 16
        %v1726 = vpop.permute.xlu0 %1725
        %v1727 = vsel %vm471, %v1712, %v1720
        %v1728 = vsel %vm471, %v1714, %v1722
        %v1729 = vsel %vm471, %v1716, %v1724
        %v1730 = vsel %vm471, %v1718, %v1726
        %v1731 = vsel %vm471, %v1720, %v1712
        %v1732 = vsel %vm471, %v1722, %v1714
        %v1733 = vsel %vm471, %v1724, %v1716
        %v1734 = vsel %vm471, %v1726, %v1718
        %v1735 = vmul.f32 %v1731, %v480
        %v1736 = vmul.f32 %v1727, %v484
        %v1737 = vmul.f32 %v1732, %v480
        %v1738 = vmul.f32 %v1728, %v484
        %v1739 = vmul.f32 %v1733, %v480
        %v1740 = vmul.f32 %v1729, %v484
        %v1741 = vmul.f32 %v1734, %v480
        %v1742 = vmul.f32 %v1730, %v484
        %s1743 = scalar_lea.vmem %s4, 32
        %v1744 = vld [vmem:[%s1743] sm:$0xff]
        %v1745 = vld [vmem:[%s1743 + $0x8] sm:$0xff]
        %v1746 = vld [vmem:[%s1743 + $0x10] sm:$0xff]
        %v1747 = vld [vmem:[%s1743 + $0x18] sm:$0xff]
        %v1749 = vsel %vm1601, %v1744, 0
        %v1752 = vsel %vm1601, %v1745, 0
        %v1755 = vsel %vm1601, %v1746, 0
        %v1758 = vsel %vm1601, %v1747, 0
        %1760 = vmatprep.subr.mxu0 %v1736
        %1761 = vmatpush1.msra.mxu0 %v1735
        %1762 = vmatprep.subr.mxu0 %v1738
        %1763 = vmatpush1.msra.mxu0 %v1737
        %1764 = vmatprep.subr.mxu0 %v1740
        %1765 = vmatpush1.msra.mxu0 %v1739
        %1766 = vmatprep.subr.mxu0 %v1742
        %1767 = vmatpush1.msra.mxu0 %v1741
        %1768 = vmatprep.subr.mxu0 0.0
        %1769 = vmatpush1.msra.mxu0 0.0
        %1770 = vmatprep.subr.mxu0 0.0
        %1771 = vmatpush1.msra.mxu0 0.0
        %1772 = vmatprep.subr.mxu0 0.0
        %1773 = vmatpush1.msra.mxu0 0.0
        %1774 = vmatprep.subr.mxu0 0.0
        %1775 = vmatpush1.msra.mxu0 0.0
        %1776 = vmatprep.subr.mxu0 0.0
        %1777 = vmatpush1.msra.mxu0 0.0
        %1778 = vmatprep.subr.mxu0 0.0
        %1779 = vmatpush1.msra.mxu0 0.0
        %1780 = vmatprep.subr.mxu0 0.0
        %1781 = vmatpush1.msra.mxu0 0.0
        %1782 = vmatprep.subr.mxu0 0.0
        %1783 = vmatpush1.msra.mxu0 0.0
        %1784 = vmatprep.subr.mxu0 0.0
        %1785 = vmatpush1.msra.mxu0 0.0
        %1786 = vmatprep.subr.mxu0 0.0
        %1787 = vmatpush1.msra.mxu0 0.0
        %1788 = vmatprep.subr.mxu0 0.0
        %1789 = vmatpush1.msra.mxu0 0.0
        %1790 = vmatprep.subr.mxu0 0.0
        %1791 = vmatpush1.msra.mxu0 0.0
        %1792 = vmatprep.subr.mxu0 0.0
        %1793 = vmatpush1.msra.mxu0 0.0
        %1794 = vmatprep.subr.mxu0 0.0
        %1795 = vmatpush1.msra.mxu0 0.0
        %1796 = vmatprep.subr.mxu0 0.0
        %1797 = vmatpush1.msra.mxu0 0.0
        %1798 = vmatprep.subr.mxu0 0.0
        %1799 = vmatpush1.msra.mxu0 0.0
        %1800 = vmatprep.subr.mxu0 0.0
        %1801 = vmatpush1.msra.mxu0 0.0
        %1802 = vmatprep.subr.mxu0 0.0
        %1803 = vmatpush1.msra.mxu0 0.0
        %1804 = vmatprep.subr.mxu0 0.0
        %1805 = vmatpush1.msra.mxu0 0.0
        %1806 = vmatprep.subr.mxu0 0.0
        %1807 = vmatpush1.msra.mxu0 0.0
        %1808 = vmatprep.subr.mxu0 0.0
        %1809 = vmatpush1.msra.mxu0 0.0
        %1810 = vmatprep.subr.mxu0 0.0
        %1811 = vmatpush1.msra.mxu0 0.0
        %1812 = vmatprep.subr.mxu0 0.0
        %1813 = vmatpush1.msra.mxu0 0.0
        %1814 = vmatprep.subr.mxu0 0.0
        %1815 = vmatpush1.msra.mxu0 0.0
        %1816 = vmatprep.subr.mxu0 0.0
        %1817 = vmatpush1.msra.mxu0 0.0
        %1818 = vmatprep.subr.mxu0 0.0
        %1819 = vmatpush1.msra.mxu0 0.0
        %1820 = vmatprep.subr.mxu0 0.0
        %1821 = vmatpush1.msra.mxu0 0.0
        %1822 = vmatprep.subr.mxu0 0.0
        %1823 = vmatpush1.msra.mxu0 0.0
        %1824 = vmatprep.mubr.f32.mxu0 0.0
        %1825 = vmatmul.mubr.f32.gmra.mrb[0].mxu0 %v1749
        %v1826 = vpop.f32.mrb[0].mxu0
        %v1827 = vadd.f32 0.0, %v1826
        %v1828 = vpop.f32.mrb[0].mxu0
        %v1829 = vadd.f32 0.0, %v1828
        %1830 = vmatprep.mubr.f32.mxu0 0.0
        %1831 = vmatmul.mubr.f32.gmra.mrb[0].mxu0 %v1752
        %v1832 = vpop.f32.mrb[0].mxu0
        %v1833 = vadd.f32 0.0, %v1832
        %v1834 = vpop.f32.mrb[0].mxu0
        %v1835 = vadd.f32 0.0, %v1834
        %1836 = vmatprep.mubr.f32.mxu0 0.0
        %1837 = vmatmul.mubr.f32.gmra.mrb[0].mxu0 %v1755
        %v1838 = vpop.f32.mrb[0].mxu0
        %v1839 = vadd.f32 0.0, %v1838
        %v1840 = vpop.f32.mrb[0].mxu0
        %v1841 = vadd.f32 0.0, %v1840
        %1842 = vmatprep.mubr.f32.mxu0 0.0
        %1843 = vmatmul.mubr.f32.gmra.mrb[0].mxu0 %v1758
        %v1844 = vpop.f32.mrb[0].mxu0
        %v1845 = vadd.f32 0.0, %v1844
        %v1846 = vpop.f32.mrb[0].mxu0
        %v1847 = vadd.f32 0.0, %v1846
        %1848 = vdwg.mxu0
        %v1849 = vadd.f32 %v1703, %v1827
        %v1850 = vadd.f32 %v1704, %v1829
        %v1851 = vadd.f32 %v1705, %v1833
        %v1852 = vadd.f32 %v1706, %v1835
        %v1853 = vadd.f32 %v1707, %v1839
        %v1854 = vadd.f32 %v1708, %v1841
        %v1855 = vadd.f32 %v1709, %v1845
        %v1856 = vadd.f32 %v1710, %v1847
        %1857 = vrot.lane.b32.xlu0 %v1533, 15
        %v1858 = vpop.permute.xlu0 %1857
        %1859 = vrot.lane.b32.xlu0 %v1535, 15
        %v1860 = vpop.permute.xlu0 %1859
        %1861 = vrot.lane.b32.xlu0 %v1537, 15
        %v1862 = vpop.permute.xlu0 %1861
        %1863 = vrot.lane.b32.xlu0 %v1539, 15
        %v1864 = vpop.permute.xlu0 %1863
        %1865 = vrot.lane.b32.xlu0 %v1534, 15
        %v1866 = vpop.permute.xlu0 %1865
        %1867 = vrot.lane.b32.xlu0 %v1536, 15
        %v1868 = vpop.permute.xlu0 %1867
        %1869 = vrot.lane.b32.xlu0 %v1538, 15
        %v1870 = vpop.permute.xlu0 %1869
        %1871 = vrot.lane.b32.xlu0 %v1540, 15
        %v1872 = vpop.permute.xlu0 %1871
        %v1873 = vsel %vm607, %v1858, %v1866
        %v1874 = vsel %vm607, %v1860, %v1868
        %v1875 = vsel %vm607, %v1862, %v1870
        %v1876 = vsel %vm607, %v1864, %v1872
        %v1877 = vsel %vm607, %v1866, %v1858
        %v1878 = vsel %vm607, %v1868, %v1860
        %v1879 = vsel %vm607, %v1870, %v1862
        %v1880 = vsel %vm607, %v1872, %v1864
        %v1881 = vmul.f32 %v1877, %v616
        %v1882 = vmul.f32 %v1873, %v620
        %v1883 = vmul.f32 %v1878, %v616
        %v1884 = vmul.f32 %v1874, %v620
        %v1885 = vmul.f32 %v1879, %v616
        %v1886 = vmul.f32 %v1875, %v620
        %v1887 = vmul.f32 %v1880, %v616
        %v1888 = vmul.f32 %v1876, %v620
        %s1889 = scalar_lea.vmem %s4, 64
        %v1890 = vld [vmem:[%s1889] sm:$0xff]
        %v1891 = vld [vmem:[%s1889 + $0x8] sm:$0xff]
        %v1892 = vld [vmem:[%s1889 + $0x10] sm:$0xff]
        %v1893 = vld [vmem:[%s1889 + $0x18] sm:$0xff]
        %v1895 = vsel %vm1601, %v1890, 0
        %v1898 = vsel %vm1601, %v1891, 0
        %v1901 = vsel %vm1601, %v1892, 0
        %v1904 = vsel %vm1601, %v1893, 0
        %1906 = vmatprep.subr.mxu0 %v1882
        %1907 = vmatpush1.msra.mxu0 %v1881
        %1908 = vmatprep.subr.mxu0 %v1884
        %1909 = vmatpush1.msra.mxu0 %v1883
        %1910 = vmatprep.subr.mxu0 %v1886
        %1911 = vmatpush1.msra.mxu0 %v1885
        %1912 = vmatprep.subr.mxu0 %v1888
        %1913 = vmatpush1.msra.mxu0 %v1887
        %1914 = vmatprep.subr.mxu0 0.0
        %1915 = vmatpush1.msra.mxu0 0.0
        %1916 = vmatprep.subr.mxu0 0.0
        %1917 = vmatpush1.msra.mxu0 0.0
        %1918 = vmatprep.subr.mxu0 0.0
        %1919 = vmatpush1.msra.mxu0 0.0
        %1920 = vmatprep.subr.mxu0 0.0
        %1921 = vmatpush1.msra.mxu0 0.0
        %1922 = vmatprep.subr.mxu0 0.0
        %1923 = vmatpush1.msra.mxu0 0.0
        %1924 = vmatprep.subr.mxu0 0.0
        %1925 = vmatpush1.msra.mxu0 0.0
        %1926 = vmatprep.subr.mxu0 0.0
        %1927 = vmatpush1.msra.mxu0 0.0
        %1928 = vmatprep.subr.mxu0 0.0
        %1929 = vmatpush1.msra.mxu0 0.0
        %1930 = vmatprep.subr.mxu0 0.0
        %1931 = vmatpush1.msra.mxu0 0.0
        %1932 = vmatprep.subr.mxu0 0.0
        %1933 = vmatpush1.msra.mxu0 0.0
        %1934 = vmatprep.subr.mxu0 0.0
        %1935 = vmatpush1.msra.mxu0 0.0
        %1936 = vmatprep.subr.mxu0 0.0
        %1937 = vmatpush1.msra.mxu0 0.0
        %1938 = vmatprep.subr.mxu0 0.0
        %1939 = vmatpush1.msra.mxu0 0.0
        %1940 = vmatprep.subr.mxu0 0.0
        %1941 = vmatpush1.msra.mxu0 0.0
        %1942 = vmatprep.subr.mxu0 0.0
        %1943 = vmatpush1.msra.mxu0 0.0
        %1944 = vmatprep.subr.mxu0 0.0
        %1945 = vmatpush1.msra.mxu0 0.0
        %1946 = vmatprep.subr.mxu0 0.0
        %1947 = vmatpush1.msra.mxu0 0.0
        %1948 = vmatprep.subr.mxu0 0.0
        %1949 = vmatpush1.msra.mxu0 0.0
        %1950 = vmatprep.subr.mxu0 0.0
        %1951 = vmatpush1.msra.mxu0 0.0
        %1952 = vmatprep.subr.mxu0 0.0
        %1953 = vmatpush1.msra.mxu0 0.0
        %1954 = vmatprep.subr.mxu0 0.0
        %1955 = vmatpush1.msra.mxu0 0.0
        %1956 = vmatprep.subr.mxu0 0.0
        %1957 = vmatpush1.msra.mxu0 0.0
        %1958 = vmatprep.subr.mxu0 0.0
        %1959 = vmatpush1.msra.mxu0 0.0
        %1960 = vmatprep.subr.mxu0 0.0
        %1961 = vmatpush1.msra.mxu0 0.0
        %1962 = vmatprep.subr.mxu0 0.0
        %1963 = vmatpush1.msra.mxu0 0.0
        %1964 = vmatprep.subr.mxu0 0.0
        %1965 = vmatpush1.msra.mxu0 0.0
        %1966 = vmatprep.subr.mxu0 0.0
        %1967 = vmatpush1.msra.mxu0 0.0
        %1968 = vmatprep.subr.mxu0 0.0
        %1969 = vmatpush1.msra.mxu0 0.0
        %1970 = vmatprep.mubr.f32.mxu0 0.0
        %1971 = vmatmul.mubr.f32.gmra.mrb[0].mxu0 %v1895
        %v1972 = vpop.f32.mrb[0].mxu0
        %v1973 = vadd.f32 0.0, %v1972
        %v1974 = vpop.f32.mrb[0].mxu0
        %v1975 = vadd.f32 0.0, %v1974
        %1976 = vmatprep.mubr.f32.mxu0 0.0
        %1977 = vmatmul.mubr.f32.gmra.mrb[0].mxu0 %v1898
        %v1978 = vpop.f32.mrb[0].mxu0
        %v1979 = vadd.f32 0.0, %v1978
        %v1980 = vpop.f32.mrb[0].mxu0
        %v1981 = vadd.f32 0.0, %v1980
        %1982 = vmatprep.mubr.f32.mxu0 0.0
        %1983 = vmatmul.mubr.f32.gmra.mrb[0].mxu0 %v1901
        %v1984 = vpop.f32.mrb[0].mxu0
        %v1985 = vadd.f32 0.0, %v1984
        %v1986 = vpop.f32.mrb[0].mxu0
        %v1987 = vadd.f32 0.0, %v1986
        %1988 = vmatprep.mubr.f32.mxu0 0.0
        %1989 = vmatmul.mubr.f32.gmra.mrb[0].mxu0 %v1904
        %v1990 = vpop.f32.mrb[0].mxu0
        %v1991 = vadd.f32 0.0, %v1990
        %v1992 = vpop.f32.mrb[0].mxu0
        %v1993 = vadd.f32 0.0, %v1992
        %1994 = vdwg.mxu0
        %v1995 = vadd.f32 %v1849, %v1973
        %v1996 = vadd.f32 %v1850, %v1975
        %v1997 = vadd.f32 %v1851, %v1979
        %v1998 = vadd.f32 %v1852, %v1981
        %v1999 = vadd.f32 %v1853, %v1985
        %v2000 = vadd.f32 %v1854, %v1987
        %v2001 = vadd.f32 %v1855, %v1991
        %v2002 = vadd.f32 %v1856, %v1993
        %2003 = vrot.lane.b32.xlu0 %v1533, 1
        %v2004 = vpop.permute.xlu0 %2003
        %2005 = vrot.lane.b32.xlu0 %v1535, 1
        %v2006 = vpop.permute.xlu0 %2005
        %2007 = vrot.lane.b32.xlu0 %v1537, 1
        %v2008 = vpop.permute.xlu0 %2007
        %2009 = vrot.lane.b32.xlu0 %v1539, 1
        %v2010 = vpop.permute.xlu0 %2009
        %2011 = vrot.lane.b32.xlu0 %v1534, 1
        %v2012 = vpop.permute.xlu0 %2011
        %2013 = vrot.lane.b32.xlu0 %v1536, 1
        %v2014 = vpop.permute.xlu0 %2013
        %2015 = vrot.lane.b32.xlu0 %v1538, 1
        %v2016 = vpop.permute.xlu0 %2015
        %2017 = vrot.lane.b32.xlu0 %v1540, 1
        %v2018 = vpop.permute.xlu0 %2017
        %v2019 = vsel %vm743, %v2004, %v2012
        %v2020 = vsel %vm743, %v2006, %v2014
        %v2021 = vsel %vm743, %v2008, %v2016
        %v2022 = vsel %vm743, %v2010, %v2018
        %v2023 = vsel %vm743, %v2012, %v2004
        %v2024 = vsel %vm743, %v2014, %v2006
        %v2025 = vsel %vm743, %v2016, %v2008
        %v2026 = vsel %vm743, %v2018, %v2010
        %v2027 = vmul.f32 %v2023, %v752
        %v2028 = vmul.f32 %v2019, %v756
        %v2029 = vmul.f32 %v2024, %v752
        %v2030 = vmul.f32 %v2020, %v756
        %v2031 = vmul.f32 %v2025, %v752
        %v2032 = vmul.f32 %v2021, %v756
        %v2033 = vmul.f32 %v2026, %v752
        %v2034 = vmul.f32 %v2022, %v756
        %s2035 = scalar_lea.vmem %s4, 96
        %v2036 = vld [vmem:[%s2035] sm:$0xff]
        %v2037 = vld [vmem:[%s2035 + $0x8] sm:$0xff]
        %v2038 = vld [vmem:[%s2035 + $0x10] sm:$0xff]
        %v2039 = vld [vmem:[%s2035 + $0x18] sm:$0xff]
        %v2041 = vsel %vm1601, %v2036, 0
        %v2044 = vsel %vm1601, %v2037, 0
        %v2047 = vsel %vm1601, %v2038, 0
        %v2050 = vsel %vm1601, %v2039, 0
        %2052 = vmatprep.subr.mxu0 %v2028
        %2053 = vmatpush1.msra.mxu0 %v2027
        %2054 = vmatprep.subr.mxu0 %v2030
        %2055 = vmatpush1.msra.mxu0 %v2029
        %2056 = vmatprep.subr.mxu0 %v2032
        %2057 = vmatpush1.msra.mxu0 %v2031
        %2058 = vmatprep.subr.mxu0 %v2034
        %2059 = vmatpush1.msra.mxu0 %v2033
        %2060 = vmatprep.subr.mxu0 0.0
        %2061 = vmatpush1.msra.mxu0 0.0
        %2062 = vmatprep.subr.mxu0 0.0
        %2063 = vmatpush1.msra.mxu0 0.0
        %2064 = vmatprep.subr.mxu0 0.0
        %2065 = vmatpush1.msra.mxu0 0.0
        %2066 = vmatprep.subr.mxu0 0.0
        %2067 = vmatpush1.msra.mxu0 0.0
        %2068 = vmatprep.subr.mxu0 0.0
        %2069 = vmatpush1.msra.mxu0 0.0
        %2070 = vmatprep.subr.mxu0 0.0
        %2071 = vmatpush1.msra.mxu0 0.0
        %2072 = vmatprep.subr.mxu0 0.0
        %2073 = vmatpush1.msra.mxu0 0.0
        %2074 = vmatprep.subr.mxu0 0.0
        %2075 = vmatpush1.msra.mxu0 0.0
        %2076 = vmatprep.subr.mxu0 0.0
        %2077 = vmatpush1.msra.mxu0 0.0
        %2078 = vmatprep.subr.mxu0 0.0
        %2079 = vmatpush1.msra.mxu0 0.0
        %2080 = vmatprep.subr.mxu0 0.0
        %2081 = vmatpush1.msra.mxu0 0.0
        %2082 = vmatprep.subr.mxu0 0.0
        %2083 = vmatpush1.msra.mxu0 0.0
        %2084 = vmatprep.subr.mxu0 0.0
        %2085 = vmatpush1.msra.mxu0 0.0
        %2086 = vmatprep.subr.mxu0 0.0
        %2087 = vmatpush1.msra.mxu0 0.0
        %2088 = vmatprep.subr.mxu0 0.0
        %2089 = vmatpush1.msra.mxu0 0.0
        %2090 = vmatprep.subr.mxu0 0.0
        %2091 = vmatpush1.msra.mxu0 0.0
        %2092 = vmatprep.subr.mxu0 0.0
        %2093 = vmatpush1.msra.mxu0 0.0
        %2094 = vmatprep.subr.mxu0 0.0
        %2095 = vmatpush1.msra.mxu0 0.0
        %2096 = vmatprep.subr.mxu0 0.0
        %2097 = vmatpush1.msra.mxu0 0.0
        %2098 = vmatprep.subr.mxu0 0.0
        %2099 = vmatpush1.msra.mxu0 0.0
        %2100 = vmatprep.subr.mxu0 0.0
        %2101 = vmatpush1.msra.mxu0 0.0
        %2102 = vmatprep.subr.mxu0 0.0
        %2103 = vmatpush1.msra.mxu0 0.0
        %2104 = vmatprep.subr.mxu0 0.0
        %2105 = vmatpush1.msra.mxu0 0.0
        %2106 = vmatprep.subr.mxu0 0.0
        %2107 = vmatpush1.msra.mxu0 0.0
        %2108 = vmatprep.subr.mxu0 0.0
        %2109 = vmatpush1.msra.mxu0 0.0
        %2110 = vmatprep.subr.mxu0 0.0
        %2111 = vmatpush1.msra.mxu0 0.0
        %2112 = vmatprep.subr.mxu0 0.0
        %2113 = vmatpush1.msra.mxu0 0.0
        %2114 = vmatprep.subr.mxu0 0.0
        %2115 = vmatpush1.msra.mxu0 0.0
        %2116 = vmatprep.mubr.f32.mxu0 0.0
        %2117 = vmatmul.mubr.f32.gmra.mrb[0].mxu0 %v2041
        %v2118 = vpop.f32.mrb[0].mxu0
        %v2119 = vadd.f32 0.0, %v2118
        %v2120 = vpop.f32.mrb[0].mxu0
        %v2121 = vadd.f32 0.0, %v2120
        %2122 = vmatprep.mubr.f32.mxu0 0.0
        %2123 = vmatmul.mubr.f32.gmra.mrb[0].mxu0 %v2044
        %v2124 = vpop.f32.mrb[0].mxu0
        %v2125 = vadd.f32 0.0, %v2124
        %v2126 = vpop.f32.mrb[0].mxu0
        %v2127 = vadd.f32 0.0, %v2126
        %2128 = vmatprep.mubr.f32.mxu0 0.0
        %2129 = vmatmul.mubr.f32.gmra.mrb[0].mxu0 %v2047
        %v2130 = vpop.f32.mrb[0].mxu0
        %v2131 = vadd.f32 0.0, %v2130
        %v2132 = vpop.f32.mrb[0].mxu0
        %v2133 = vadd.f32 0.0, %v2132
        %2134 = vmatprep.mubr.f32.mxu0 0.0
        %2135 = vmatmul.mubr.f32.gmra.mrb[0].mxu0 %v2050
        %v2136 = vpop.f32.mrb[0].mxu0
        %v2137 = vadd.f32 0.0, %v2136
        %v2138 = vpop.f32.mrb[0].mxu0
        %v2139 = vadd.f32 0.0, %v2138
        %2140 = vdwg.mxu0
        %v2141 = vadd.f32 %v1995, %v2119
        %v2142 = vadd.f32 %v1996, %v2121
        %v2143 = vadd.f32 %v1997, %v2125
        %v2144 = vadd.f32 %v1998, %v2127
        %v2145 = vadd.f32 %v1999, %v2131
        %v2146 = vadd.f32 %v2000, %v2133
        %v2147 = vadd.f32 %v2001, %v2137
        %v2148 = vadd.f32 %v2002, %v2139
        %s2149 = scalar_lea.vmem %s4, 128
        %v2150 = vld [vmem:[%s2149] sm:$0xff]
        %v2151 = vld [vmem:[%s2149 + $0x8] sm:$0xff]
        %v2152 = vld [vmem:[%s2149 + $0x10] sm:$0xff]
        %v2153 = vld [vmem:[%s2149 + $0x18] sm:$0xff]
        %v2155 = vsel %vm1601, %v2150, 0
        %v2158 = vsel %vm1601, %v2151, 0
        %v2161 = vsel %vm1601, %v2152, 0
        %v2164 = vsel %vm1601, %v2153, 0
        %2166 = vmatprep.subr.mxu0 %v1534
        %2167 = vmatpush1.msra.mxu0 %v1533
        %2168 = vmatprep.subr.mxu0 %v1536
        %2169 = vmatpush1.msra.mxu0 %v1535
        %2170 = vmatprep.subr.mxu0 %v1538
        %2171 = vmatpush1.msra.mxu0 %v1537
        %2172 = vmatprep.subr.mxu0 %v1540
        %2173 = vmatpush1.msra.mxu0 %v1539
        %2174 = vmatprep.subr.mxu0 0.0
        %2175 = vmatpush1.msra.mxu0 0.0
        %2176 = vmatprep.subr.mxu0 0.0
        %2177 = vmatpush1.msra.mxu0 0.0
        %2178 = vmatprep.subr.mxu0 0.0
        %2179 = vmatpush1.msra.mxu0 0.0
        %2180 = vmatprep.subr.mxu0 0.0
        %2181 = vmatpush1.msra.mxu0 0.0
        %2182 = vmatprep.subr.mxu0 0.0
        %2183 = vmatpush1.msra.mxu0 0.0
        %2184 = vmatprep.subr.mxu0 0.0
        %2185 = vmatpush1.msra.mxu0 0.0
        %2186 = vmatprep.subr.mxu0 0.0
        %2187 = vmatpush1.msra.mxu0 0.0
        %2188 = vmatprep.subr.mxu0 0.0
        %2189 = vmatpush1.msra.mxu0 0.0
        %2190 = vmatprep.subr.mxu0 0.0
        %2191 = vmatpush1.msra.mxu0 0.0
        %2192 = vmatprep.subr.mxu0 0.0
        %2193 = vmatpush1.msra.mxu0 0.0
        %2194 = vmatprep.subr.mxu0 0.0
        %2195 = vmatpush1.msra.mxu0 0.0
        %2196 = vmatprep.subr.mxu0 0.0
        %2197 = vmatpush1.msra.mxu0 0.0
        %2198 = vmatprep.subr.mxu0 0.0
        %2199 = vmatpush1.msra.mxu0 0.0
        %2200 = vmatprep.subr.mxu0 0.0
        %2201 = vmatpush1.msra.mxu0 0.0
        %2202 = vmatprep.subr.mxu0 0.0
        %2203 = vmatpush1.msra.mxu0 0.0
        %2204 = vmatprep.subr.mxu0 0.0
        %2205 = vmatpush1.msra.mxu0 0.0
        %2206 = vmatprep.subr.mxu0 0.0
        %2207 = vmatpush1.msra.mxu0 0.0
        %2208 = vmatprep.subr.mxu0 0.0
        %2209 = vmatpush1.msra.mxu0 0.0
        %2210 = vmatprep.subr.mxu0 0.0
        %2211 = vmatpush1.msra.mxu0 0.0
        %2212 = vmatprep.subr.mxu0 0.0
        %2213 = vmatpush1.msra.mxu0 0.0
        %2214 = vmatprep.subr.mxu0 0.0
        %2215 = vmatpush1.msra.mxu0 0.0
        %2216 = vmatprep.subr.mxu0 0.0
        %2217 = vmatpush1.msra.mxu0 0.0
        %2218 = vmatprep.subr.mxu0 0.0
        %2219 = vmatpush1.msra.mxu0 0.0
        %2220 = vmatprep.subr.mxu0 0.0
        %2221 = vmatpush1.msra.mxu0 0.0
        %2222 = vmatprep.subr.mxu0 0.0
        %2223 = vmatpush1.msra.mxu0 0.0
        %2224 = vmatprep.subr.mxu0 0.0
        %2225 = vmatpush1.msra.mxu0 0.0
        %2226 = vmatprep.subr.mxu0 0.0
        %2227 = vmatpush1.msra.mxu0 0.0
        %2228 = vmatprep.subr.mxu0 0.0
        %2229 = vmatpush1.msra.mxu0 0.0
        %2230 = vmatprep.mubr.f32.mxu0 0.0
        %2231 = vmatmul.mubr.f32.gmra.mrb[0].mxu0 %v2155
        %v2232 = vpop.f32.mrb[0].mxu0
        %v2233 = vadd.f32 0.0, %v2232
        %v2234 = vpop.f32.mrb[0].mxu0
        %v2235 = vadd.f32 0.0, %v2234
        %2236 = vmatprep.mubr.f32.mxu0 0.0
        %2237 = vmatmul.mubr.f32.gmra.mrb[0].mxu0 %v2158
        %v2238 = vpop.f32.mrb[0].mxu0
        %v2239 = vadd.f32 0.0, %v2238
        %v2240 = vpop.f32.mrb[0].mxu0
        %v2241 = vadd.f32 0.0, %v2240
        %2242 = vmatprep.mubr.f32.mxu0 0.0
        %2243 = vmatmul.mubr.f32.gmra.mrb[0].mxu0 %v2161
        %v2244 = vpop.f32.mrb[0].mxu0
        %v2245 = vadd.f32 0.0, %v2244
        %v2246 = vpop.f32.mrb[0].mxu0
        %v2247 = vadd.f32 0.0, %v2246
        %2248 = vmatprep.mubr.f32.mxu0 0.0
        %2249 = vmatmul.mubr.f32.gmra.mrb[0].mxu0 %v2164
        %v2250 = vpop.f32.mrb[0].mxu0
        %v2251 = vadd.f32 0.0, %v2250
        %v2252 = vpop.f32.mrb[0].mxu0
        %v2253 = vadd.f32 0.0, %v2252
        %2254 = vdwg.mxu0
        %v2255 = vadd.f32 %v2141, %v2233
        %v2256 = vadd.f32 %v2142, %v2235
        %v2257 = vadd.f32 %v2143, %v2239
        %v2258 = vadd.f32 %v2144, %v2241
        %v2259 = vadd.f32 %v2145, %v2245
        %v2260 = vadd.f32 %v2146, %v2247
        %v2261 = vadd.f32 %v2147, %v2251
        %v2262 = vadd.f32 %v2148, %v2253
        %2263 = vrot.lane.b32.xlu0 %v1533, 127
        %v2264 = vpop.permute.xlu0 %2263
        %2265 = vrot.lane.b32.xlu0 %v1535, 127
        %v2266 = vpop.permute.xlu0 %2265
        %2267 = vrot.lane.b32.xlu0 %v1537, 127
        %v2268 = vpop.permute.xlu0 %2267
        %2269 = vrot.lane.b32.xlu0 %v1539, 127
        %v2270 = vpop.permute.xlu0 %2269
        %2271 = vrot.lane.b32.xlu0 %v1534, 127
        %v2272 = vpop.permute.xlu0 %2271
        %2273 = vrot.lane.b32.xlu0 %v1536, 127
        %v2274 = vpop.permute.xlu0 %2273
        %2275 = vrot.lane.b32.xlu0 %v1538, 127
        %v2276 = vpop.permute.xlu0 %2275
        %2277 = vrot.lane.b32.xlu0 %v1540, 127
        %v2278 = vpop.permute.xlu0 %2277
        %v2279 = vsel %vm993, %v2264, %v2272
        %v2280 = vsel %vm993, %v2266, %v2274
        %v2281 = vsel %vm993, %v2268, %v2276
        %v2282 = vsel %vm993, %v2270, %v2278
        %v2283 = vsel %vm993, %v2272, %v2264
        %v2284 = vsel %vm993, %v2274, %v2266
        %v2285 = vsel %vm993, %v2276, %v2268
        %v2286 = vsel %vm993, %v2278, %v2270
        %v2287 = vmul.f32 %v2279, %v1002
        %v2288 = vmul.f32 %v2283, %v1006
        %v2289 = vmul.f32 %v2280, %v1002
        %v2290 = vmul.f32 %v2284, %v1006
        %v2291 = vmul.f32 %v2281, %v1002
        %v2292 = vmul.f32 %v2285, %v1006
        %v2293 = vmul.f32 %v2282, %v1002
        %v2294 = vmul.f32 %v2286, %v1006
        %s2295 = scalar_lea.vmem %s4, 160
        %v2296 = vld [vmem:[%s2295] sm:$0xff]
        %v2297 = vld [vmem:[%s2295 + $0x8] sm:$0xff]
        %v2298 = vld [vmem:[%s2295 + $0x10] sm:$0xff]
        %v2299 = vld [vmem:[%s2295 + $0x18] sm:$0xff]
        %v2301 = vsel %vm1601, %v2296, 0
        %v2304 = vsel %vm1601, %v2297, 0
        %v2307 = vsel %vm1601, %v2298, 0
        %v2310 = vsel %vm1601, %v2299, 0
        %2312 = vmatprep.subr.mxu0 %v2288
        %2313 = vmatpush1.msra.mxu0 %v2287
        %2314 = vmatprep.subr.mxu0 %v2290
        %2315 = vmatpush1.msra.mxu0 %v2289
        %2316 = vmatprep.subr.mxu0 %v2292
        %2317 = vmatpush1.msra.mxu0 %v2291
        %2318 = vmatprep.subr.mxu0 %v2294
        %2319 = vmatpush1.msra.mxu0 %v2293
        %2320 = vmatprep.subr.mxu0 0.0
        %2321 = vmatpush1.msra.mxu0 0.0
        %2322 = vmatprep.subr.mxu0 0.0
        %2323 = vmatpush1.msra.mxu0 0.0
        %2324 = vmatprep.subr.mxu0 0.0
        %2325 = vmatpush1.msra.mxu0 0.0
        %2326 = vmatprep.subr.mxu0 0.0
        %2327 = vmatpush1.msra.mxu0 0.0
        %2328 = vmatprep.subr.mxu0 0.0
        %2329 = vmatpush1.msra.mxu0 0.0
        %2330 = vmatprep.subr.mxu0 0.0
        %2331 = vmatpush1.msra.mxu0 0.0
        %2332 = vmatprep.subr.mxu0 0.0
        %2333 = vmatpush1.msra.mxu0 0.0
        %2334 = vmatprep.subr.mxu0 0.0
        %2335 = vmatpush1.msra.mxu0 0.0
        %2336 = vmatprep.subr.mxu0 0.0
        %2337 = vmatpush1.msra.mxu0 0.0
        %2338 = vmatprep.subr.mxu0 0.0
        %2339 = vmatpush1.msra.mxu0 0.0
        %2340 = vmatprep.subr.mxu0 0.0
        %2341 = vmatpush1.msra.mxu0 0.0
        %2342 = vmatprep.subr.mxu0 0.0
        %2343 = vmatpush1.msra.mxu0 0.0
        %2344 = vmatprep.subr.mxu0 0.0
        %2345 = vmatpush1.msra.mxu0 0.0
        %2346 = vmatprep.subr.mxu0 0.0
        %2347 = vmatpush1.msra.mxu0 0.0
        %2348 = vmatprep.subr.mxu0 0.0
        %2349 = vmatpush1.msra.mxu0 0.0
        %2350 = vmatprep.subr.mxu0 0.0
        %2351 = vmatpush1.msra.mxu0 0.0
        %2352 = vmatprep.subr.mxu0 0.0
        %2353 = vmatpush1.msra.mxu0 0.0
        %2354 = vmatprep.subr.mxu0 0.0
        %2355 = vmatpush1.msra.mxu0 0.0
        %2356 = vmatprep.subr.mxu0 0.0
        %2357 = vmatpush1.msra.mxu0 0.0
        %2358 = vmatprep.subr.mxu0 0.0
        %2359 = vmatpush1.msra.mxu0 0.0
        %2360 = vmatprep.subr.mxu0 0.0
        %2361 = vmatpush1.msra.mxu0 0.0
        %2362 = vmatprep.subr.mxu0 0.0
        %2363 = vmatpush1.msra.mxu0 0.0
        %2364 = vmatprep.subr.mxu0 0.0
        %2365 = vmatpush1.msra.mxu0 0.0
        %2366 = vmatprep.subr.mxu0 0.0
        %2367 = vmatpush1.msra.mxu0 0.0
        %2368 = vmatprep.subr.mxu0 0.0
        %2369 = vmatpush1.msra.mxu0 0.0
        %2370 = vmatprep.subr.mxu0 0.0
        %2371 = vmatpush1.msra.mxu0 0.0
        %2372 = vmatprep.subr.mxu0 0.0
        %2373 = vmatpush1.msra.mxu0 0.0
        %2374 = vmatprep.subr.mxu0 0.0
        %2375 = vmatpush1.msra.mxu0 0.0
        %2376 = vmatprep.mubr.f32.mxu0 0.0
        %2377 = vmatmul.mubr.f32.gmra.mrb[0].mxu0 %v2301
        %v2378 = vpop.f32.mrb[0].mxu0
        %v2379 = vadd.f32 0.0, %v2378
        %v2380 = vpop.f32.mrb[0].mxu0
        %v2381 = vadd.f32 0.0, %v2380
        %2382 = vmatprep.mubr.f32.mxu0 0.0
        %2383 = vmatmul.mubr.f32.gmra.mrb[0].mxu0 %v2304
        %v2384 = vpop.f32.mrb[0].mxu0
        %v2385 = vadd.f32 0.0, %v2384
        %v2386 = vpop.f32.mrb[0].mxu0
        %v2387 = vadd.f32 0.0, %v2386
        %2388 = vmatprep.mubr.f32.mxu0 0.0
        %2389 = vmatmul.mubr.f32.gmra.mrb[0].mxu0 %v2307
        %v2390 = vpop.f32.mrb[0].mxu0
        %v2391 = vadd.f32 0.0, %v2390
        %v2392 = vpop.f32.mrb[0].mxu0
        %v2393 = vadd.f32 0.0, %v2392
        %2394 = vmatprep.mubr.f32.mxu0 0.0
        %2395 = vmatmul.mubr.f32.gmra.mrb[0].mxu0 %v2310
        %v2396 = vpop.f32.mrb[0].mxu0
        %v2397 = vadd.f32 0.0, %v2396
        %v2398 = vpop.f32.mrb[0].mxu0
        %v2399 = vadd.f32 0.0, %v2398
        %2400 = vdwg.mxu0
        %v2401 = vadd.f32 %v2255, %v2379
        %v2402 = vadd.f32 %v2256, %v2381
        %v2403 = vadd.f32 %v2257, %v2385
        %v2404 = vadd.f32 %v2258, %v2387
        %v2405 = vadd.f32 %v2259, %v2391
        %v2406 = vadd.f32 %v2260, %v2393
        %v2407 = vadd.f32 %v2261, %v2397
        %v2408 = vadd.f32 %v2262, %v2399
        %2409 = vrot.lane.b32.xlu0 %v1533, 113
        %v2410 = vpop.permute.xlu0 %2409
        %2411 = vrot.lane.b32.xlu0 %v1535, 113
        %v2412 = vpop.permute.xlu0 %2411
        %2413 = vrot.lane.b32.xlu0 %v1537, 113
        %v2414 = vpop.permute.xlu0 %2413
        %2415 = vrot.lane.b32.xlu0 %v1539, 113
        %v2416 = vpop.permute.xlu0 %2415
        %2417 = vrot.lane.b32.xlu0 %v1534, 113
        %v2418 = vpop.permute.xlu0 %2417
        %2419 = vrot.lane.b32.xlu0 %v1536, 113
        %v2420 = vpop.permute.xlu0 %2419
        %2421 = vrot.lane.b32.xlu0 %v1538, 113
        %v2422 = vpop.permute.xlu0 %2421
        %2423 = vrot.lane.b32.xlu0 %v1540, 113
        %v2424 = vpop.permute.xlu0 %2423
        %v2425 = vsel %vm1129, %v2410, %v2418
        %v2426 = vsel %vm1129, %v2412, %v2420
        %v2427 = vsel %vm1129, %v2414, %v2422
        %v2428 = vsel %vm1129, %v2416, %v2424
        %v2429 = vsel %vm1129, %v2418, %v2410
        %v2430 = vsel %vm1129, %v2420, %v2412
        %v2431 = vsel %vm1129, %v2422, %v2414
        %v2432 = vsel %vm1129, %v2424, %v2416
        %v2433 = vmul.f32 %v2425, %v1138
        %v2434 = vmul.f32 %v2429, %v1142
        %v2435 = vmul.f32 %v2426, %v1138
        %v2436 = vmul.f32 %v2430, %v1142
        %v2437 = vmul.f32 %v2427, %v1138
        %v2438 = vmul.f32 %v2431, %v1142
        %v2439 = vmul.f32 %v2428, %v1138
        %v2440 = vmul.f32 %v2432, %v1142
        %s2441 = scalar_lea.vmem %s4, 192
        %v2442 = vld [vmem:[%s2441] sm:$0xff]
        %v2443 = vld [vmem:[%s2441 + $0x8] sm:$0xff]
        %v2444 = vld [vmem:[%s2441 + $0x10] sm:$0xff]
        %v2445 = vld [vmem:[%s2441 + $0x18] sm:$0xff]
        %v2447 = vsel %vm1601, %v2442, 0
        %v2450 = vsel %vm1601, %v2443, 0
        %v2453 = vsel %vm1601, %v2444, 0
        %v2456 = vsel %vm1601, %v2445, 0
        %2458 = vmatprep.subr.mxu0 %v2434
        %2459 = vmatpush1.msra.mxu0 %v2433
        %2460 = vmatprep.subr.mxu0 %v2436
        %2461 = vmatpush1.msra.mxu0 %v2435
        %2462 = vmatprep.subr.mxu0 %v2438
        %2463 = vmatpush1.msra.mxu0 %v2437
        %2464 = vmatprep.subr.mxu0 %v2440
        %2465 = vmatpush1.msra.mxu0 %v2439
        %2466 = vmatprep.subr.mxu0 0.0
        %2467 = vmatpush1.msra.mxu0 0.0
        %2468 = vmatprep.subr.mxu0 0.0
        %2469 = vmatpush1.msra.mxu0 0.0
        %2470 = vmatprep.subr.mxu0 0.0
        %2471 = vmatpush1.msra.mxu0 0.0
        %2472 = vmatprep.subr.mxu0 0.0
        %2473 = vmatpush1.msra.mxu0 0.0
        %2474 = vmatprep.subr.mxu0 0.0
        %2475 = vmatpush1.msra.mxu0 0.0
        %2476 = vmatprep.subr.mxu0 0.0
        %2477 = vmatpush1.msra.mxu0 0.0
        %2478 = vmatprep.subr.mxu0 0.0
        %2479 = vmatpush1.msra.mxu0 0.0
        %2480 = vmatprep.subr.mxu0 0.0
        %2481 = vmatpush1.msra.mxu0 0.0
        %2482 = vmatprep.subr.mxu0 0.0
        %2483 = vmatpush1.msra.mxu0 0.0
        %2484 = vmatprep.subr.mxu0 0.0
        %2485 = vmatpush1.msra.mxu0 0.0
        %2486 = vmatprep.subr.mxu0 0.0
        %2487 = vmatpush1.msra.mxu0 0.0
        %2488 = vmatprep.subr.mxu0 0.0
        %2489 = vmatpush1.msra.mxu0 0.0
        %2490 = vmatprep.subr.mxu0 0.0
        %2491 = vmatpush1.msra.mxu0 0.0
        %2492 = vmatprep.subr.mxu0 0.0
        %2493 = vmatpush1.msra.mxu0 0.0
        %2494 = vmatprep.subr.mxu0 0.0
        %2495 = vmatpush1.msra.mxu0 0.0
        %2496 = vmatprep.subr.mxu0 0.0
        %2497 = vmatpush1.msra.mxu0 0.0
        %2498 = vmatprep.subr.mxu0 0.0
        %2499 = vmatpush1.msra.mxu0 0.0
        %2500 = vmatprep.subr.mxu0 0.0
        %2501 = vmatpush1.msra.mxu0 0.0
        %2502 = vmatprep.subr.mxu0 0.0
        %2503 = vmatpush1.msra.mxu0 0.0
        %2504 = vmatprep.subr.mxu0 0.0
        %2505 = vmatpush1.msra.mxu0 0.0
        %2506 = vmatprep.subr.mxu0 0.0
        %2507 = vmatpush1.msra.mxu0 0.0
        %2508 = vmatprep.subr.mxu0 0.0
        %2509 = vmatpush1.msra.mxu0 0.0
        %2510 = vmatprep.subr.mxu0 0.0
        %2511 = vmatpush1.msra.mxu0 0.0
        %2512 = vmatprep.subr.mxu0 0.0
        %2513 = vmatpush1.msra.mxu0 0.0
        %2514 = vmatprep.subr.mxu0 0.0
        %2515 = vmatpush1.msra.mxu0 0.0
        %2516 = vmatprep.subr.mxu0 0.0
        %2517 = vmatpush1.msra.mxu0 0.0
        %2518 = vmatprep.subr.mxu0 0.0
        %2519 = vmatpush1.msra.mxu0 0.0
        %2520 = vmatprep.subr.mxu0 0.0
        %2521 = vmatpush1.msra.mxu0 0.0
        %2522 = vmatprep.mubr.f32.mxu0 0.0
        %2523 = vmatmul.mubr.f32.gmra.mrb[0].mxu0 %v2447
        %v2524 = vpop.f32.mrb[0].mxu0
        %v2525 = vadd.f32 0.0, %v2524
        %v2526 = vpop.f32.mrb[0].mxu0
        %v2527 = vadd.f32 0.0, %v2526
        %2528 = vmatprep.mubr.f32.mxu0 0.0
        %2529 = vmatmul.mubr.f32.gmra.mrb[0].mxu0 %v2450
        %v2530 = vpop.f32.mrb[0].mxu0
        %v2531 = vadd.f32 0.0, %v2530
        %v2532 = vpop.f32.mrb[0].mxu0
        %v2533 = vadd.f32 0.0, %v2532
        %2534 = vmatprep.mubr.f32.mxu0 0.0
        %2535 = vmatmul.mubr.f32.gmra.mrb[0].mxu0 %v2453
        %v2536 = vpop.f32.mrb[0].mxu0
        %v2537 = vadd.f32 0.0, %v2536
        %v2538 = vpop.f32.mrb[0].mxu0
        %v2539 = vadd.f32 0.0, %v2538
        %2540 = vmatprep.mubr.f32.mxu0 0.0
        %2541 = vmatmul.mubr.f32.gmra.mrb[0].mxu0 %v2456
        %v2542 = vpop.f32.mrb[0].mxu0
        %v2543 = vadd.f32 0.0, %v2542
        %v2544 = vpop.f32.mrb[0].mxu0
        %v2545 = vadd.f32 0.0, %v2544
        %2546 = vdwg.mxu0
        %v2547 = vadd.f32 %v2401, %v2525
        %v2548 = vadd.f32 %v2402, %v2527
        %v2549 = vadd.f32 %v2403, %v2531
        %v2550 = vadd.f32 %v2404, %v2533
        %v2551 = vadd.f32 %v2405, %v2537
        %v2552 = vadd.f32 %v2406, %v2539
        %v2553 = vadd.f32 %v2407, %v2543
        %v2554 = vadd.f32 %v2408, %v2545
        %2555 = vrot.lane.b32.xlu0 %v1533, 112
        %v2556 = vpop.permute.xlu0 %2555
        %2557 = vrot.lane.b32.xlu0 %v1535, 112
        %v2558 = vpop.permute.xlu0 %2557
        %2559 = vrot.lane.b32.xlu0 %v1537, 112
        %v2560 = vpop.permute.xlu0 %2559
        %2561 = vrot.lane.b32.xlu0 %v1539, 112
        %v2562 = vpop.permute.xlu0 %2561
        %2563 = vrot.lane.b32.xlu0 %v1534, 112
        %v2564 = vpop.permute.xlu0 %2563
        %2565 = vrot.lane.b32.xlu0 %v1536, 112
        %v2566 = vpop.permute.xlu0 %2565
        %2567 = vrot.lane.b32.xlu0 %v1538, 112
        %v2568 = vpop.permute.xlu0 %2567
        %2569 = vrot.lane.b32.xlu0 %v1540, 112
        %v2570 = vpop.permute.xlu0 %2569
        %v2571 = vsel %vm1265, %v2556, %v2564
        %v2572 = vsel %vm1265, %v2558, %v2566
        %v2573 = vsel %vm1265, %v2560, %v2568
        %v2574 = vsel %vm1265, %v2562, %v2570
        %v2575 = vsel %vm1265, %v2564, %v2556
        %v2576 = vsel %vm1265, %v2566, %v2558
        %v2577 = vsel %vm1265, %v2568, %v2560
        %v2578 = vsel %vm1265, %v2570, %v2562
        %v2579 = vmul.f32 %v2571, %v1274
        %v2580 = vmul.f32 %v2575, %v1278
        %v2581 = vmul.f32 %v2572, %v1274
        %v2582 = vmul.f32 %v2576, %v1278
        %v2583 = vmul.f32 %v2573, %v1274
        %v2584 = vmul.f32 %v2577, %v1278
        %v2585 = vmul.f32 %v2574, %v1274
        %v2586 = vmul.f32 %v2578, %v1278
        %s2587 = scalar_lea.vmem %s4, 224
        %v2588 = vld [vmem:[%s2587] sm:$0xff]
        %v2589 = vld [vmem:[%s2587 + $0x8] sm:$0xff]
        %v2590 = vld [vmem:[%s2587 + $0x10] sm:$0xff]
        %v2591 = vld [vmem:[%s2587 + $0x18] sm:$0xff]
        %v2593 = vsel %vm1601, %v2588, 0
        %v2596 = vsel %vm1601, %v2589, 0
        %v2599 = vsel %vm1601, %v2590, 0
        %v2602 = vsel %vm1601, %v2591, 0
        %2604 = vmatprep.subr.mxu0 %v2580
        %2605 = vmatpush1.msra.mxu0 %v2579
        %2606 = vmatprep.subr.mxu0 %v2582
        %2607 = vmatpush1.msra.mxu0 %v2581
        %2608 = vmatprep.subr.mxu0 %v2584
        %2609 = vmatpush1.msra.mxu0 %v2583
        %2610 = vmatprep.subr.mxu0 %v2586
        %2611 = vmatpush1.msra.mxu0 %v2585
        %2612 = vmatprep.subr.mxu0 0.0
        %2613 = vmatpush1.msra.mxu0 0.0
        %2614 = vmatprep.subr.mxu0 0.0
        %2615 = vmatpush1.msra.mxu0 0.0
        %2616 = vmatprep.subr.mxu0 0.0
        %2617 = vmatpush1.msra.mxu0 0.0
        %2618 = vmatprep.subr.mxu0 0.0
        %2619 = vmatpush1.msra.mxu0 0.0
        %2620 = vmatprep.subr.mxu0 0.0
        %2621 = vmatpush1.msra.mxu0 0.0
        %2622 = vmatprep.subr.mxu0 0.0
        %2623 = vmatpush1.msra.mxu0 0.0
        %2624 = vmatprep.subr.mxu0 0.0
        %2625 = vmatpush1.msra.mxu0 0.0
        %2626 = vmatprep.subr.mxu0 0.0
        %2627 = vmatpush1.msra.mxu0 0.0
        %2628 = vmatprep.subr.mxu0 0.0
        %2629 = vmatpush1.msra.mxu0 0.0
        %2630 = vmatprep.subr.mxu0 0.0
        %2631 = vmatpush1.msra.mxu0 0.0
        %2632 = vmatprep.subr.mxu0 0.0
        %2633 = vmatpush1.msra.mxu0 0.0
        %2634 = vmatprep.subr.mxu0 0.0
        %2635 = vmatpush1.msra.mxu0 0.0
        %2636 = vmatprep.subr.mxu0 0.0
        %2637 = vmatpush1.msra.mxu0 0.0
        %2638 = vmatprep.subr.mxu0 0.0
        %2639 = vmatpush1.msra.mxu0 0.0
        %2640 = vmatprep.subr.mxu0 0.0
        %2641 = vmatpush1.msra.mxu0 0.0
        %2642 = vmatprep.subr.mxu0 0.0
        %2643 = vmatpush1.msra.mxu0 0.0
        %2644 = vmatprep.subr.mxu0 0.0
        %2645 = vmatpush1.msra.mxu0 0.0
        %2646 = vmatprep.subr.mxu0 0.0
        %2647 = vmatpush1.msra.mxu0 0.0
        %2648 = vmatprep.subr.mxu0 0.0
        %2649 = vmatpush1.msra.mxu0 0.0
        %2650 = vmatprep.subr.mxu0 0.0
        %2651 = vmatpush1.msra.mxu0 0.0
        %2652 = vmatprep.subr.mxu0 0.0
        %2653 = vmatpush1.msra.mxu0 0.0
        %2654 = vmatprep.subr.mxu0 0.0
        %2655 = vmatpush1.msra.mxu0 0.0
        %2656 = vmatprep.subr.mxu0 0.0
        %2657 = vmatpush1.msra.mxu0 0.0
        %2658 = vmatprep.subr.mxu0 0.0
        %2659 = vmatpush1.msra.mxu0 0.0
        %2660 = vmatprep.subr.mxu0 0.0
        %2661 = vmatpush1.msra.mxu0 0.0
        %2662 = vmatprep.subr.mxu0 0.0
        %2663 = vmatpush1.msra.mxu0 0.0
        %2664 = vmatprep.subr.mxu0 0.0
        %2665 = vmatpush1.msra.mxu0 0.0
        %2666 = vmatprep.subr.mxu0 0.0
        %2667 = vmatpush1.msra.mxu0 0.0
        %2668 = vmatprep.mubr.f32.mxu0 0.0
        %2669 = vmatmul.mubr.f32.gmra.mrb[0].mxu0 %v2593
        %v2670 = vpop.f32.mrb[0].mxu0
        %v2671 = vadd.f32 0.0, %v2670
        %v2672 = vpop.f32.mrb[0].mxu0
        %v2673 = vadd.f32 0.0, %v2672
        %2674 = vmatprep.mubr.f32.mxu0 0.0
        %2675 = vmatmul.mubr.f32.gmra.mrb[0].mxu0 %v2596
        %v2676 = vpop.f32.mrb[0].mxu0
        %v2677 = vadd.f32 0.0, %v2676
        %v2678 = vpop.f32.mrb[0].mxu0
        %v2679 = vadd.f32 0.0, %v2678
        %2680 = vmatprep.mubr.f32.mxu0 0.0
        %2681 = vmatmul.mubr.f32.gmra.mrb[0].mxu0 %v2599
        %v2682 = vpop.f32.mrb[0].mxu0
        %v2683 = vadd.f32 0.0, %v2682
        %v2684 = vpop.f32.mrb[0].mxu0
        %v2685 = vadd.f32 0.0, %v2684
        %2686 = vmatprep.mubr.f32.mxu0 0.0
        %2687 = vmatmul.mubr.f32.gmra.mrb[0].mxu0 %v2602
        %v2688 = vpop.f32.mrb[0].mxu0
        %v2689 = vadd.f32 0.0, %v2688
        %v2690 = vpop.f32.mrb[0].mxu0
        %v2691 = vadd.f32 0.0, %v2690
        %2692 = vdwg.mxu0
        %v2693 = vadd.f32 %v2547, %v2671
        %v2694 = vadd.f32 %v2548, %v2673
        %v2695 = vadd.f32 %v2549, %v2677
        %v2696 = vadd.f32 %v2550, %v2679
        %v2697 = vadd.f32 %v2551, %v2683
        %v2698 = vadd.f32 %v2552, %v2685
        %v2699 = vadd.f32 %v2553, %v2689
        %v2700 = vadd.f32 %v2554, %v2691
        %2701 = vrot.lane.b32.xlu0 %v1533, 111
        %v2702 = vpop.permute.xlu0 %2701
        %2703 = vrot.lane.b32.xlu0 %v1535, 111
        %v2704 = vpop.permute.xlu0 %2703
        %2705 = vrot.lane.b32.xlu0 %v1537, 111
        %v2706 = vpop.permute.xlu0 %2705
        %2707 = vrot.lane.b32.xlu0 %v1539, 111
        %v2708 = vpop.permute.xlu0 %2707
        %2709 = vrot.lane.b32.xlu0 %v1534, 111
        %v2710 = vpop.permute.xlu0 %2709
        %2711 = vrot.lane.b32.xlu0 %v1536, 111
        %v2712 = vpop.permute.xlu0 %2711
        %2713 = vrot.lane.b32.xlu0 %v1538, 111
        %v2714 = vpop.permute.xlu0 %2713
        %2715 = vrot.lane.b32.xlu0 %v1540, 111
        %v2716 = vpop.permute.xlu0 %2715
        %v2717 = vsel %vm1401, %v2702, %v2710
        %v2718 = vsel %vm1401, %v2704, %v2712
        %v2719 = vsel %vm1401, %v2706, %v2714
        %v2720 = vsel %vm1401, %v2708, %v2716
        %v2721 = vsel %vm1401, %v2710, %v2702
        %v2722 = vsel %vm1401, %v2712, %v2704
        %v2723 = vsel %vm1401, %v2714, %v2706
        %v2724 = vsel %vm1401, %v2716, %v2708
        %v2725 = vmul.f32 %v2717, %v1410
        %v2726 = vmul.f32 %v2721, %v1414
        %v2727 = vmul.f32 %v2718, %v1410
        %v2728 = vmul.f32 %v2722, %v1414
        %v2729 = vmul.f32 %v2719, %v1410
        %v2730 = vmul.f32 %v2723, %v1414
        %v2731 = vmul.f32 %v2720, %v1410
        %v2732 = vmul.f32 %v2724, %v1414
        %s2733 = scalar_lea.vmem %s4, 256
        %v2734 = vld [vmem:[%s2733] sm:$0xff]
        %v2735 = vld [vmem:[%s2733 + $0x8] sm:$0xff]
        %v2736 = vld [vmem:[%s2733 + $0x10] sm:$0xff]
        %v2737 = vld [vmem:[%s2733 + $0x18] sm:$0xff]
        %v2739 = vsel %vm1601, %v2734, 0
        %v2742 = vsel %vm1601, %v2735, 0
        %v2745 = vsel %vm1601, %v2736, 0
        %v2748 = vsel %vm1601, %v2737, 0
        %2750 = vmatprep.subr.mxu0 %v2726
        %2751 = vmatpush1.msra.mxu0 %v2725
        %2752 = vmatprep.subr.mxu0 %v2728
        %2753 = vmatpush1.msra.mxu0 %v2727
        %2754 = vmatprep.subr.mxu0 %v2730
        %2755 = vmatpush1.msra.mxu0 %v2729
        %2756 = vmatprep.subr.mxu0 %v2732
        %2757 = vmatpush1.msra.mxu0 %v2731
        %2758 = vmatprep.subr.mxu0 0.0
        %2759 = vmatpush1.msra.mxu0 0.0
        %2760 = vmatprep.subr.mxu0 0.0
        %2761 = vmatpush1.msra.mxu0 0.0
        %2762 = vmatprep.subr.mxu0 0.0
        %2763 = vmatpush1.msra.mxu0 0.0
        %2764 = vmatprep.subr.mxu0 0.0
        %2765 = vmatpush1.msra.mxu0 0.0
        %2766 = vmatprep.subr.mxu0 0.0
        %2767 = vmatpush1.msra.mxu0 0.0
        %2768 = vmatprep.subr.mxu0 0.0
        %2769 = vmatpush1.msra.mxu0 0.0
        %2770 = vmatprep.subr.mxu0 0.0
        %2771 = vmatpush1.msra.mxu0 0.0
        %2772 = vmatprep.subr.mxu0 0.0
        %2773 = vmatpush1.msra.mxu0 0.0
        %2774 = vmatprep.subr.mxu0 0.0
        %2775 = vmatpush1.msra.mxu0 0.0
        %2776 = vmatprep.subr.mxu0 0.0
        %2777 = vmatpush1.msra.mxu0 0.0
        %2778 = vmatprep.subr.mxu0 0.0
        %2779 = vmatpush1.msra.mxu0 0.0
        %2780 = vmatprep.subr.mxu0 0.0
        %2781 = vmatpush1.msra.mxu0 0.0
        %2782 = vmatprep.subr.mxu0 0.0
        %2783 = vmatpush1.msra.mxu0 0.0
        %2784 = vmatprep.subr.mxu0 0.0
        %2785 = vmatpush1.msra.mxu0 0.0
        %2786 = vmatprep.subr.mxu0 0.0
        %2787 = vmatpush1.msra.mxu0 0.0
        %2788 = vmatprep.subr.mxu0 0.0
        %2789 = vmatpush1.msra.mxu0 0.0
        %2790 = vmatprep.subr.mxu0 0.0
        %2791 = vmatpush1.msra.mxu0 0.0
        %2792 = vmatprep.subr.mxu0 0.0
        %2793 = vmatpush1.msra.mxu0 0.0
        %2794 = vmatprep.subr.mxu0 0.0
        %2795 = vmatpush1.msra.mxu0 0.0
        %2796 = vmatprep.subr.mxu0 0.0
        %2797 = vmatpush1.msra.mxu0 0.0
        %2798 = vmatprep.subr.mxu0 0.0
        %2799 = vmatpush1.msra.mxu0 0.0
        %2800 = vmatprep.subr.mxu0 0.0
        %2801 = vmatpush1.msra.mxu0 0.0
        %2802 = vmatprep.subr.mxu0 0.0
        %2803 = vmatpush1.msra.mxu0 0.0
        %2804 = vmatprep.subr.mxu0 0.0
        %2805 = vmatpush1.msra.mxu0 0.0
        %2806 = vmatprep.subr.mxu0 0.0
        %2807 = vmatpush1.msra.mxu0 0.0
        %2808 = vmatprep.subr.mxu0 0.0
        %2809 = vmatpush1.msra.mxu0 0.0
        %2810 = vmatprep.subr.mxu0 0.0
        %2811 = vmatpush1.msra.mxu0 0.0
        %2812 = vmatprep.subr.mxu0 0.0
        %2813 = vmatpush1.msra.mxu0 0.0
        %2814 = vmatprep.mubr.f32.mxu0 0.0
        %2815 = vmatmul.mubr.f32.gmra.mrb[0].mxu0 %v2739
        %v2816 = vpop.f32.mrb[0].mxu0
        %v2817 = vadd.f32 0.0, %v2816
        %v2818 = vpop.f32.mrb[0].mxu0
        %v2819 = vadd.f32 0.0, %v2818
        %2820 = vmatprep.mubr.f32.mxu0 0.0
        %2821 = vmatmul.mubr.f32.gmra.mrb[0].mxu0 %v2742
        %v2822 = vpop.f32.mrb[0].mxu0
        %v2823 = vadd.f32 0.0, %v2822
        %v2824 = vpop.f32.mrb[0].mxu0
        %v2825 = vadd.f32 0.0, %v2824
        %2826 = vmatprep.mubr.f32.mxu0 0.0
        %2827 = vmatmul.mubr.f32.gmra.mrb[0].mxu0 %v2745
        %v2828 = vpop.f32.mrb[0].mxu0
        %v2829 = vadd.f32 0.0, %v2828
        %v2830 = vpop.f32.mrb[0].mxu0
        %v2831 = vadd.f32 0.0, %v2830
        %2832 = vmatprep.mubr.f32.mxu0 0.0
        %2833 = vmatmul.mubr.f32.gmra.mrb[0].mxu0 %v2748
        %v2834 = vpop.f32.mrb[0].mxu0
        %v2835 = vadd.f32 0.0, %v2834
        %v2836 = vpop.f32.mrb[0].mxu0
        %v2837 = vadd.f32 0.0, %v2836
        %2838 = vdwg.mxu0
        %v2839 = vadd.f32 %v2693, %v2817
        %v2840 = vadd.f32 %v2694, %v2819
        %v2841 = vadd.f32 %v2695, %v2823
        %v2842 = vadd.f32 %v2696, %v2825
        %v2843 = vadd.f32 %v2697, %v2829
        %v2844 = vadd.f32 %v2698, %v2831
        %v2845 = vadd.f32 %v2699, %v2835
        %v2846 = vadd.f32 %v2700, %v2837
        %v2847 = vmax.f32 %v2839, 0.0
        %v2848 = vmax.f32 %v2840, 0.0
        %v2849 = vmax.f32 %v2841, 0.0
        %v2850 = vmax.f32 %v2842, 0.0
        %v2851 = vmax.f32 %v2843, 0.0
        %v2852 = vmax.f32 %v2844, 0.0
        %v2853 = vmax.f32 %v2845, 0.0
        %v2854 = vmax.f32 %v2846, 0.0
        %v2855 = vld [vmem:[%s6] sm:$0xff]
        %v2856 = vld [vmem:[%s6 + $0x8] sm:$0xff]
        %v2857 = vld [vmem:[%s6 + $0x10] sm:$0xff]
        %v2858 = vld [vmem:[%s6 + $0x18] sm:$0xff]
        %v2859 = vld [vmem:[%s7] sm:$0xff]
        %v2860 = vld [vmem:[%s7 + $0x8] sm:$0xff]
        %v2861 = vld [vmem:[%s7 + $0x10] sm:$0xff]
        %v2862 = vld [vmem:[%s7 + $0x18] sm:$0xff]
        %2864 = vset.pattern.permute.xlu0 0
        %2865 = vperm.xlu0 %2864, %v2859
        %v2866 = vpop.permute.xlu0 %2865
        %2869 = vset.pattern.permute.xlu0 0
        %2870 = vperm.xlu0 %2869, %v2860
        %v2871 = vpop.permute.xlu0 %2870
        %2874 = vset.pattern.permute.xlu0 0
        %2875 = vperm.xlu0 %2874, %v2861
        %v2876 = vpop.permute.xlu0 %2875
        %2879 = vset.pattern.permute.xlu0 0
        %2880 = vperm.xlu0 %2879, %v2862
        %v2881 = vpop.permute.xlu0 %2880
        %v2884 = vsel %vm1601, %v2855, 0
        %v2887 = vsel %vm1601, %v2856, 0
        %v2890 = vsel %vm1601, %v2857, 0
        %v2893 = vsel %vm1601, %v2858, 0
        %2895 = vmatprep.subr.mxu0 %v2848
        %2896 = vmatpush1.msra.mxu0 %v2847
        %2897 = vmatprep.subr.mxu0 %v2850
        %2898 = vmatpush1.msra.mxu0 %v2849
        %2899 = vmatprep.subr.mxu0 %v2852
        %2900 = vmatpush1.msra.mxu0 %v2851
        %2901 = vmatprep.subr.mxu0 %v2854
        %2902 = vmatpush1.msra.mxu0 %v2853
        %2903 = vmatprep.subr.mxu0 0.0
        %2904 = vmatpush1.msra.mxu0 0.0
        %2905 = vmatprep.subr.mxu0 0.0
        %2906 = vmatpush1.msra.mxu0 0.0
        %2907 = vmatprep.subr.mxu0 0.0
        %2908 = vmatpush1.msra.mxu0 0.0
        %2909 = vmatprep.subr.mxu0 0.0
        %2910 = vmatpush1.msra.mxu0 0.0
        %2911 = vmatprep.subr.mxu0 0.0
        %2912 = vmatpush1.msra.mxu0 0.0
        %2913 = vmatprep.subr.mxu0 0.0
        %2914 = vmatpush1.msra.mxu0 0.0
        %2915 = vmatprep.subr.mxu0 0.0
        %2916 = vmatpush1.msra.mxu0 0.0
        %2917 = vmatprep.subr.mxu0 0.0
        %2918 = vmatpush1.msra.mxu0 0.0
        %2919 = vmatprep.subr.mxu0 0.0
        %2920 = vmatpush1.msra.mxu0 0.0
        %2921 = vmatprep.subr.mxu0 0.0
        %2922 = vmatpush1.msra.mxu0 0.0
        %2923 = vmatprep.subr.mxu0 0.0
        %2924 = vmatpush1.msra.mxu0 0.0
        %2925 = vmatprep.subr.mxu0 0.0
        %2926 = vmatpush1.msra.mxu0 0.0
        %2927 = vmatprep.subr.mxu0 0.0
        %2928 = vmatpush1.msra.mxu0 0.0
        %2929 = vmatprep.subr.mxu0 0.0
        %2930 = vmatpush1.msra.mxu0 0.0
        %2931 = vmatprep.subr.mxu0 0.0
        %2932 = vmatpush1.msra.mxu0 0.0
        %2933 = vmatprep.subr.mxu0 0.0
        %2934 = vmatpush1.msra.mxu0 0.0
        %2935 = vmatprep.subr.mxu0 0.0
        %2936 = vmatpush1.msra.mxu0 0.0
        %2937 = vmatprep.subr.mxu0 0.0
        %2938 = vmatpush1.msra.mxu0 0.0
        %2939 = vmatprep.subr.mxu0 0.0
        %2940 = vmatpush1.msra.mxu0 0.0
        %2941 = vmatprep.subr.mxu0 0.0
        %2942 = vmatpush1.msra.mxu0 0.0
        %2943 = vmatprep.subr.mxu0 0.0
        %2944 = vmatpush1.msra.mxu0 0.0
        %2945 = vmatprep.subr.mxu0 0.0
        %2946 = vmatpush1.msra.mxu0 0.0
        %2947 = vmatprep.subr.mxu0 0.0
        %2948 = vmatpush1.msra.mxu0 0.0
        %2949 = vmatprep.subr.mxu0 0.0
        %2950 = vmatpush1.msra.mxu0 0.0
        %2951 = vmatprep.subr.mxu0 0.0
        %2952 = vmatpush1.msra.mxu0 0.0
        %2953 = vmatprep.subr.mxu0 0.0
        %2954 = vmatpush1.msra.mxu0 0.0
        %2955 = vmatprep.subr.mxu0 0.0
        %2956 = vmatpush1.msra.mxu0 0.0
        %2957 = vmatprep.subr.mxu0 0.0
        %2958 = vmatpush1.msra.mxu0 0.0
        %2959 = vmatprep.mubr.f32.mxu0 0.0
        %2960 = vmatmul.mubr.f32.gmra.mrb[0].mxu0 %v2884
        %v2961 = vpop.f32.mrb[0].mxu0
        %v2962 = vadd.f32 %v2866, %v2961
        %v2963 = vpop.f32.mrb[0].mxu0
        %v2964 = vadd.f32 %v2866, %v2963
        %2965 = vmatprep.mubr.f32.mxu0 0.0
        %2966 = vmatmul.mubr.f32.gmra.mrb[0].mxu0 %v2887
        %v2967 = vpop.f32.mrb[0].mxu0
        %v2968 = vadd.f32 %v2871, %v2967
        %v2969 = vpop.f32.mrb[0].mxu0
        %v2970 = vadd.f32 %v2871, %v2969
        %2971 = vmatprep.mubr.f32.mxu0 0.0
        %2972 = vmatmul.mubr.f32.gmra.mrb[0].mxu0 %v2890
        %v2973 = vpop.f32.mrb[0].mxu0
        %v2974 = vadd.f32 %v2876, %v2973
        %v2975 = vpop.f32.mrb[0].mxu0
        %v2976 = vadd.f32 %v2876, %v2975
        %2977 = vmatprep.mubr.f32.mxu0 0.0
        %2978 = vmatmul.mubr.f32.gmra.mrb[0].mxu0 %v2893
        %v2979 = vpop.f32.mrb[0].mxu0
        %v2980 = vadd.f32 %v2881, %v2979
        %v2981 = vpop.f32.mrb[0].mxu0
        %v2982 = vadd.f32 %v2881, %v2981
        %2983 = vdwg.mxu0
        %2984 = vst [vmem:[%s298] sm:$0xff] %v2962
        %2985 = vst [vmem:[%s298 + $0x8] sm:$0xff] %v2964
        %2986 = vst [vmem:[%s298 + $0x10] sm:$0xff] %v2968
        %2987 = vst [vmem:[%s298 + $0x18] sm:$0xff] %v2970
        %2988 = vst [vmem:[%s298 + $0x20] sm:$0xff] %v2974
        %2989 = vst [vmem:[%s298 + $0x28] sm:$0xff] %v2976
        %2990 = vst [vmem:[%s298 + $0x30] sm:$0xff] %v2980
        %2991 = vst [vmem:[%s298 + $0x38] sm:$0xff] %v2982
        %s2992 = sand.u32 %s203, 1
        %s2993 = scalar_lea.sflag [#allocation3], %s2992
        %s2994 = sand.u32 %s203, 1
        %s2995 = smul.addr %s2994, 64
        %s2996 = scalar_lea.vmem [#allocation2], %s2995
        // Predicated region
        $region53: #{tpu_custom_call.1} parent=51 // pred_check
          %p2997 = pneg %p213
        $region54: #{tpu_custom_call.1} parent=51 // pred_check_branch
          %2999 = sbr.rel (%p2997) target = $region56
        $region55: #{tpu_custom_call.1} parent=51 // pred_region
          %s3001 = ssub.s32 1024, 1024
          %3002 = vsyncadd %s2993, %s3001
          %s3003 = smul.addr %s22, 8
          %s3004 = smul.addr %s3003, 128
          %s3005 = scalar_lea.hbm %s8, %s3004
          %s3006 = sshll.u32 %s2996, 4
          %s3007 = int_to_ptr.vmem [resolvable:$true] %s3006
          %3012 = dma.vmem_to_hbm [thread:$0]  %s3007, 1024, %s3005, %s2993, 256, 256, 16
        $region56: #{tpu_custom_call.1} parent=51 // pred_fallthru
          _
      $region52: #{tpu_custom_call.1} parent=5 // pred_fallthru
        _
      %p3013 = scmp.le.s32.totalorder 2, %s17
      // Predicated region
      $region57: #{tpu_custom_call.1} parent=5 // pred_check
        %p3014 = pneg %p3013
      $region58: #{tpu_custom_call.1} parent=5 // pred_check_branch
        %3016 = sbr.rel (%p3014) target = $region60
      $region59: #{tpu_custom_call.1} parent=5 // pred_region
        %s3017 = ssub.s32 %s17, 2
        // Predicated region
        $region61: #{tpu_custom_call.1} parent=59 // pred_check
          %p3018 = pneg %p219
        $region62: #{tpu_custom_call.1} parent=59 // pred_check_branch
          %3020 = sbr.rel (%p3018) target = $region64
        $region63: #{tpu_custom_call.1} parent=59 // pred_region
          %s3021 = sand.u32 %s204, 1
          %s3022 = scalar_lea.sflag [#allocation3], %s3021
          %s3023 = sand.u32 %s204, 1
          %s3024 = smul.addr %s3023, 64
          %s3025 = scalar_lea.vmem [#allocation2], %s3024
          %3026 = dma.done %s3022, 1024
        $region64: #{tpu_custom_call.1} parent=59 // pred_fallthru
          _
      $region60: #{tpu_custom_call.1} parent=5 // pred_fallthru
        _
    $region6: #{tpu_custom_call.1} parent=1 // loop_footer
      %s21 = sadd.s32 1, %s17
    $region7: #{tpu_custom_call.1} parent=1 // loop_footer_branch
      %16 = sbr.rel target = $region3
    $region8: #{tpu_custom_call.1} parent=1 // loop_exit
      _
    %3027 = vsyncpa [#allocation3], 1
    %s3028 = scalar_lea.sflag [#allocation3], 1
    %3029 = vsyncpa %s3028, 1

</llo_original>
